<compile_context>
chip_gen: v6e
topology: v6e:2x2x1
jax: 0.10.0
libtpu: 0.0.40
codegen_flags: <defaults>
</compile_context>

<pallas_src>
import functools
import math

import jax
import jax.numpy as jnp
from jax.experimental import pallas as pl
from jax.experimental.pallas import tpu as pltpu


def decoder_layer_kernel(*refs, num_heads, dim_key, eps, causal, tq, compute_dtype):
    if causal:
        (q_ref, k_ref, v_ref,
         wq_ref, bq_ref, wk_ref, bk_ref, wv_ref, bv_ref, wo_ref, bo_ref,
         g1_ref, be1_ref, w1_ref, b1_ref, w2_ref, b2_ref, g2_ref, be2_ref,
         o_ref, kproj_ref, vproj_ref) = refs
        bias_ref = None
    else:
        (q_ref, k_ref, v_ref, bias_ref,
         wq_ref, bq_ref, wk_ref, bk_ref, wv_ref, bv_ref, wo_ref, bo_ref,
         g1_ref, be1_ref, w1_ref, b1_ref, w2_ref, b2_ref, g2_ref, be2_ref,
         o_ref, kproj_ref, vproj_ref) = refs

    f32 = jnp.float32
    cd = compute_dtype
    approx = jnp.dtype(cd) == jnp.dtype(jnp.bfloat16)
    qi = pl.program_id(1)

    q = q_ref[0]                       # (tq, D) f32 query tile (f32 for residual)

    # ---- K/V projections: depend only on the batch index, so compute them once
    # per batch (the qi axis is "arbitrary" => qi == 0 runs first on each core)
    # and cache in VMEM scratch for all later query tiles of this batch.
    @pl.when(qi == 0)
    def _():
        k = k_ref[0].astype(cd)        # (S, D)
        v = v_ref[0].astype(cd)        # (S, D)
        kproj_ref[...] = (
            jnp.dot(k, wk_ref[...], preferred_element_type=f32) + bk_ref[...]
        ).astype(cd)
        vproj_ref[...] = (
            jnp.dot(v, wv_ref[...], preferred_element_type=f32) + bv_ref[...]
        ).astype(cd)

    # Wq / bq already carry the 1/sqrt(dim_key) attention scale (folded in the
    # wrapper), so no per-head score scaling is needed below.
    Q = (jnp.dot(q.astype(cd), wq_ref[...], preferred_element_type=f32)
         + bq_ref[...]).astype(cd)     # (tq, H*dk)
    K = kproj_ref[...]                 # (S, H*dk)  compute_dtype
    V = vproj_ref[...]                 # (S, D)     compute_dtype

    S = K.shape[0]
    d_model = q.shape[-1]
    d_v = V.shape[-1] // num_heads

    # ---- additive attention bias (0 = attend, -1e9 = masked) ----
    if causal:
        row = jax.lax.broadcasted_iota(jnp.int32, (tq, S), 0) + qi * tq
        col = jax.lax.broadcasted_iota(jnp.int32, (tq, S), 1)
        bias = jnp.where(col <= row, jnp.float32(0.0), jnp.float32(-1e9))
    else:
        bias = bias_ref[0]             # (tq, S) bf16 additive bias (promotes to f32)

    # ---- attention with the output projection fused into the head loop ----
    # (no concatenate / cross-lane relayout; attn accumulated in f32)
    attn = jnp.zeros((tq, d_model), dtype=f32)
    for h in range(num_heads):         # static unroll over heads
        Qh = Q[:, h * dim_key:(h + 1) * dim_key]     # (tq, dk)
        Kh = K[:, h * dim_key:(h + 1) * dim_key]     # (S, dk)
        Vh = V[:, h * d_v:(h + 1) * d_v]             # (S, dv)
        s = jnp.einsum("qd,kd->qk", Qh, Kh,
                       preferred_element_type=f32) + bias
        m = jnp.max(s, axis=-1, keepdims=True)
        p = jnp.exp(s - m)
        inv = pl.reciprocal(jnp.sum(p, axis=-1, keepdims=True), approx=approx)
        # normalize the (tq, dv) context instead of the (tq, S) probabilities
        ctx = jnp.dot(p.astype(cd), Vh, preferred_element_type=f32) * inv
        attn = attn + jnp.dot(ctx.astype(cd), wo_ref[h * d_v:(h + 1) * d_v, :],
                              preferred_element_type=f32)
    attn = attn + bo_ref[...]

    # ---- residual + LayerNorm1 (dropout == identity in eval) ----
    x1 = q + attn
    mu1 = jnp.mean(x1, axis=-1, keepdims=True)
    var1 = jnp.mean((x1 - mu1) ** 2, axis=-1, keepdims=True)
    xn = (x1 - mu1) * jax.lax.rsqrt(var1 + eps) * g1_ref[...] + be1_ref[...]

    # ---- position-wise feed-forward ----
    h1 = jnp.maximum(
        jnp.dot(xn.astype(cd), w1_ref[...], preferred_element_type=f32) + b1_ref[...],
        0.0)
    ff = jnp.dot(h1.astype(cd), w2_ref[...], preferred_element_type=f32) + b2_ref[...]

    # ---- residual + LayerNorm2 ----
    x2 = xn + ff
    mu2 = jnp.mean(x2, axis=-1, keepdims=True)
    var2 = jnp.mean((x2 - mu2) ** 2, axis=-1, keepdims=True)
    out = (x2 - mu2) * jax.lax.rsqrt(var2 + eps) * g2_ref[...] + be2_ref[...]

    o_ref[0] = out.astype(o_ref.dtype)


def causal_decoder_layer(q, k, v, mask, params, *, num_heads, dim_key, eps=1e-5,
                         seq_tile=None, compute_dtype=jnp.bfloat16):
    """mask=None -> causal mask generated in-kernel (no HBM mask traffic).
    Otherwise mask is (B, S, S) with 0 == masked (module semantics)."""
    B, S, D = q.shape
    HDK = params["wq"].shape[1]
    d_ff = params["w1"].shape[1]

    if seq_tile is None:
        seq_tile = S
        for cand in (256, 128, 64, 32, 16, 8):
            if S % cand == 0:
                seq_tile = cand
                break
    tq = seq_tile
    assert S % tq == 0 and tq % 8 == 0, "seq_tile must divide S and be a multiple of 8"

    causal = mask is None
    cd = compute_dtype
    scale = 1.0 / math.sqrt(dim_key)

    # MXU operands in compute dtype (bf16 halves weight HBM/VMEM traffic).
    # The attention scale is folded into Wq/bq (fused with this cast), so the
    # kernel never scales the (tq, S) score matrices.
    wq = (params["wq"] * scale).astype(cd)
    bq = (params["bq"] * scale).astype(jnp.float32)
    wk = params["wk"].astype(cd)
    wv = params["wv"].astype(cd)
    wo = params["wo"].astype(cd)
    w1 = params["w1"].astype(cd)
    w2 = params["w2"].astype(cd)

    q_spec = pl.BlockSpec((1, tq, D), lambda b, i: (b, i, 0))
    kv_spec = pl.BlockSpec((1, S, D), lambda b, i: (b, 0, 0))  # re-DMA only when b changes

    def full_spec(shape):
        return pl.BlockSpec(shape, lambda b, i: tuple(0 for _ in shape))

    in_specs = [q_spec, kv_spec, kv_spec]
    args = [q, k, v]
    if not causal:
        # General-mask fallback: precompute the additive bias once outside the
        # kernel (single add in-kernel, reused across heads).  bf16 halves the
        # (B, S, S) mask HBM traffic; it is exact where the mask is 1 (bias 0)
        # and still drives masked probabilities to 0 after softmax.
        bias = jnp.where(mask == 0, -1e9, 0.0).astype(jnp.bfloat16)
        in_specs.append(pl.BlockSpec((1, tq, S), lambda b, i: (b, i, 0)))
        args.append(bias)

    in_specs += [
        full_spec((D, HDK)), full_spec((1, HDK)),
        full_spec((D, HDK)), full_spec((1, HDK)),
        full_spec((D, D)),   full_spec((1, D)),
        full_spec((D, D)),   full_spec((1, D)),
        full_spec((1, D)),   full_spec((1, D)),
        full_spec((D, d_ff)), full_spec((1, d_ff)),
        full_spec((d_ff, D)), full_spec((1, D)),
        full_spec((1, D)),   full_spec((1, D)),
    ]
    args += [wq, bq, wk, params["bk"], wv, params["bv"], wo, params["bo"],
             params["g1"], params["be1"], w1, params["b1"], w2, params["b2"],
             params["g2"], params["be2"]]

    kernel = functools.partial(
        decoder_layer_kernel, num_heads=num_heads, dim_key=dim_key, eps=eps,
        causal=causal, tq=tq, compute_dtype=cd)

    return pl.pallas_call(
        kernel,
        out_shape=jax.ShapeDtypeStruct((B, S, D), jnp.float32),
        grid=(B, S // tq),
        in_specs=in_specs,
        out_specs=q_spec,
        scratch_shapes=[pltpu.VMEM((S, HDK), cd),   # cached K projection
                        pltpu.VMEM((S, D), cd)],    # cached V projection
        compiler_params=pltpu.CompilerParams(
            dimension_semantics=("parallel", "arbitrary"),
            vmem_limit_bytes=64 * 1024 * 1024),
    )(*args)


def reference(q, k, v, mask, params, *, num_heads, dim_key, eps=1e-5):
    """Pure-JAX reference mirroring the PyTorch module (eval mode)."""
    B, S, D = q.shape
    d_v = D // num_heads

    Q = q @ params["wq"] + params["bq"]
    K = k @ params["wk"] + params["bk"]
    V = v @ params["wv"] + params["bv"]

    Qh = Q.reshape(B, S, num_heads, dim_key).transpose(0, 2, 1, 3)
    Kh = K.reshape(B, S, num_heads, dim_key).transpose(0, 2, 1, 3)
    Vh = V.reshape(B, S, num_heads, d_v).transpose(0, 2, 1, 3)

    scores = jnp.einsum("bhqd,bhkd->bhqk", Qh, Kh) / math.sqrt(dim_key)
    scores = jnp.where(mask[:, None, :, :] == 0, -1e9, scores)
    probs = jax.nn.softmax(scores, axis=-1)
    ctx = jnp.einsum("bhqk,bhkd->bhqd", probs, Vh)
    ctx = ctx.transpose(0, 2, 1, 3).reshape(B, S, D)
    attn_out = ctx @ params["wo"] + params["bo"]

    def layernorm(x, g, b):
        mu = jnp.mean(x, axis=-1, keepdims=True)
        var = jnp.mean((x - mu) ** 2, axis=-1, keepdims=True)
        return (x - mu) / jnp.sqrt(var + eps) * g + b

    x1 = layernorm(q + attn_out, params["g1"], params["be1"])
    ff = jnp.maximum(x1 @ params["w1"] + params["b1"], 0.0) @ params["w2"] + params["b2"]
    return layernorm(x1 + ff, params["g2"], params["be2"])


if __name__ == "__main__":
    # Small but lane-dense shapes (D multiple of 128) consistent with the module.
    B, S, D, H, DK, DFF = 2, 128, 128, 4, 32, 256
    TQ = 64  # 2 query tiles per batch -> 4 grid steps total

    key = jax.random.PRNGKey(0)
    ks = jax.random.split(key, 24)
    f32 = jnp.float32

    def w(k_, shape, scale=0.05):
        return (scale * jax.random.normal(k_, shape)).astype(f32)

    params = {
        # Linear weights stored as (in, out) == PyTorch weight.T
        "wq": w(ks[0], (D, H * DK)), "bq": w(ks[1], (1, H * DK)),
        "wk": w(ks[2], (D, H * DK)), "bk": w(ks[3], (1, H * DK)),
        "wv": w(ks[4], (D, D)),      "bv": w(ks[5], (1, D)),
        "wo": w(ks[6], (D, D)),      "bo": w(ks[7], (1, D)),
        "g1": (1.0 + w(ks[8], (1, D), 0.1)), "be1": w(ks[9], (1, D), 0.1),
        "w1": w(ks[10], (D, DFF)),   "b1": w(ks[11], (1, DFF)),
        "w2": w(ks[12], (DFF, D)),   "b2": w(ks[13], (1, D)),
        "g2": (1.0 + w(ks[14], (1, D), 0.1)), "be2": w(ks[15], (1, D), 0.1),
    }

    q = jax.random.normal(ks[16], (B, S, D), dtype=f32)
    k = jax.random.normal(ks[17], (B, S, D), dtype=f32)
    v = jax.random.normal(ks[18], (B, S, D), dtype=f32)
    # causal mask, shape (B, S, S), 0 -> masked
    mask = jnp.broadcast_to(jnp.tril(jnp.ones((S, S), dtype=f32)), (B, S, S))

    ref = reference(q, k, v, mask, params, num_heads=H, dim_key=DK)

    # 1) exact-semantics path: f32 MXU operands, explicit (general) mask input.
    out_f32 = causal_decoder_layer(q, k, v, mask, params, num_heads=H, dim_key=DK,
                                   seq_tile=TQ, compute_dtype=jnp.float32)
    out_f32 = jax.block_until_ready(out_f32)
    assert out_f32.shape == (B, S, D)
    assert jnp.allclose(out_f32, ref, atol=2e-4, rtol=2e-4), "f32 path mismatch vs reference"

    # 2) fast path: bf16 MXU operands, causal mask generated in-kernel (no HBM mask).
    out_bf16 = causal_decoder_layer(q, k, v, None, params, num_heads=H, dim_key=DK,
                                    seq_tile=TQ, compute_dtype=jnp.bfloat16)
    out_bf16 = jax.block_until_ready(out_bf16)
    assert out_bf16.shape == (B, S, D)
    assert jnp.allclose(out_bf16, ref, atol=5e-2, rtol=5e-2), "bf16 path mismatch vs reference"

    print("KERNEL_OK")
</pallas_src>

<mosaic_0001>
module attributes {stable_mosaic.version = 11 : i64} {
  func.func @decoder_layer_kernel(%arg0: i32, %arg1: i32, %arg2: memref<1x64x128xf32, #tpu.memory_space<vmem>>, %arg3: memref<1x128x128xf32, #tpu.memory_space<vmem>>, %arg4: memref<1x128x128xf32, #tpu.memory_space<vmem>>, %arg5: memref<1x64x128xbf16, #tpu.memory_space<vmem>>, %arg6: memref<128x128xf32, #tpu.memory_space<vmem>>, %arg7: memref<1x128xf32, #tpu.memory_space<vmem>>, %arg8: memref<128x128xf32, #tpu.memory_space<vmem>>, %arg9: memref<1x128xf32, #tpu.memory_space<vmem>>, %arg10: memref<128x128xf32, #tpu.memory_space<vmem>>, %arg11: memref<1x128xf32, #tpu.memory_space<vmem>>, %arg12: memref<128x128xf32, #tpu.memory_space<vmem>>, %arg13: memref<1x128xf32, #tpu.memory_space<vmem>>, %arg14: memref<1x128xf32, #tpu.memory_space<vmem>>, %arg15: memref<1x128xf32, #tpu.memory_space<vmem>>, %arg16: memref<128x256xf32, #tpu.memory_space<vmem>>, %arg17: memref<1x256xf32, #tpu.memory_space<vmem>>, %arg18: memref<256x128xf32, #tpu.memory_space<vmem>>, %arg19: memref<1x128xf32, #tpu.memory_space<vmem>>, %arg20: memref<1x128xf32, #tpu.memory_space<vmem>>, %arg21: memref<1x128xf32, #tpu.memory_space<vmem>>, %arg22: memref<1x64x128xf32, #tpu.memory_space<vmem>>, %arg23: memref<128x128xf32, #tpu.memory_space<vmem>>, %arg24: memref<128x128xf32, #tpu.memory_space<vmem>>) attributes {dimension_semantics = [#tpu.dimension_semantics<parallel>, #tpu.dimension_semantics<arbitrary>], iteration_bounds = array<i64: 2, 2>, scalar_prefetch = 0 : i64, scratch_operands = 2 : i64, tpu.core_type = #tpu.core_type<tc>, window_params = [{transform_indices = @transform_0, window_bounds = array<i64: 1, 64, 128>}, {transform_indices = @transform_1, window_bounds = array<i64: 1, 128, 128>}, {transform_indices = @transform_2, window_bounds = array<i64: 1, 128, 128>}, {transform_indices = @transform_3, window_bounds = array<i64: 1, 64, 128>}, {pipeline_mode = #tpu.pipeline_mode<synchronous>, transform_indices = @transform_4, window_bounds = array<i64: 128, 128>}, {pipeline_mode = #tpu.pipeline_mode<synchronous>, transform_indices = @transform_5, window_bounds = array<i64: 1, 128>}, {pipeline_mode = #tpu.pipeline_mode<synchronous>, transform_indices = @transform_6, window_bounds = array<i64: 128, 128>}, {pipeline_mode = #tpu.pipeline_mode<synchronous>, transform_indices = @transform_7, window_bounds = array<i64: 1, 128>}, {pipeline_mode = #tpu.pipeline_mode<synchronous>, transform_indices = @transform_8, window_bounds = array<i64: 128, 128>}, {pipeline_mode = #tpu.pipeline_mode<synchronous>, transform_indices = @transform_9, window_bounds = array<i64: 1, 128>}, {pipeline_mode = #tpu.pipeline_mode<synchronous>, transform_indices = @transform_10, window_bounds = array<i64: 128, 128>}, {pipeline_mode = #tpu.pipeline_mode<synchronous>, transform_indices = @transform_11, window_bounds = array<i64: 1, 128>}, {pipeline_mode = #tpu.pipeline_mode<synchronous>, transform_indices = @transform_12, window_bounds = array<i64: 1, 128>}, {pipeline_mode = #tpu.pipeline_mode<synchronous>, transform_indices = @transform_13, window_bounds = array<i64: 1, 128>}, {pipeline_mode = #tpu.pipeline_mode<synchronous>, transform_indices = @transform_14, window_bounds = array<i64: 128, 256>}, {pipeline_mode = #tpu.pipeline_mode<synchronous>, transform_indices = @transform_15, window_bounds = array<i64: 1, 256>}, {pipeline_mode = #tpu.pipeline_mode<synchronous>, transform_indices = @transform_16, window_bounds = array<i64: 256, 128>}, {pipeline_mode = #tpu.pipeline_mode<synchronous>, transform_indices = @transform_17, window_bounds = array<i64: 1, 128>}, {pipeline_mode = #tpu.pipeline_mode<synchronous>, transform_indices = @transform_18, window_bounds = array<i64: 1, 128>}, {pipeline_mode = #tpu.pipeline_mode<synchronous>, transform_indices = @transform_19, window_bounds = array<i64: 1, 128>}, {transform_indices = @transform_20, window_bounds = array<i64: 1, 64, 128>}]} {
    %c0 = arith.constant 0 : index
    %c0_0 = arith.constant 0 : index
    %c0_1 = arith.constant 0 : index
    %0 = vector.load %arg2[%c0, %c0_0, %c0_1] : memref<1x64x128xf32, #tpu.memory_space<vmem>>, vector<1x64x128xf32>
    %1 = vector.shape_cast %0 : vector<1x64x128xf32> to vector<64x128xf32>
    %c0_i32 = arith.constant 0 : i32
    %2 = arith.cmpi eq, %arg1, %c0_i32 : i32
    %3 = arith.extui %2 : i1 to i32
    %c0_i32_2 = arith.constant 0 : i32
    %4 = arith.cmpi ne, %3, %c0_i32_2 : i32
    scf.if %4 {
      %c0_74 = arith.constant 0 : index
      %c0_75 = arith.constant 0 : index
      %c0_76 = arith.constant 0 : index
      %163 = vector.load %arg3[%c0_74, %c0_75, %c0_76] : memref<1x128x128xf32, #tpu.memory_space<vmem>>, vector<1x128x128xf32>
      %164 = vector.shape_cast %163 : vector<1x128x128xf32> to vector<128x128xf32>
      %c0_77 = arith.constant 0 : index
      %c0_78 = arith.constant 0 : index
      %c0_79 = arith.constant 0 : index
      %165 = vector.load %arg4[%c0_77, %c0_78, %c0_79] : memref<1x128x128xf32, #tpu.memory_space<vmem>>, vector<1x128x128xf32>
      %166 = vector.shape_cast %165 : vector<1x128x128xf32> to vector<128x128xf32>
      %c0_80 = arith.constant 0 : index
      %c0_81 = arith.constant 0 : index
      %167 = vector.load %arg8[%c0_80, %c0_81] : memref<128x128xf32, #tpu.memory_space<vmem>>, vector<128x128xf32>
      %cst_82 = arith.constant dense<0.000000e+00> : vector<128x128xf32>
      %168 = tpu.matmul %164, %167, %cst_82 {dimension_numbers = #tpu.dot_dimension_numbers<[1], [0], [0], [1], [0, 0, 1, 1], [], []>} : vector<128x128xf32>, vector<128x128xf32>, vector<128x128xf32> -> vector<128x128xf32>
      %c0_83 = arith.constant 0 : index
      %c0_84 = arith.constant 0 : index
      %169 = vector.load %arg9[%c0_83, %c0_84] : memref<1x128xf32, #tpu.memory_space<vmem>>, vector<1x128xf32>
      %170 = vector.broadcast %169 : vector<1x128xf32> to vector<128x128xf32>
      %171 = arith.addf %168, %170 : vector<128x128xf32>
      %c0_85 = arith.constant 0 : index
      %c0_86 = arith.constant 0 : index
      %172 = vector.load %arg23[%c0_85, %c0_86] : memref<128x128xf32, #tpu.memory_space<vmem>>, vector<128x128xf32>
      tpu.vector_store %arg23[%c0_85, %c0_86], %171 {strides = array<i32>} : memref<128x128xf32, #tpu.memory_space<vmem>>, vector<128x128xf32>,
      %c0_87 = arith.constant 0 : index
      %c0_88 = arith.constant 0 : index
      %173 = vector.load %arg10[%c0_87, %c0_88] : memref<128x128xf32, #tpu.memory_space<vmem>>, vector<128x128xf32>
      %cst_89 = arith.constant dense<0.000000e+00> : vector<128x128xf32>
      %174 = tpu.matmul %166, %173, %cst_89 {dimension_numbers = #tpu.dot_dimension_numbers<[1], [0], [0], [1], [0, 0, 1, 1], [], []>} : vector<128x128xf32>, vector<128x128xf32>, vector<128x128xf32> -> vector<128x128xf32>
      %c0_90 = arith.constant 0 : index
      %c0_91 = arith.constant 0 : index
      %175 = vector.load %arg11[%c0_90, %c0_91] : memref<1x128xf32, #tpu.memory_space<vmem>>, vector<1x128xf32>
      %176 = vector.broadcast %175 : vector<1x128xf32> to vector<128x128xf32>
      %177 = arith.addf %174, %176 : vector<128x128xf32>
      %c0_92 = arith.constant 0 : index
      %c0_93 = arith.constant 0 : index
      %178 = vector.load %arg24[%c0_92, %c0_93] : memref<128x128xf32, #tpu.memory_space<vmem>>, vector<128x128xf32>
      tpu.vector_store %arg24[%c0_92, %c0_93], %177 {strides = array<i32>} : memref<128x128xf32, #tpu.memory_space<vmem>>, vector<128x128xf32>,
    } else {
    }
    %c0_3 = arith.constant 0 : index
    %c0_4 = arith.constant 0 : index
    %5 = vector.load %arg6[%c0_3, %c0_4] : memref<128x128xf32, #tpu.memory_space<vmem>>, vector<128x128xf32>
    %cst = arith.constant dense<0.000000e+00> : vector<64x128xf32>
    %6 = tpu.matmul %1, %5, %cst {dimension_numbers = #tpu.dot_dimension_numbers<[1], [0], [0], [1], [0, 0, 1, 1], [], []>} : vector<64x128xf32>, vector<128x128xf32>, vector<64x128xf32> -> vector<64x128xf32>
    %c0_5 = arith.constant 0 : index
    %c0_6 = arith.constant 0 : index
    %7 = vector.load %arg7[%c0_5, %c0_6] : memref<1x128xf32, #tpu.memory_space<vmem>>, vector<1x128xf32>
    %8 = vector.broadcast %7 : vector<1x128xf32> to vector<64x128xf32>
    %9 = arith.addf %6, %8 : vector<64x128xf32>
    %c0_7 = arith.constant 0 : index
    %c0_8 = arith.constant 0 : index
    %10 = vector.load %arg23[%c0_7, %c0_8] : memref<128x128xf32, #tpu.memory_space<vmem>>, vector<128x128xf32>
    %c0_9 = arith.constant 0 : index
    %c0_10 = arith.constant 0 : index
    %11 = vector.load %arg24[%c0_9, %c0_10] : memref<128x128xf32, #tpu.memory_space<vmem>>, vector<128x128xf32>
    %c0_11 = arith.constant 0 : index
    %c0_12 = arith.constant 0 : index
    %c0_13 = arith.constant 0 : index
    %12 = vector.load %arg5[%c0_11, %c0_12, %c0_13] : memref<1x64x128xbf16, #tpu.memory_space<vmem>>, vector<1x64x128xbf16>
    %13 = vector.shape_cast %12 : vector<1x64x128xbf16> to vector<64x128xbf16>
    %cst_14 = arith.constant 0.000000e+00 : f32
    %14 = vector.broadcast %cst_14 : f32 to vector<64x128xf32>
    %15 = vector.extract_strided_slice %9 {offsets = [0, 0], sizes = [64, 32], strides = [1, 1]} : vector<64x128xf32> to vector<64x32xf32>
    %16 = vector.extract_strided_slice %10 {offsets = [0, 0], sizes = [128, 32], strides = [1, 1]} : vector<128x128xf32> to vector<128x32xf32>
    %17 = vector.extract_strided_slice %11 {offsets = [0, 0], sizes = [128, 32], strides = [1, 1]} : vector<128x128xf32> to vector<128x32xf32>
    "tpu.trace_start"() <{level = 10 : i32, message = "qd,kd->qk"}> : () -> ()
    %cst_15 = arith.constant dense<0.000000e+00> : vector<64x128xf32>
    %18 = tpu.matmul %15, %16, %cst_15 {dimension_numbers = #tpu.dot_dimension_numbers<[1], [1], [0], [0], [0, 0, 1, 0], [], []>} : vector<64x32xf32>, vector<128x32xf32>, vector<64x128xf32> -> vector<64x128xf32>
    "tpu.trace_stop"() : () -> ()
    %19 = arith.extf %13 : vector<64x128xbf16> to vector<64x128xf32>
    %20 = arith.addf %18, %19 : vector<64x128xf32>
    %cst_16 = arith.constant dense<0xFF800000> : vector<64xf32>
    %21 = vector.multi_reduction <maximumf>, %20, %cst_16 [1] : vector<64x128xf32> to vector<64xf32>
    %22 = vector.shape_cast %21 : vector<64xf32> to vector<64x1xf32>
    %23 = vector.broadcast %22 : vector<64x1xf32> to vector<64x128xf32>
    %24 = arith.subf %20, %23 : vector<64x128xf32>
    %25 = math.exp %24 : vector<64x128xf32>
    %cst_17 = arith.constant dense<0.000000e+00> : vector<64xf32>
    %26 = vector.multi_reduction <add>, %25, %cst_17 [1] : vector<64x128xf32> to vector<64xf32>
    %27 = vector.shape_cast %26 : vector<64xf32> to vector<64x1xf32>
    %28 = tpu.reciprocal %27 : vector<64x1xf32> -> vector<64x1xf32>
    %cst_18 = arith.constant dense<0.000000e+00> : vector<64x32xf32>
    %29 = tpu.matmul %25, %17, %cst_18 {dimension_numbers = #tpu.dot_dimension_numbers<[1], [0], [0], [1], [0, 0, 1, 1], [], []>} : vector<64x128xf32>, vector<128x32xf32>, vector<64x32xf32> -> vector<64x32xf32>
    %30 = vector.broadcast %28 : vector<64x1xf32> to vector<64x32xf32>
    %31 = arith.mulf %29, %30 : vector<64x32xf32>
    %c0_19 = arith.constant 0 : index
    %c0_20 = arith.constant 0 : index
    %32 = vector.load %arg12[%c0_19, %c0_20] : memref<128x128xf32, #tpu.memory_space<vmem>>, vector<32x128xf32>
    %cst_21 = arith.constant dense<0.000000e+00> : vector<64x128xf32>
    %33 = tpu.matmul %31, %32, %cst_21 {dimension_numbers = #tpu.dot_dimension_numbers<[1], [0], [0], [1], [0, 0, 1, 1], [], []>} : vector<64x32xf32>, vector<32x128xf32>, vector<64x128xf32> -> vector<64x128xf32>
    %34 = arith.addf %14, %33 : vector<64x128xf32>
    %35 = vector.extract_strided_slice %9 {offsets = [0, 32], sizes = [64, 32], strides = [1, 1]} : vector<64x128xf32> to vector<64x32xf32>
    %36 = vector.extract_strided_slice %10 {offsets = [0, 32], sizes = [128, 32], strides = [1, 1]} : vector<128x128xf32> to vector<128x32xf32>
    %37 = vector.extract_strided_slice %11 {offsets = [0, 32], sizes = [128, 32], strides = [1, 1]} : vector<128x128xf32> to vector<128x32xf32>
    "tpu.trace_start"() <{level = 10 : i32, message = "qd,kd->qk"}> : () -> ()
    %cst_22 = arith.constant dense<0.000000e+00> : vector<64x128xf32>
    %38 = tpu.matmul %35, %36, %cst_22 {dimension_numbers = #tpu.dot_dimension_numbers<[1], [1], [0], [0], [0, 0, 1, 0], [], []>} : vector<64x32xf32>, vector<128x32xf32>, vector<64x128xf32> -> vector<64x128xf32>
    "tpu.trace_stop"() : () -> ()
    %39 = arith.extf %13 : vector<64x128xbf16> to vector<64x128xf32>
    %40 = arith.addf %38, %39 : vector<64x128xf32>
    %cst_23 = arith.constant dense<0xFF800000> : vector<64xf32>
    %41 = vector.multi_reduction <maximumf>, %40, %cst_23 [1] : vector<64x128xf32> to vector<64xf32>
    %42 = vector.shape_cast %41 : vector<64xf32> to vector<64x1xf32>
    %43 = vector.broadcast %42 : vector<64x1xf32> to vector<64x128xf32>
    %44 = arith.subf %40, %43 : vector<64x128xf32>
    %45 = math.exp %44 : vector<64x128xf32>
    %cst_24 = arith.constant dense<0.000000e+00> : vector<64xf32>
    %46 = vector.multi_reduction <add>, %45, %cst_24 [1] : vector<64x128xf32> to vector<64xf32>
    %47 = vector.shape_cast %46 : vector<64xf32> to vector<64x1xf32>
    %48 = tpu.reciprocal %47 : vector<64x1xf32> -> vector<64x1xf32>
    %cst_25 = arith.constant dense<0.000000e+00> : vector<64x32xf32>
    %49 = tpu.matmul %45, %37, %cst_25 {dimension_numbers = #tpu.dot_dimension_numbers<[1], [0], [0], [1], [0, 0, 1, 1], [], []>} : vector<64x128xf32>, vector<128x32xf32>, vector<64x32xf32> -> vector<64x32xf32>
    %50 = vector.broadcast %48 : vector<64x1xf32> to vector<64x32xf32>
    %51 = arith.mulf %49, %50 : vector<64x32xf32>
    %c32 = arith.constant 32 : index
    %c0_26 = arith.constant 0 : index
    %52 = vector.load %arg12[%c32, %c0_26] : memref<128x128xf32, #tpu.memory_space<vmem>>, vector<32x128xf32>
    %cst_27 = arith.constant dense<0.000000e+00> : vector<64x128xf32>
    %53 = tpu.matmul %51, %52, %cst_27 {dimension_numbers = #tpu.dot_dimension_numbers<[1], [0], [0], [1], [0, 0, 1, 1], [], []>} : vector<64x32xf32>, vector<32x128xf32>, vector<64x128xf32> -> vector<64x128xf32>
    %54 = arith.addf %34, %53 : vector<64x128xf32>
    %55 = vector.extract_strided_slice %9 {offsets = [0, 64], sizes = [64, 32], strides = [1, 1]} : vector<64x128xf32> to vector<64x32xf32>
    %56 = vector.extract_strided_slice %10 {offsets = [0, 64], sizes = [128, 32], strides = [1, 1]} : vector<128x128xf32> to vector<128x32xf32>
    %57 = vector.extract_strided_slice %11 {offsets = [0, 64], sizes = [128, 32], strides = [1, 1]} : vector<128x128xf32> to vector<128x32xf32>
    "tpu.trace_start"() <{level = 10 : i32, message = "qd,kd->qk"}> : () -> ()
    %cst_28 = arith.constant dense<0.000000e+00> : vector<64x128xf32>
    %58 = tpu.matmul %55, %56, %cst_28 {dimension_numbers = #tpu.dot_dimension_numbers<[1], [1], [0], [0], [0, 0, 1, 0], [], []>} : vector<64x32xf32>, vector<128x32xf32>, vector<64x128xf32> -> vector<64x128xf32>
    "tpu.trace_stop"() : () -> ()
    %59 = arith.extf %13 : vector<64x128xbf16> to vector<64x128xf32>
    %60 = arith.addf %58, %59 : vector<64x128xf32>
    %cst_29 = arith.constant dense<0xFF800000> : vector<64xf32>
    %61 = vector.multi_reduction <maximumf>, %60, %cst_29 [1] : vector<64x128xf32> to vector<64xf32>
    %62 = vector.shape_cast %61 : vector<64xf32> to vector<64x1xf32>
    %63 = vector.broadcast %62 : vector<64x1xf32> to vector<64x128xf32>
    %64 = arith.subf %60, %63 : vector<64x128xf32>
    %65 = math.exp %64 : vector<64x128xf32>
    %cst_30 = arith.constant dense<0.000000e+00> : vector<64xf32>
    %66 = vector.multi_reduction <add>, %65, %cst_30 [1] : vector<64x128xf32> to vector<64xf32>
    %67 = vector.shape_cast %66 : vector<64xf32> to vector<64x1xf32>
    %68 = tpu.reciprocal %67 : vector<64x1xf32> -> vector<64x1xf32>
    %cst_31 = arith.constant dense<0.000000e+00> : vector<64x32xf32>
    %69 = tpu.matmul %65, %57, %cst_31 {dimension_numbers = #tpu.dot_dimension_numbers<[1], [0], [0], [1], [0, 0, 1, 1], [], []>} : vector<64x128xf32>, vector<128x32xf32>, vector<64x32xf32> -> vector<64x32xf32>
    %70 = vector.broadcast %68 : vector<64x1xf32> to vector<64x32xf32>
    %71 = arith.mulf %69, %70 : vector<64x32xf32>
    %c64 = arith.constant 64 : index
    %c0_32 = arith.constant 0 : index
    %72 = vector.load %arg12[%c64, %c0_32] : memref<128x128xf32, #tpu.memory_space<vmem>>, vector<32x128xf32>
    %cst_33 = arith.constant dense<0.000000e+00> : vector<64x128xf32>
    %73 = tpu.matmul %71, %72, %cst_33 {dimension_numbers = #tpu.dot_dimension_numbers<[1], [0], [0], [1], [0, 0, 1, 1], [], []>} : vector<64x32xf32>, vector<32x128xf32>, vector<64x128xf32> -> vector<64x128xf32>
    %74 = arith.addf %54, %73 : vector<64x128xf32>
    %75 = vector.extract_strided_slice %9 {offsets = [0, 96], sizes = [64, 32], strides = [1, 1]} : vector<64x128xf32> to vector<64x32xf32>
    %76 = vector.extract_strided_slice %10 {offsets = [0, 96], sizes = [128, 32], strides = [1, 1]} : vector<128x128xf32> to vector<128x32xf32>
    %77 = vector.extract_strided_slice %11 {offsets = [0, 96], sizes = [128, 32], strides = [1, 1]} : vector<128x128xf32> to vector<128x32xf32>
    "tpu.trace_start"() <{level = 10 : i32, message = "qd,kd->qk"}> : () -> ()
    %cst_34 = arith.constant dense<0.000000e+00> : vector<64x128xf32>
    %78 = tpu.matmul %75, %76, %cst_34 {dimension_numbers = #tpu.dot_dimension_numbers<[1], [1], [0], [0], [0, 0, 1, 0], [], []>} : vector<64x32xf32>, vector<128x32xf32>, vector<64x128xf32> -> vector<64x128xf32>
    "tpu.trace_stop"() : () -> ()
    %79 = arith.extf %13 : vector<64x128xbf16> to vector<64x128xf32>
    %80 = arith.addf %78, %79 : vector<64x128xf32>
    %cst_35 = arith.constant dense<0xFF800000> : vector<64xf32>
    %81 = vector.multi_reduction <maximumf>, %80, %cst_35 [1] : vector<64x128xf32> to vector<64xf32>
    %82 = vector.shape_cast %81 : vector<64xf32> to vector<64x1xf32>
    %83 = vector.broadcast %82 : vector<64x1xf32> to vector<64x128xf32>
    %84 = arith.subf %80, %83 : vector<64x128xf32>
    %85 = math.exp %84 : vector<64x128xf32>
    %cst_36 = arith.constant dense<0.000000e+00> : vector<64xf32>
    %86 = vector.multi_reduction <add>, %85, %cst_36 [1] : vector<64x128xf32> to vector<64xf32>
    %87 = vector.shape_cast %86 : vector<64xf32> to vector<64x1xf32>
    %88 = tpu.reciprocal %87 : vector<64x1xf32> -> vector<64x1xf32>
    %cst_37 = arith.constant dense<0.000000e+00> : vector<64x32xf32>
    %89 = tpu.matmul %85, %77, %cst_37 {dimension_numbers = #tpu.dot_dimension_numbers<[1], [0], [0], [1], [0, 0, 1, 1], [], []>} : vector<64x128xf32>, vector<128x32xf32>, vector<64x32xf32> -> vector<64x32xf32>
    %90 = vector.broadcast %88 : vector<64x1xf32> to vector<64x32xf32>
    %91 = arith.mulf %89, %90 : vector<64x32xf32>
    %c96 = arith.constant 96 : index
    %c0_38 = arith.constant 0 : index
    %92 = vector.load %arg12[%c96, %c0_38] : memref<128x128xf32, #tpu.memory_space<vmem>>, vector<32x128xf32>
    %cst_39 = arith.constant dense<0.000000e+00> : vector<64x128xf32>
    %93 = tpu.matmul %91, %92, %cst_39 {dimension_numbers = #tpu.dot_dimension_numbers<[1], [0], [0], [1], [0, 0, 1, 1], [], []>} : vector<64x32xf32>, vector<32x128xf32>, vector<64x128xf32> -> vector<64x128xf32>
    %94 = arith.addf %74, %93 : vector<64x128xf32>
    %c0_40 = arith.constant 0 : index
    %c0_41 = arith.constant 0 : index
    %95 = vector.load %arg13[%c0_40, %c0_41] : memref<1x128xf32, #tpu.memory_space<vmem>>, vector<1x128xf32>
    %96 = vector.broadcast %95 : vector<1x128xf32> to vector<64x128xf32>
    %97 = arith.addf %94, %96 : vector<64x128xf32>
    %98 = arith.addf %1, %97 : vector<64x128xf32>
    %cst_42 = arith.constant dense<0.000000e+00> : vector<64xf32>
    %99 = vector.multi_reduction <add>, %98, %cst_42 [1] : vector<64x128xf32> to vector<64xf32>
    %100 = vector.shape_cast %99 : vector<64xf32> to vector<64x1xf32>
    %cst_43 = arith.constant 1.280000e+02 : f32
    %101 = vector.broadcast %cst_43 : f32 to vector<64x1xf32>
    %102 = arith.divf %100, %101 : vector<64x1xf32>
    %103 = vector.broadcast %102 : vector<64x1xf32> to vector<64x128xf32>
    %104 = arith.subf %98, %103 : vector<64x128xf32>
    %105 = arith.mulf %104, %104 : vector<64x128xf32>
    %cst_44 = arith.constant dense<0.000000e+00> : vector<64xf32>
    %106 = vector.multi_reduction <add>, %105, %cst_44 [1] : vector<64x128xf32> to vector<64xf32>
    %107 = vector.shape_cast %106 : vector<64xf32> to vector<64x1xf32>
    %cst_45 = arith.constant 1.280000e+02 : f32
    %108 = vector.broadcast %cst_45 : f32 to vector<64x1xf32>
    %109 = arith.divf %107, %108 : vector<64x1xf32>
    %110 = vector.broadcast %102 : vector<64x1xf32> to vector<64x128xf32>
    %111 = arith.subf %98, %110 : vector<64x128xf32>
    %cst_46 = arith.constant 9.99999974E-6 : f32
    %112 = vector.broadcast %cst_46 : f32 to vector<64x1xf32>
    %113 = arith.addf %109, %112 : vector<64x1xf32>
    %114 = math.rsqrt %113 : vector<64x1xf32>
    %115 = vector.broadcast %114 : vector<64x1xf32> to vector<64x128xf32>
    %116 = arith.mulf %111, %115 : vector<64x128xf32>
    %c0_47 = arith.constant 0 : index
    %c0_48 = arith.constant 0 : index
    %117 = vector.load %arg14[%c0_47, %c0_48] : memref<1x128xf32, #tpu.memory_space<vmem>>, vector<1x128xf32>
    %118 = vector.broadcast %117 : vector<1x128xf32> to vector<64x128xf32>
    %119 = arith.mulf %116, %118 : vector<64x128xf32>
    %c0_49 = arith.constant 0 : index
    %c0_50 = arith.constant 0 : index
    %120 = vector.load %arg15[%c0_49, %c0_50] : memref<1x128xf32, #tpu.memory_space<vmem>>, vector<1x128xf32>
    %121 = vector.broadcast %120 : vector<1x128xf32> to vector<64x128xf32>
    %122 = arith.addf %119, %121 : vector<64x128xf32>
    %c0_51 = arith.constant 0 : index
    %c0_52 = arith.constant 0 : index
    %123 = vector.load %arg16[%c0_51, %c0_52] : memref<128x256xf32, #tpu.memory_space<vmem>>, vector<128x256xf32>
    %cst_53 = arith.constant dense<0.000000e+00> : vector<64x256xf32>
    %124 = tpu.matmul %122, %123, %cst_53 {dimension_numbers = #tpu.dot_dimension_numbers<[1], [0], [0], [1], [0, 0, 1, 1], [], []>} : vector<64x128xf32>, vector<128x256xf32>, vector<64x256xf32> -> vector<64x256xf32>
    %c0_54 = arith.constant 0 : index
    %c0_55 = arith.constant 0 : index
    %125 = vector.load %arg17[%c0_54, %c0_55] : memref<1x256xf32, #tpu.memory_space<vmem>>, vector<1x256xf32>
    %126 = vector.broadcast %125 : vector<1x256xf32> to vector<64x256xf32>
    %127 = arith.addf %124, %126 : vector<64x256xf32>
    %cst_56 = arith.constant 0.000000e+00 : f32
    %128 = vector.broadcast %cst_56 : f32 to vector<64x256xf32>
    %129 = arith.maximumf %127, %128 : vector<64x256xf32>
    %c0_57 = arith.constant 0 : index
    %c0_58 = arith.constant 0 : index
    %130 = vector.load %arg18[%c0_57, %c0_58] : memref<256x128xf32, #tpu.memory_space<vmem>>, vector<256x128xf32>
    %cst_59 = arith.constant dense<0.000000e+00> : vector<64x128xf32>
    %131 = tpu.matmul %129, %130, %cst_59 {dimension_numbers = #tpu.dot_dimension_numbers<[1], [0], [0], [1], [0, 0, 1, 1], [], []>} : vector<64x256xf32>, vector<256x128xf32>, vector<64x128xf32> -> vector<64x128xf32>
    %c0_60 = arith.constant 0 : index
    %c0_61 = arith.constant 0 : index
    %132 = vector.load %arg19[%c0_60, %c0_61] : memref<1x128xf32, #tpu.memory_space<vmem>>, vector<1x128xf32>
    %133 = vector.broadcast %132 : vector<1x128xf32> to vector<64x128xf32>
    %134 = arith.addf %131, %133 : vector<64x128xf32>
    %135 = arith.addf %122, %134 : vector<64x128xf32>
    %cst_62 = arith.constant dense<0.000000e+00> : vector<64xf32>
    %136 = vector.multi_reduction <add>, %135, %cst_62 [1] : vector<64x128xf32> to vector<64xf32>
    %137 = vector.shape_cast %136 : vector<64xf32> to vector<64x1xf32>
    %cst_63 = arith.constant 1.280000e+02 : f32
    %138 = vector.broadcast %cst_63 : f32 to vector<64x1xf32>
    %139 = arith.divf %137, %138 : vector<64x1xf32>
    %140 = vector.broadcast %139 : vector<64x1xf32> to vector<64x128xf32>
    %141 = arith.subf %135, %140 : vector<64x128xf32>
    %142 = arith.mulf %141, %141 : vector<64x128xf32>
    %cst_64 = arith.constant dense<0.000000e+00> : vector<64xf32>
    %143 = vector.multi_reduction <add>, %142, %cst_64 [1] : vector<64x128xf32> to vector<64xf32>
    %144 = vector.shape_cast %143 : vector<64xf32> to vector<64x1xf32>
    %cst_65 = arith.constant 1.280000e+02 : f32
    %145 = vector.broadcast %cst_65 : f32 to vector<64x1xf32>
    %146 = arith.divf %144, %145 : vector<64x1xf32>
    %147 = vector.broadcast %139 : vector<64x1xf32> to vector<64x128xf32>
    %148 = arith.subf %135, %147 : vector<64x128xf32>
    %cst_66 = arith.constant 9.99999974E-6 : f32
    %149 = vector.broadcast %cst_66 : f32 to vector<64x1xf32>
    %150 = arith.addf %146, %149 : vector<64x1xf32>
    %151 = math.rsqrt %150 : vector<64x1xf32>
    %152 = vector.broadcast %151 : vector<64x1xf32> to vector<64x128xf32>
    %153 = arith.mulf %148, %152 : vector<64x128xf32>
    %c0_67 = arith.constant 0 : index
    %c0_68 = arith.constant 0 : index
    %154 = vector.load %arg20[%c0_67, %c0_68] : memref<1x128xf32, #tpu.memory_space<vmem>>, vector<1x128xf32>
    %155 = vector.broadcast %154 : vector<1x128xf32> to vector<64x128xf32>
    %156 = arith.mulf %153, %155 : vector<64x128xf32>
    %c0_69 = arith.constant 0 : index
    %c0_70 = arith.constant 0 : index
    %157 = vector.load %arg21[%c0_69, %c0_70] : memref<1x128xf32, #tpu.memory_space<vmem>>, vector<1x128xf32>
    %158 = vector.broadcast %157 : vector<1x128xf32> to vector<64x128xf32>
    %159 = arith.addf %156, %158 : vector<64x128xf32>
    %c0_71 = arith.constant 0 : index
    %c0_72 = arith.constant 0 : index
    %c0_73 = arith.constant 0 : index
    %160 = vector.load %arg22[%c0_71, %c0_72, %c0_73] : memref<1x64x128xf32, #tpu.memory_space<vmem>>, vector<1x64x128xf32>
    %161 = vector.shape_cast %160 : vector<1x64x128xf32> to vector<64x128xf32>
    %162 = vector.shape_cast %159 : vector<64x128xf32> to vector<1x64x128xf32>
    tpu.vector_store %arg22[%c0_71, %c0_72, %c0_73], %162 {strides = array<i32>} : memref<1x64x128xf32, #tpu.memory_space<vmem>>, vector<1x64x128xf32>,
    return
  }
  func.func @transform_0(%arg0: i32, %arg1: i32) -> (i32, i32, i32) {
    %c0_i32 = arith.constant 0 : i32
    %c0_i32_0 = arith.constant 0 : i32
    return %arg0, %arg1, %c0_i32 : i32, i32, i32
  }
  func.func @transform_1(%arg0: i32, %arg1: i32) -> (i32, i32, i32) {
    %c0_i32 = arith.constant 0 : i32
    %c0_i32_0 = arith.constant 0 : i32
    %c0_i32_1 = arith.constant 0 : i32
    return %arg0, %c0_i32, %c0_i32_0 : i32, i32, i32
  }
  func.func @transform_2(%arg0: i32, %arg1: i32) -> (i32, i32, i32) {
    %c0_i32 = arith.constant 0 : i32
    %c0_i32_0 = arith.constant 0 : i32
    %c0_i32_1 = arith.constant 0 : i32
    return %arg0, %c0_i32, %c0_i32_0 : i32, i32, i32
  }
  func.func @transform_3(%arg0: i32, %arg1: i32) -> (i32, i32, i32) {
    %c0_i32 = arith.constant 0 : i32
    %c0_i32_0 = arith.constant 0 : i32
    return %arg0, %arg1, %c0_i32 : i32, i32, i32
  }
  func.func @transform_4(%arg0: i32, %arg1: i32) -> (i32, i32) {
    %c0_i32 = arith.constant 0 : i32
    %c0_i32_0 = arith.constant 0 : i32
    %c0_i32_1 = arith.constant 0 : i32
    return %c0_i32, %c0_i32_0 : i32, i32
  }
  func.func @transform_5(%arg0: i32, %arg1: i32) -> (i32, i32) {
    %c0_i32 = arith.constant 0 : i32
    %c0_i32_0 = arith.constant 0 : i32
    %c0_i32_1 = arith.constant 0 : i32
    return %c0_i32, %c0_i32_0 : i32, i32
  }
  func.func @transform_6(%arg0: i32, %arg1: i32) -> (i32, i32) {
    %c0_i32 = arith.constant 0 : i32
    %c0_i32_0 = arith.constant 0 : i32
    %c0_i32_1 = arith.constant 0 : i32
    return %c0_i32, %c0_i32_0 : i32, i32
  }
  func.func @transform_7(%arg0: i32, %arg1: i32) -> (i32, i32) {
    %c0_i32 = arith.constant 0 : i32
    %c0_i32_0 = arith.constant 0 : i32
    %c0_i32_1 = arith.constant 0 : i32
    return %c0_i32, %c0_i32_0 : i32, i32
  }
  func.func @transform_8(%arg0: i32, %arg1: i32) -> (i32, i32) {
    %c0_i32 = arith.constant 0 : i32
    %c0_i32_0 = arith.constant 0 : i32
    %c0_i32_1 = arith.constant 0 : i32
    return %c0_i32, %c0_i32_0 : i32, i32
  }
  func.func @transform_9(%arg0: i32, %arg1: i32) -> (i32, i32) {
    %c0_i32 = arith.constant 0 : i32
    %c0_i32_0 = arith.constant 0 : i32
    %c0_i32_1 = arith.constant 0 : i32
    return %c0_i32, %c0_i32_0 : i32, i32
  }
  func.func @transform_10(%arg0: i32, %arg1: i32) -> (i32, i32) {
    %c0_i32 = arith.constant 0 : i32
    %c0_i32_0 = arith.constant 0 : i32
    %c0_i32_1 = arith.constant 0 : i32
    return %c0_i32, %c0_i32_0 : i32, i32
  }
  func.func @transform_11(%arg0: i32, %arg1: i32) -> (i32, i32) {
    %c0_i32 = arith.constant 0 : i32
    %c0_i32_0 = arith.constant 0 : i32
    %c0_i32_1 = arith.constant 0 : i32
    return %c0_i32, %c0_i32_0 : i32, i32
  }
  func.func @transform_12(%arg0: i32, %arg1: i32) -> (i32, i32) {
    %c0_i32 = arith.constant 0 : i32
    %c0_i32_0 = arith.constant 0 : i32
    %c0_i32_1 = arith.constant 0 : i32
    return %c0_i32, %c0_i32_0 : i32, i32
  }
  func.func @transform_13(%arg0: i32, %arg1: i32) -> (i32, i32) {
    %c0_i32 = arith.constant 0 : i32
    %c0_i32_0 = arith.constant 0 : i32
    %c0_i32_1 = arith.constant 0 : i32
    return %c0_i32, %c0_i32_0 : i32, i32
  }
  func.func @transform_14(%arg0: i32, %arg1: i32) -> (i32, i32) {
    %c0_i32 = arith.constant 0 : i32
    %c0_i32_0 = arith.constant 0 : i32
    %c0_i32_1 = arith.constant 0 : i32
    return %c0_i32, %c0_i32_0 : i32, i32
  }
  func.func @transform_15(%arg0: i32, %arg1: i32) -> (i32, i32) {
    %c0_i32 = arith.constant 0 : i32
    %c0_i32_0 = arith.constant 0 : i32
    %c0_i32_1 = arith.constant 0 : i32
    return %c0_i32, %c0_i32_0 : i32, i32
  }
  func.func @transform_16(%arg0: i32, %arg1: i32) -> (i32, i32) {
    %c0_i32 = arith.constant 0 : i32
    %c0_i32_0 = arith.constant 0 : i32
    %c0_i32_1 = arith.constant 0 : i32
    return %c0_i32, %c0_i32_0 : i32, i32
  }
  func.func @transform_17(%arg0: i32, %arg1: i32) -> (i32, i32) {
    %c0_i32 = arith.constant 0 : i32
    %c0_i32_0 = arith.constant 0 : i32
    %c0_i32_1 = arith.constant 0 : i32
    return %c0_i32, %c0_i32_0 : i32, i32
  }
  func.func @transform_18(%arg0: i32, %arg1: i32) -> (i32, i32) {
    %c0_i32 = arith.constant 0 : i32
    %c0_i32_0 = arith.constant 0 : i32
    %c0_i32_1 = arith.constant 0 : i32
    return %c0_i32, %c0_i32_0 : i32, i32
  }
  func.func @transform_19(%arg0: i32, %arg1: i32) -> (i32, i32) {
    %c0_i32 = arith.constant 0 : i32
    %c0_i32_0 = arith.constant 0 : i32
    %c0_i32_1 = arith.constant 0 : i32
    return %c0_i32, %c0_i32_0 : i32, i32
  }
  func.func @transform_20(%arg0: i32, %arg1: i32) -> (i32, i32, i32) {
    %c0_i32 = arith.constant 0 : i32
    %c0_i32_0 = arith.constant 0 : i32
    return %arg0, %arg1, %c0_i32 : i32, i32, i32
  }
}

</mosaic_0001>

<llo_original>
// kernel: tpu_custom_call.1
$region0: #{tpu_custom_call.1}
  #allocation0 [shape = 'u32[]', space=smem, size = 0x4, offset = 0x4, fixed_abs, tag = 'smem constant byte address 0x4 - core index']
  #allocation1 [shape = 'u32[144,128]{1,0:T(1,128)}', space=vmem, size = 0x12000, scoped, tag = 'internal scratch']
  #allocation2 [shape = 'f32[128,128]{1,0:T(8,128)}', space=vmem, size = 0x10000, scoped, tag = 'scratch operand']
  #allocation3 [shape = 'f32[128,128]{1,0:T(8,128)}', space=vmem, size = 0x10000, scoped, tag = 'scratch operand']
  %s0 = inlined_call_operand.hbm [shape: f32[2,128,128], index: 0, kind: input, shape index: {}]
  %s1 = inlined_call_operand.hbm [shape: f32[2,128,128], index: 1, kind: input, shape index: {}]
  %s2 = inlined_call_operand.hbm [shape: f32[2,128,128], index: 2, kind: input, shape index: {}]
  %s3 = inlined_call_operand.hbm [shape: bf16[2,128,128], index: 3, kind: input, shape index: {}]
  %s4 = inlined_call_operand.hbm [shape: f32[128,128], index: 4, kind: input, shape index: {}]
  %s5 = inlined_call_operand.vmem [shape: f32[1,128], index: 5, kind: input, shape index: {}]
  %s6 = inlined_call_operand.hbm [shape: f32[128,128], index: 6, kind: input, shape index: {}]
  %s7 = inlined_call_operand.vmem [shape: f32[1,128], index: 7, kind: input, shape index: {}]
  %s8 = inlined_call_operand.hbm [shape: f32[128,128], index: 8, kind: input, shape index: {}]
  %s9 = inlined_call_operand.vmem [shape: f32[1,128], index: 9, kind: input, shape index: {}]
  %s10 = inlined_call_operand.hbm [shape: f32[128,128], index: 10, kind: input, shape index: {}]
  %s11 = inlined_call_operand.vmem [shape: f32[1,128], index: 11, kind: input, shape index: {}]
  %s12 = inlined_call_operand.vmem [shape: f32[1,128], index: 12, kind: input, shape index: {}]
  %s13 = inlined_call_operand.vmem [shape: f32[1,128], index: 13, kind: input, shape index: {}]
  %s14 = inlined_call_operand.hbm [shape: f32[128,256], index: 14, kind: input, shape index: {}]
  %s15 = inlined_call_operand.vmem [shape: f32[1,256], index: 15, kind: input, shape index: {}]
  %s16 = inlined_call_operand.hbm [shape: f32[256,128], index: 16, kind: input, shape index: {}]
  %s17 = inlined_call_operand.vmem [shape: f32[1,128], index: 17, kind: input, shape index: {}]
  %s18 = inlined_call_operand.vmem [shape: f32[1,128], index: 18, kind: input, shape index: {}]
  %s19 = inlined_call_operand.vmem [shape: f32[1,128], index: 19, kind: input, shape index: {}]
  %s20 = inlined_call_operand.hbm [shape: f32[2,128,128], index: 20, kind: output, shape index: {}]
  %s21 = sld [smem:[#allocation0]]
  $region157: #{tpu_custom_call.1} parent=0
    _
  %s23 = ssub.s32 1, %s21
  %s24 = scalar_select 0, %s23, %s21
  $region1: #{tpu_custom_call.1} parent=0
    #allocation4 [shape = 'u8[65536]{0}', space=vmem, size = 0x10000, scoped, tag = 'input window, operand 0']
    #allocation5 [shape = 's32[2]{0}', space=sflag, size = 0x8, scoped, tag = 'scoped memory for tpu_custom_call.1']
    #allocation6 [shape = 's32[2]{0}', space=sflag, size = 0x8, scoped, tag = 'scoped memory for tpu_custom_call.1']
    #allocation7 [shape = 'u8[131072]{0}', space=vmem, size = 0x20000, scoped, tag = 'input window, operand 1']
    #allocation8 [shape = 's32[2]{0}', space=sflag, size = 0x8, scoped, tag = 'scoped memory for tpu_custom_call.1']
    #allocation9 [shape = 'u8[131072]{0}', space=vmem, size = 0x20000, scoped, tag = 'input window, operand 2']
    #allocation10 [shape = 'u8[32768]{0}', space=vmem, size = 0x8000, scoped, tag = 'input window, operand 3']
    #allocation11 [shape = 's32[2]{0}', space=sflag, size = 0x8, scoped, tag = 'scoped memory for tpu_custom_call.1']
    #allocation12 [shape = 'u8[65536]{0}', space=vmem, size = 0x10000, scoped, tag = 'input window, operand 4, single buffered']
    #allocation13 [shape = 'u8[65536]{0}', space=vmem, size = 0x10000, scoped, tag = 'input window, operand 6, single buffered']
    #allocation14 [shape = 's32[1]{0}', space=sflag, size = 0x4, scoped, tag = 'scoped memory for tpu_custom_call.1']
    #allocation15 [shape = 'u8[65536]{0}', space=vmem, size = 0x10000, scoped, tag = 'input window, operand 8, single buffered']
    #allocation16 [shape = 'u8[65536]{0}', space=vmem, size = 0x10000, scoped, tag = 'input window, operand 10, single buffered']
    #allocation17 [shape = 's32[1]{0}', space=sflag, size = 0x4, scoped, tag = 'scoped memory for tpu_custom_call.1']
    #allocation18 [shape = 'u8[131072]{0}', space=vmem, size = 0x20000, scoped, tag = 'input window, operand 14, single buffered']
    #allocation19 [shape = 'u8[131072]{0}', space=vmem, size = 0x20000, scoped, tag = 'input window, operand 16, single buffered']
    #allocation20 [shape = 's32[1]{0}', space=sflag, size = 0x4, scoped, tag = 'scoped memory for tpu_custom_call.1']
    #allocation21 [shape = 'u8[65536]{0}', space=vmem, size = 0x10000, scoped, tag = 'output window, operand 0']
    %25 = vsyncpa [#allocation5], 0
    %s26 = scalar_lea.sflag [#allocation5], 1
    %27 = vsyncpa %s26, 0
    %28 = vsyncpa [#allocation8], 0
    %s29 = scalar_lea.sflag [#allocation8], 1
    %30 = vsyncpa %s29, 0
    %31 = vsyncpa [#allocation11], 0
    %s32 = scalar_lea.sflag [#allocation11], 1
    %33 = vsyncpa %s32, 0
    %34 = vsyncpa [#allocation14], 0
    %35 = vsyncpa [#allocation17], 0
    %36 = vsyncpa [#allocation20], 0
    %37 = vsyncpa [#allocation6], 0
    %s38 = scalar_lea.sflag [#allocation6], 1
    %39 = vsyncpa %s38, 0
    loop: start=0, step=1, limit=6
    $region2: #{tpu_custom_call.1} parent=1 // loop_pre_header
      _
    $region3: #{tpu_custom_call.1} parent=1 // loop_header
      %s41 = sphi 0, %s45
      %p42 = scmp.ge.s32.totalorder %s41, 6
      %s48 = sphi 0, %s60
      %s49 = sphi 0, %s56
      %s50 = sphi 0, %s48
      %s51 = sphi 0, %s49
      %s52 = sphi 0, %s50
      %s53 = sphi 0, %s51
      %s65 = sphi 0, %s67
      %s68 = sphi 0, %s65
      %s69 = sphi 0, %s68
      %s85 = sphi 0, %s69
      %s91 = sphi 0, %s93
      %s94 = sphi 0, %s91
      %s95 = sphi 0, %s94
      %s111 = sphi 0, %s95
      %s117 = sphi 0, %s119
      %s120 = sphi 0, %s117
      %s121 = sphi 0, %s120
      %s137 = sphi 0, %s121
      %s145 = sphi 0, %s147
      %s148 = sphi 0, %s145
      %s149 = sphi 0, %s148
      %s165 = sphi 0, %s149
      %s169 = sphi 0, %s169
      %s171 = sphi 0, %s169
      %s172 = sphi 0, %s171
      %s186 = sphi 0, %s172
      %s190 = sphi 0, %s190
      %s192 = sphi 0, %s190
      %s193 = sphi 0, %s192
      %s207 = sphi 0, %s193
      %s211 = sphi 0, %s211
      %s213 = sphi 0, %s211
      %s214 = sphi 0, %s213
      %s228 = sphi 0, %s214
      %s232 = sphi 0, %s232
      %s234 = sphi 0, %s232
      %s235 = sphi 0, %s234
      %s249 = sphi 0, %s235
      %s253 = sphi 0, %s253
      %s255 = sphi 0, %s253
      %s256 = sphi 0, %s255
      %s270 = sphi 0, %s256
      %s274 = sphi 0, %s274
      %s276 = sphi 0, %s274
      %s277 = sphi 0, %s276
      %s291 = sphi 0, %s277
      %s295 = sphi 0, %s295
      %s297 = sphi 0, %s295
      %s298 = sphi 0, %s297
      %s312 = sphi 0, %s298
      %s316 = sphi 0, %s316
      %s318 = sphi 0, %s316
      %s319 = sphi 0, %s318
      %s333 = sphi 0, %s319
      %s337 = sphi 0, %s337
      %s339 = sphi 0, %s337
      %s340 = sphi 0, %s339
      %s354 = sphi 0, %s340
      %s358 = sphi 0, %s358
      %s360 = sphi 0, %s358
      %s361 = sphi 0, %s360
      %s375 = sphi 0, %s361
      %s379 = sphi 0, %s379
      %s381 = sphi 0, %s379
      %s382 = sphi 0, %s381
      %s396 = sphi 0, %s382
      %s400 = sphi 0, %s400
      %s402 = sphi 0, %s400
      %s403 = sphi 0, %s402
      %s417 = sphi 0, %s403
      %s421 = sphi 0, %s421
      %s423 = sphi 0, %s421
      %s424 = sphi 0, %s423
      %s438 = sphi 0, %s424
      %s442 = sphi 0, %s442
      %s444 = sphi 0, %s442
      %s445 = sphi 0, %s444
      %s459 = sphi 0, %s445
      %s463 = sphi 0, %s463
      %s465 = sphi 0, %s463
      %s466 = sphi 0, %s465
      %s480 = sphi 0, %s466
      %s484 = sphi 0, %s484
      %s486 = sphi 0, %s484
      %s487 = sphi 0, %s486
      %s501 = sphi 0, %s487
      %s509 = sphi 0, %s511
      %s512 = sphi 0, %s509
      %s513 = sphi 0, %s512
      %s529 = sphi 0, %s513
    $region4: #{tpu_custom_call.1} parent=1 // loop_header_branch
      %44 = sbr.rel (%p42) target = $region8
    $region5: #{tpu_custom_call.1} parent=1 // loop_body
      %s46 = ssub.s32 %s41, 1
      %s47 = ssub.s32 %s41, 2
      %s54 = sadd.s32 1, %s49
      %p55 = scmp.ge.s32.totalorder %s54, 2
      %s56 = scalar_select %p55, 0, %s54
      %s57 = sadd.s32 1, %s48
      %s58 = scalar_select %p55, %s57, %s48
      %p59 = scmp.ge.s32.totalorder %s58, 2
      %s60 = scalar_select %p59, 0, %s58
      %s61 = ssub.s32 %s48, %s60
      %s62 = ssub.s32 %s49, %s56
      %s63 = sor.u32 %s61, %s62
      %p64 = scmp.eq.s32.totalorder %s63, 0
      %s66 = sadd.s32 %s65, 1
      %s67 = scalar_select %p64, %s65, %s66
      %p70 = pneg %p64
      %p71 = scmp.eq.s32.totalorder %s41, 3
      %p72 = por %p70, %p71
      %p73 = scmp.ne.s32.totalorder %s65, %s68
      %p74 = scmp.eq.s32.totalorder %s41, 0
      %p75 = por %p73, %p74
      %p76 = scmp.ne.s32.totalorder %s65, %s68
      %p77 = scmp.eq.s32.totalorder %s46, 3
      %p78 = por %p76, %p77
      %p79 = scmp.ne.s32.totalorder %s68, %s69
      %p80 = scmp.eq.s32.totalorder %s46, 0
      %p81 = por %p79, %p80
      %p82 = scmp.ne.s32.totalorder %s68, %s69
      %p83 = scmp.eq.s32.totalorder %s47, 3
      %p84 = por %p82, %p83
      %p86 = scmp.ne.s32.totalorder %s69, %s85
      %p87 = scmp.eq.s32.totalorder %s47, 0
      %p88 = por %p86, %p87
      %s89 = ssub.s32 %s48, %s60
      %p90 = scmp.eq.s32.totalorder %s89, 0
      %s92 = sadd.s32 %s91, 1
      %s93 = scalar_select %p90, %s91, %s92
      %p96 = pneg %p90
      %p97 = scmp.eq.s32.totalorder %s41, 3
      %p98 = por %p96, %p97
      %p99 = scmp.ne.s32.totalorder %s91, %s94
      %p100 = scmp.eq.s32.totalorder %s41, 0
      %p101 = por %p99, %p100
      %p102 = scmp.ne.s32.totalorder %s91, %s94
      %p103 = scmp.eq.s32.totalorder %s46, 3
      %p104 = por %p102, %p103
      %p105 = scmp.ne.s32.totalorder %s94, %s95
      %p106 = scmp.eq.s32.totalorder %s46, 0
      %p107 = por %p105, %p106
      %p108 = scmp.ne.s32.totalorder %s94, %s95
      %p109 = scmp.eq.s32.totalorder %s47, 3
      %p110 = por %p108, %p109
      %p112 = scmp.ne.s32.totalorder %s95, %s111
      %p113 = scmp.eq.s32.totalorder %s47, 0
      %p114 = por %p112, %p113
      %s115 = ssub.s32 %s48, %s60
      %p116 = scmp.eq.s32.totalorder %s115, 0
      %s118 = sadd.s32 %s117, 1
      %s119 = scalar_select %p116, %s117, %s118
      %p122 = pneg %p116
      %p123 = scmp.eq.s32.totalorder %s41, 3
      %p124 = por %p122, %p123
      %p125 = scmp.ne.s32.totalorder %s117, %s120
      %p126 = scmp.eq.s32.totalorder %s41, 0
      %p127 = por %p125, %p126
      %p128 = scmp.ne.s32.totalorder %s117, %s120
      %p129 = scmp.eq.s32.totalorder %s46, 3
      %p130 = por %p128, %p129
      %p131 = scmp.ne.s32.totalorder %s120, %s121
      %p132 = scmp.eq.s32.totalorder %s46, 0
      %p133 = por %p131, %p132
      %p134 = scmp.ne.s32.totalorder %s120, %s121
      %p135 = scmp.eq.s32.totalorder %s47, 3
      %p136 = por %p134, %p135
      %p138 = scmp.ne.s32.totalorder %s121, %s137
      %p139 = scmp.eq.s32.totalorder %s47, 0
      %p140 = por %p138, %p139
      %s141 = ssub.s32 %s48, %s60
      %s142 = ssub.s32 %s49, %s56
      %s143 = sor.u32 %s141, %s142
      %p144 = scmp.eq.s32.totalorder %s143, 0
      %s146 = sadd.s32 %s145, 1
      %s147 = scalar_select %p144, %s145, %s146
      %p150 = pneg %p144
      %p151 = scmp.eq.s32.totalorder %s41, 3
      %p152 = por %p150, %p151
      %p153 = scmp.ne.s32.totalorder %s145, %s148
      %p154 = scmp.eq.s32.totalorder %s41, 0
      %p155 = por %p153, %p154
      %p156 = scmp.ne.s32.totalorder %s145, %s148
      %p157 = scmp.eq.s32.totalorder %s46, 3
      %p158 = por %p156, %p157
      %p159 = scmp.ne.s32.totalorder %s148, %s149
      %p160 = scmp.eq.s32.totalorder %s46, 0
      %p161 = por %p159, %p160
      %p162 = scmp.ne.s32.totalorder %s148, %s149
      %p163 = scmp.eq.s32.totalorder %s47, 3
      %p164 = por %p162, %p163
      %p166 = scmp.ne.s32.totalorder %s149, %s165
      %p167 = scmp.eq.s32.totalorder %s47, 0
      %p168 = por %p166, %p167
      %s170 = sadd.s32 %s169, 1
      %p173 = scmp.eq.s32.totalorder %s41, 3
      %p174 = scmp.ne.s32.totalorder %s169, %s171
      %p175 = scmp.eq.s32.totalorder %s41, 0
      %p176 = por %p174, %p175
      %p177 = scmp.ne.s32.totalorder %s169, %s171
      %p178 = scmp.eq.s32.totalorder %s46, 3
      %p179 = por %p177, %p178
      %p180 = scmp.ne.s32.totalorder %s171, %s172
      %p181 = scmp.eq.s32.totalorder %s46, 0
      %p182 = por %p180, %p181
      %p183 = scmp.ne.s32.totalorder %s171, %s172
      %p184 = scmp.eq.s32.totalorder %s47, 3
      %p185 = por %p183, %p184
      %p187 = scmp.ne.s32.totalorder %s172, %s186
      %p188 = scmp.eq.s32.totalorder %s47, 0
      %p189 = por %p187, %p188
      %s191 = sadd.s32 %s190, 1
      %p194 = scmp.eq.s32.totalorder %s41, 3
      %p195 = scmp.ne.s32.totalorder %s190, %s192
      %p196 = scmp.eq.s32.totalorder %s41, 0
      %p197 = por %p195, %p196
      %p198 = scmp.ne.s32.totalorder %s190, %s192
      %p199 = scmp.eq.s32.totalorder %s46, 3
      %p200 = por %p198, %p199
      %p201 = scmp.ne.s32.totalorder %s192, %s193
      %p202 = scmp.eq.s32.totalorder %s46, 0
      %p203 = por %p201, %p202
      %p204 = scmp.ne.s32.totalorder %s192, %s193
      %p205 = scmp.eq.s32.totalorder %s47, 3
      %p206 = por %p204, %p205
      %p208 = scmp.ne.s32.totalorder %s193, %s207
      %p209 = scmp.eq.s32.totalorder %s47, 0
      %p210 = por %p208, %p209
      %s212 = sadd.s32 %s211, 1
      %p215 = scmp.eq.s32.totalorder %s41, 3
      %p216 = scmp.ne.s32.totalorder %s211, %s213
      %p217 = scmp.eq.s32.totalorder %s41, 0
      %p218 = por %p216, %p217
      %p219 = scmp.ne.s32.totalorder %s211, %s213
      %p220 = scmp.eq.s32.totalorder %s46, 3
      %p221 = por %p219, %p220
      %p222 = scmp.ne.s32.totalorder %s213, %s214
      %p223 = scmp.eq.s32.totalorder %s46, 0
      %p224 = por %p222, %p223
      %p225 = scmp.ne.s32.totalorder %s213, %s214
      %p226 = scmp.eq.s32.totalorder %s47, 3
      %p227 = por %p225, %p226
      %p229 = scmp.ne.s32.totalorder %s214, %s228
      %p230 = scmp.eq.s32.totalorder %s47, 0
      %p231 = por %p229, %p230
      %s233 = sadd.s32 %s232, 1
      %p236 = scmp.eq.s32.totalorder %s41, 3
      %p237 = scmp.ne.s32.totalorder %s232, %s234
      %p238 = scmp.eq.s32.totalorder %s41, 0
      %p239 = por %p237, %p238
      %p240 = scmp.ne.s32.totalorder %s232, %s234
      %p241 = scmp.eq.s32.totalorder %s46, 3
      %p242 = por %p240, %p241
      %p243 = scmp.ne.s32.totalorder %s234, %s235
      %p244 = scmp.eq.s32.totalorder %s46, 0
      %p245 = por %p243, %p244
      %p246 = scmp.ne.s32.totalorder %s234, %s235
      %p247 = scmp.eq.s32.totalorder %s47, 3
      %p248 = por %p246, %p247
      %p250 = scmp.ne.s32.totalorder %s235, %s249
      %p251 = scmp.eq.s32.totalorder %s47, 0
      %p252 = por %p250, %p251
      %s254 = sadd.s32 %s253, 1
      %p257 = scmp.eq.s32.totalorder %s41, 3
      %p258 = scmp.ne.s32.totalorder %s253, %s255
      %p259 = scmp.eq.s32.totalorder %s41, 0
      %p260 = por %p258, %p259
      %p261 = scmp.ne.s32.totalorder %s253, %s255
      %p262 = scmp.eq.s32.totalorder %s46, 3
      %p263 = por %p261, %p262
      %p264 = scmp.ne.s32.totalorder %s255, %s256
      %p265 = scmp.eq.s32.totalorder %s46, 0
      %p266 = por %p264, %p265
      %p267 = scmp.ne.s32.totalorder %s255, %s256
      %p268 = scmp.eq.s32.totalorder %s47, 3
      %p269 = por %p267, %p268
      %p271 = scmp.ne.s32.totalorder %s256, %s270
      %p272 = scmp.eq.s32.totalorder %s47, 0
      %p273 = por %p271, %p272
      %s275 = sadd.s32 %s274, 1
      %p278 = scmp.eq.s32.totalorder %s41, 3
      %p279 = scmp.ne.s32.totalorder %s274, %s276
      %p280 = scmp.eq.s32.totalorder %s41, 0
      %p281 = por %p279, %p280
      %p282 = scmp.ne.s32.totalorder %s274, %s276
      %p283 = scmp.eq.s32.totalorder %s46, 3
      %p284 = por %p282, %p283
      %p285 = scmp.ne.s32.totalorder %s276, %s277
      %p286 = scmp.eq.s32.totalorder %s46, 0
      %p287 = por %p285, %p286
      %p288 = scmp.ne.s32.totalorder %s276, %s277
      %p289 = scmp.eq.s32.totalorder %s47, 3
      %p290 = por %p288, %p289
      %p292 = scmp.ne.s32.totalorder %s277, %s291
      %p293 = scmp.eq.s32.totalorder %s47, 0
      %p294 = por %p292, %p293
      %s296 = sadd.s32 %s295, 1
      %p299 = scmp.eq.s32.totalorder %s41, 3
      %p300 = scmp.ne.s32.totalorder %s295, %s297
      %p301 = scmp.eq.s32.totalorder %s41, 0
      %p302 = por %p300, %p301
      %p303 = scmp.ne.s32.totalorder %s295, %s297
      %p304 = scmp.eq.s32.totalorder %s46, 3
      %p305 = por %p303, %p304
      %p306 = scmp.ne.s32.totalorder %s297, %s298
      %p307 = scmp.eq.s32.totalorder %s46, 0
      %p308 = por %p306, %p307
      %p309 = scmp.ne.s32.totalorder %s297, %s298
      %p310 = scmp.eq.s32.totalorder %s47, 3
      %p311 = por %p309, %p310
      %p313 = scmp.ne.s32.totalorder %s298, %s312
      %p314 = scmp.eq.s32.totalorder %s47, 0
      %p315 = por %p313, %p314
      %s317 = sadd.s32 %s316, 1
      %p320 = scmp.eq.s32.totalorder %s41, 3
      %p321 = scmp.ne.s32.totalorder %s316, %s318
      %p322 = scmp.eq.s32.totalorder %s41, 0
      %p323 = por %p321, %p322
      %p324 = scmp.ne.s32.totalorder %s316, %s318
      %p325 = scmp.eq.s32.totalorder %s46, 3
      %p326 = por %p324, %p325
      %p327 = scmp.ne.s32.totalorder %s318, %s319
      %p328 = scmp.eq.s32.totalorder %s46, 0
      %p329 = por %p327, %p328
      %p330 = scmp.ne.s32.totalorder %s318, %s319
      %p331 = scmp.eq.s32.totalorder %s47, 3
      %p332 = por %p330, %p331
      %p334 = scmp.ne.s32.totalorder %s319, %s333
      %p335 = scmp.eq.s32.totalorder %s47, 0
      %p336 = por %p334, %p335
      %s338 = sadd.s32 %s337, 1
      %p341 = scmp.eq.s32.totalorder %s41, 3
      %p342 = scmp.ne.s32.totalorder %s337, %s339
      %p343 = scmp.eq.s32.totalorder %s41, 0
      %p344 = por %p342, %p343
      %p345 = scmp.ne.s32.totalorder %s337, %s339
      %p346 = scmp.eq.s32.totalorder %s46, 3
      %p347 = por %p345, %p346
      %p348 = scmp.ne.s32.totalorder %s339, %s340
      %p349 = scmp.eq.s32.totalorder %s46, 0
      %p350 = por %p348, %p349
      %p351 = scmp.ne.s32.totalorder %s339, %s340
      %p352 = scmp.eq.s32.totalorder %s47, 3
      %p353 = por %p351, %p352
      %p355 = scmp.ne.s32.totalorder %s340, %s354
      %p356 = scmp.eq.s32.totalorder %s47, 0
      %p357 = por %p355, %p356
      %s359 = sadd.s32 %s358, 1
      %p362 = scmp.eq.s32.totalorder %s41, 3
      %p363 = scmp.ne.s32.totalorder %s358, %s360
      %p364 = scmp.eq.s32.totalorder %s41, 0
      %p365 = por %p363, %p364
      %p366 = scmp.ne.s32.totalorder %s358, %s360
      %p367 = scmp.eq.s32.totalorder %s46, 3
      %p368 = por %p366, %p367
      %p369 = scmp.ne.s32.totalorder %s360, %s361
      %p370 = scmp.eq.s32.totalorder %s46, 0
      %p371 = por %p369, %p370
      %p372 = scmp.ne.s32.totalorder %s360, %s361
      %p373 = scmp.eq.s32.totalorder %s47, 3
      %p374 = por %p372, %p373
      %p376 = scmp.ne.s32.totalorder %s361, %s375
      %p377 = scmp.eq.s32.totalorder %s47, 0
      %p378 = por %p376, %p377
      %s380 = sadd.s32 %s379, 1
      %p383 = scmp.eq.s32.totalorder %s41, 3
      %p384 = scmp.ne.s32.totalorder %s379, %s381
      %p385 = scmp.eq.s32.totalorder %s41, 0
      %p386 = por %p384, %p385
      %p387 = scmp.ne.s32.totalorder %s379, %s381
      %p388 = scmp.eq.s32.totalorder %s46, 3
      %p389 = por %p387, %p388
      %p390 = scmp.ne.s32.totalorder %s381, %s382
      %p391 = scmp.eq.s32.totalorder %s46, 0
      %p392 = por %p390, %p391
      %p393 = scmp.ne.s32.totalorder %s381, %s382
      %p394 = scmp.eq.s32.totalorder %s47, 3
      %p395 = por %p393, %p394
      %p397 = scmp.ne.s32.totalorder %s382, %s396
      %p398 = scmp.eq.s32.totalorder %s47, 0
      %p399 = por %p397, %p398
      %s401 = sadd.s32 %s400, 1
      %p404 = scmp.eq.s32.totalorder %s41, 3
      %p405 = scmp.ne.s32.totalorder %s400, %s402
      %p406 = scmp.eq.s32.totalorder %s41, 0
      %p407 = por %p405, %p406
      %p408 = scmp.ne.s32.totalorder %s400, %s402
      %p409 = scmp.eq.s32.totalorder %s46, 3
      %p410 = por %p408, %p409
      %p411 = scmp.ne.s32.totalorder %s402, %s403
      %p412 = scmp.eq.s32.totalorder %s46, 0
      %p413 = por %p411, %p412
      %p414 = scmp.ne.s32.totalorder %s402, %s403
      %p415 = scmp.eq.s32.totalorder %s47, 3
      %p416 = por %p414, %p415
      %p418 = scmp.ne.s32.totalorder %s403, %s417
      %p419 = scmp.eq.s32.totalorder %s47, 0
      %p420 = por %p418, %p419
      %s422 = sadd.s32 %s421, 1
      %p425 = scmp.eq.s32.totalorder %s41, 3
      %p426 = scmp.ne.s32.totalorder %s421, %s423
      %p427 = scmp.eq.s32.totalorder %s41, 0
      %p428 = por %p426, %p427
      %p429 = scmp.ne.s32.totalorder %s421, %s423
      %p430 = scmp.eq.s32.totalorder %s46, 3
      %p431 = por %p429, %p430
      %p432 = scmp.ne.s32.totalorder %s423, %s424
      %p433 = scmp.eq.s32.totalorder %s46, 0
      %p434 = por %p432, %p433
      %p435 = scmp.ne.s32.totalorder %s423, %s424
      %p436 = scmp.eq.s32.totalorder %s47, 3
      %p437 = por %p435, %p436
      %p439 = scmp.ne.s32.totalorder %s424, %s438
      %p440 = scmp.eq.s32.totalorder %s47, 0
      %p441 = por %p439, %p440
      %s443 = sadd.s32 %s442, 1
      %p446 = scmp.eq.s32.totalorder %s41, 3
      %p447 = scmp.ne.s32.totalorder %s442, %s444
      %p448 = scmp.eq.s32.totalorder %s41, 0
      %p449 = por %p447, %p448
      %p450 = scmp.ne.s32.totalorder %s442, %s444
      %p451 = scmp.eq.s32.totalorder %s46, 3
      %p452 = por %p450, %p451
      %p453 = scmp.ne.s32.totalorder %s444, %s445
      %p454 = scmp.eq.s32.totalorder %s46, 0
      %p455 = por %p453, %p454
      %p456 = scmp.ne.s32.totalorder %s444, %s445
      %p457 = scmp.eq.s32.totalorder %s47, 3
      %p458 = por %p456, %p457
      %p460 = scmp.ne.s32.totalorder %s445, %s459
      %p461 = scmp.eq.s32.totalorder %s47, 0
      %p462 = por %p460, %p461
      %s464 = sadd.s32 %s463, 1
      %p467 = scmp.eq.s32.totalorder %s41, 3
      %p468 = scmp.ne.s32.totalorder %s463, %s465
      %p469 = scmp.eq.s32.totalorder %s41, 0
      %p470 = por %p468, %p469
      %p471 = scmp.ne.s32.totalorder %s463, %s465
      %p472 = scmp.eq.s32.totalorder %s46, 3
      %p473 = por %p471, %p472
      %p474 = scmp.ne.s32.totalorder %s465, %s466
      %p475 = scmp.eq.s32.totalorder %s46, 0
      %p476 = por %p474, %p475
      %p477 = scmp.ne.s32.totalorder %s465, %s466
      %p478 = scmp.eq.s32.totalorder %s47, 3
      %p479 = por %p477, %p478
      %p481 = scmp.ne.s32.totalorder %s466, %s480
      %p482 = scmp.eq.s32.totalorder %s47, 0
      %p483 = por %p481, %p482
      %s485 = sadd.s32 %s484, 1
      %p488 = scmp.eq.s32.totalorder %s41, 3
      %p489 = scmp.ne.s32.totalorder %s484, %s486
      %p490 = scmp.eq.s32.totalorder %s41, 0
      %p491 = por %p489, %p490
      %p492 = scmp.ne.s32.totalorder %s484, %s486
      %p493 = scmp.eq.s32.totalorder %s46, 3
      %p494 = por %p492, %p493
      %p495 = scmp.ne.s32.totalorder %s486, %s487
      %p496 = scmp.eq.s32.totalorder %s46, 0
      %p497 = por %p495, %p496
      %p498 = scmp.ne.s32.totalorder %s486, %s487
      %p499 = scmp.eq.s32.totalorder %s47, 3
      %p500 = por %p498, %p499
      %p502 = scmp.ne.s32.totalorder %s487, %s501
      %p503 = scmp.eq.s32.totalorder %s47, 0
      %p504 = por %p502, %p503
      %s505 = ssub.s32 %s48, %s60
      %s506 = ssub.s32 %s49, %s56
      %s507 = sor.u32 %s505, %s506
      %p508 = scmp.eq.s32.totalorder %s507, 0
      %s510 = sadd.s32 %s509, 1
      %s511 = scalar_select %p508, %s509, %s510
      %p514 = pneg %p508
      %p515 = scmp.eq.s32.totalorder %s41, 3
      %p516 = por %p514, %p515
      %p517 = scmp.ne.s32.totalorder %s509, %s512
      %p518 = scmp.eq.s32.totalorder %s41, 0
      %p519 = por %p517, %p518
      %p520 = scmp.ne.s32.totalorder %s509, %s512
      %p521 = scmp.eq.s32.totalorder %s46, 3
      %p522 = por %p520, %p521
      %p523 = scmp.ne.s32.totalorder %s512, %s513
      %p524 = scmp.eq.s32.totalorder %s46, 0
      %p525 = por %p523, %p524
      %p526 = scmp.ne.s32.totalorder %s512, %s513
      %p527 = scmp.eq.s32.totalorder %s47, 3
      %p528 = por %p526, %p527
      %p530 = scmp.ne.s32.totalorder %s513, %s529
      %p531 = scmp.eq.s32.totalorder %s47, 0
      %p532 = por %p530, %p531
      %p533 = scmp.le.s32.totalorder 1, %s41
      %p534 = scmp.lt.s32.totalorder %s41, 5
      %p535 = pnand %p533, %p534
      %p536 = pneg %p535
      // Predicated region
      $region9: #{tpu_custom_call.1} parent=5 // pred_check
        _
      $region10: #{tpu_custom_call.1} parent=5 // pred_check_branch
        %538 = sbr.rel (%p535) target = $region12
      $region11: #{tpu_custom_call.1} parent=5 // pred_region
        %s539 = ssub.s32 %s41, 1
        // Predicated region
        $region13: #{tpu_custom_call.1} parent=11 // pred_check
          %p540 = pneg %p182
        $region14: #{tpu_custom_call.1} parent=11 // pred_check_branch
          %542 = sbr.rel (%p540) target = $region16
        $region15: #{tpu_custom_call.1} parent=11 // pred_region
          %s544 = ssub.s32 2048, 2048
          %545 = vsyncadd [#allocation11], %s544
          %s546 = sshll.u32 [#allocation12], 4
          %s547 = int_to_ptr.vmem [resolvable:$true] %s546
          %552 = dma.hbm_to_vmem [thread:$0]  %s4, 2048, %s547, [#allocation11], 128, 128, 8
        $region16: #{tpu_custom_call.1} parent=11 // pred_fallthru
          _
        // Predicated region
        $region17: #{tpu_custom_call.1} parent=11 // pred_check
          %p553 = pneg %p203
        $region18: #{tpu_custom_call.1} parent=11 // pred_check_branch
          %555 = sbr.rel (%p553) target = $region20
        $region19: #{tpu_custom_call.1} parent=11 // pred_region
          _
        $region20: #{tpu_custom_call.1} parent=11 // pred_fallthru
          _
        // Predicated region
        $region21: #{tpu_custom_call.1} parent=11 // pred_check
          %p556 = pneg %p224
        $region22: #{tpu_custom_call.1} parent=11 // pred_check_branch
          %558 = sbr.rel (%p556) target = $region24
        $region23: #{tpu_custom_call.1} parent=11 // pred_region
          %s560 = ssub.s32 2048, 2048
          %561 = vsyncadd [#allocation14], %s560
          %s562 = sshll.u32 [#allocation13], 4
          %s563 = int_to_ptr.vmem [resolvable:$true] %s562
          %568 = dma.hbm_to_vmem [thread:$0]  %s6, 2048, %s563, [#allocation14], 128, 128, 8
        $region24: #{tpu_custom_call.1} parent=11 // pred_fallthru
          _
        // Predicated region
        $region25: #{tpu_custom_call.1} parent=11 // pred_check
          %p569 = pneg %p245
        $region26: #{tpu_custom_call.1} parent=11 // pred_check_branch
          %571 = sbr.rel (%p569) target = $region28
        $region27: #{tpu_custom_call.1} parent=11 // pred_region
          _
        $region28: #{tpu_custom_call.1} parent=11 // pred_fallthru
          _
        // Predicated region
        $region29: #{tpu_custom_call.1} parent=11 // pred_check
          %p572 = pneg %p266
        $region30: #{tpu_custom_call.1} parent=11 // pred_check_branch
          %574 = sbr.rel (%p572) target = $region32
        $region31: #{tpu_custom_call.1} parent=11 // pred_region
          %s576 = ssub.s32 2048, 2048
          %577 = vsyncadd [#allocation14], %s576
          %s578 = sshll.u32 [#allocation15], 4
          %s579 = int_to_ptr.vmem [resolvable:$true] %s578
          %584 = dma.hbm_to_vmem [thread:$0]  %s8, 2048, %s579, [#allocation14], 128, 128, 8
        $region32: #{tpu_custom_call.1} parent=11 // pred_fallthru
          _
        // Predicated region
        $region33: #{tpu_custom_call.1} parent=11 // pred_check
          %p585 = pneg %p287
        $region34: #{tpu_custom_call.1} parent=11 // pred_check_branch
          %587 = sbr.rel (%p585) target = $region36
        $region35: #{tpu_custom_call.1} parent=11 // pred_region
          _
        $region36: #{tpu_custom_call.1} parent=11 // pred_fallthru
          _
        // Predicated region
        $region37: #{tpu_custom_call.1} parent=11 // pred_check
          %p588 = pneg %p308
        $region38: #{tpu_custom_call.1} parent=11 // pred_check_branch
          %590 = sbr.rel (%p588) target = $region40
        $region39: #{tpu_custom_call.1} parent=11 // pred_region
          %s592 = ssub.s32 2048, 2048
          %593 = vsyncadd [#allocation17], %s592
          %s594 = sshll.u32 [#allocation16], 4
          %s595 = int_to_ptr.vmem [resolvable:$true] %s594
          %600 = dma.hbm_to_vmem [thread:$0]  %s10, 2048, %s595, [#allocation17], 128, 128, 8
        $region40: #{tpu_custom_call.1} parent=11 // pred_fallthru
          _
        // Predicated region
        $region41: #{tpu_custom_call.1} parent=11 // pred_check
          %p601 = pneg %p329
        $region42: #{tpu_custom_call.1} parent=11 // pred_check_branch
          %603 = sbr.rel (%p601) target = $region44
        $region43: #{tpu_custom_call.1} parent=11 // pred_region
          _
        $region44: #{tpu_custom_call.1} parent=11 // pred_fallthru
          _
        // Predicated region
        $region45: #{tpu_custom_call.1} parent=11 // pred_check
          %p604 = pneg %p350
        $region46: #{tpu_custom_call.1} parent=11 // pred_check_branch
          %606 = sbr.rel (%p604) target = $region48
        $region47: #{tpu_custom_call.1} parent=11 // pred_region
          _
        $region48: #{tpu_custom_call.1} parent=11 // pred_fallthru
          _
        // Predicated region
        $region49: #{tpu_custom_call.1} parent=11 // pred_check
          %p607 = pneg %p371
        $region50: #{tpu_custom_call.1} parent=11 // pred_check_branch
          %609 = sbr.rel (%p607) target = $region52
        $region51: #{tpu_custom_call.1} parent=11 // pred_region
          _
        $region52: #{tpu_custom_call.1} parent=11 // pred_fallthru
          _
        // Predicated region
        $region53: #{tpu_custom_call.1} parent=11 // pred_check
          %p610 = pneg %p392
        $region54: #{tpu_custom_call.1} parent=11 // pred_check_branch
          %612 = sbr.rel (%p610) target = $region56
        $region55: #{tpu_custom_call.1} parent=11 // pred_region
          %s614 = ssub.s32 4096, 4096
          %615 = vsyncadd [#allocation17], %s614
          %s616 = sshll.u32 [#allocation18], 4
          %s617 = int_to_ptr.vmem [resolvable:$true] %s616
          %622 = dma.hbm_to_vmem [thread:$0]  %s14, 4096, %s617, [#allocation17], 256, 256, 16
        $region56: #{tpu_custom_call.1} parent=11 // pred_fallthru
          _
        // Predicated region
        $region57: #{tpu_custom_call.1} parent=11 // pred_check
          %p623 = pneg %p413
        $region58: #{tpu_custom_call.1} parent=11 // pred_check_branch
          %625 = sbr.rel (%p623) target = $region60
        $region59: #{tpu_custom_call.1} parent=11 // pred_region
          _
        $region60: #{tpu_custom_call.1} parent=11 // pred_fallthru
          _
        // Predicated region
        $region61: #{tpu_custom_call.1} parent=11 // pred_check
          %p626 = pneg %p434
        $region62: #{tpu_custom_call.1} parent=11 // pred_check_branch
          %628 = sbr.rel (%p626) target = $region64
        $region63: #{tpu_custom_call.1} parent=11 // pred_region
          %s630 = ssub.s32 4096, 4096
          %631 = vsyncadd [#allocation20], %s630
          %s632 = sshll.u32 [#allocation19], 4
          %s633 = int_to_ptr.vmem [resolvable:$true] %s632
          %638 = dma.hbm_to_vmem [thread:$0]  %s16, 4096, %s633, [#allocation20], 128, 128, 8
        $region64: #{tpu_custom_call.1} parent=11 // pred_fallthru
          _
        // Predicated region
        $region65: #{tpu_custom_call.1} parent=11 // pred_check
          %p639 = pneg %p455
        $region66: #{tpu_custom_call.1} parent=11 // pred_check_branch
          %641 = sbr.rel (%p639) target = $region68
        $region67: #{tpu_custom_call.1} parent=11 // pred_region
          _
        $region68: #{tpu_custom_call.1} parent=11 // pred_fallthru
          _
        // Predicated region
        $region69: #{tpu_custom_call.1} parent=11 // pred_check
          %p642 = pneg %p476
        $region70: #{tpu_custom_call.1} parent=11 // pred_check_branch
          %644 = sbr.rel (%p642) target = $region72
        $region71: #{tpu_custom_call.1} parent=11 // pred_region
          _
        $region72: #{tpu_custom_call.1} parent=11 // pred_fallthru
          _
        // Predicated region
        $region73: #{tpu_custom_call.1} parent=11 // pred_check
          %p645 = pneg %p497
        $region74: #{tpu_custom_call.1} parent=11 // pred_check_branch
          %647 = sbr.rel (%p645) target = $region76
        $region75: #{tpu_custom_call.1} parent=11 // pred_region
          _
        $region76: #{tpu_custom_call.1} parent=11 // pred_fallthru
          _
      $region12: #{tpu_custom_call.1} parent=5 // pred_fallthru
        _
      %p648 = scmp.lt.s32.totalorder %s41, 4
      // Predicated region
      $region77: #{tpu_custom_call.1} parent=5 // pred_check
        %p649 = pneg %p648
      $region78: #{tpu_custom_call.1} parent=5 // pred_check_branch
        %651 = sbr.rel (%p649) target = $region80
      $region79: #{tpu_custom_call.1} parent=5 // pred_region
        // Predicated region
        $region81: #{tpu_custom_call.1} parent=79 // pred_check
          %p652 = pneg %p75
        $region82: #{tpu_custom_call.1} parent=79 // pred_check_branch
          %654 = sbr.rel (%p652) target = $region84
        $region83: #{tpu_custom_call.1} parent=79 // pred_region
          %s655 = sand.u32 %s65, 1
          %s656 = scalar_lea.sflag [#allocation5], %s655
          %s657 = sand.u32 %s65, 1
          %s658 = smul.addr %s657, 64
          %s659 = scalar_lea.vmem [#allocation4], %s658
          %s660 = smul.u32 8, %s49
          %s662 = ssub.s32 1024, 1024
          %663 = vsyncadd %s656, %s662
          %s664 = smul.addr %s48, 16
          %s665 = sadd.s32 %s660, %s664
          %s666 = smul.addr %s665, 128
          %s667 = scalar_lea.hbm %s0, %s666
          %s668 = sshll.u32 %s659, 4
          %s669 = int_to_ptr.vmem [resolvable:$true] %s668
          %674 = dma.hbm_to_vmem [thread:$0]  %s667, 1024, %s669, %s656, 128, 128, 8
        $region84: #{tpu_custom_call.1} parent=79 // pred_fallthru
          _
        // Predicated region
        $region85: #{tpu_custom_call.1} parent=79 // pred_check
          %p675 = pneg %p101
        $region86: #{tpu_custom_call.1} parent=79 // pred_check_branch
          %677 = sbr.rel (%p675) target = $region88
        $region87: #{tpu_custom_call.1} parent=79 // pred_region
          %s678 = sand.u32 %s41, 1
          %s679 = scalar_lea.sflag [#allocation8], %s678
          %s680 = sand.u32 %s91, 1
          %s681 = smul.addr %s680, 128
          %s682 = scalar_lea.vmem [#allocation7], %s681
          %s684 = ssub.s32 2048, 2048
          %685 = vsyncadd %s679, %s684
          %s686 = smul.addr %s48, 16
          %s687 = smul.addr %s686, 128
          %s688 = scalar_lea.hbm %s1, %s687
          %s689 = sshll.u32 %s682, 4
          %s690 = int_to_ptr.vmem [resolvable:$true] %s689
          %695 = dma.hbm_to_vmem [thread:$0]  %s688, 2048, %s690, %s679, 128, 128, 8
        $region88: #{tpu_custom_call.1} parent=79 // pred_fallthru
          _
        // Predicated region
        $region89: #{tpu_custom_call.1} parent=79 // pred_check
          %p696 = pneg %p127
        $region90: #{tpu_custom_call.1} parent=79 // pred_check_branch
          %698 = sbr.rel (%p696) target = $region92
        $region91: #{tpu_custom_call.1} parent=79 // pred_region
          %s699 = sand.u32 %s41, 1
          %s700 = scalar_lea.sflag [#allocation8], %s699
          %s701 = sand.u32 %s117, 1
          %s702 = smul.addr %s701, 128
          %s703 = scalar_lea.vmem [#allocation9], %s702
          %s705 = ssub.s32 2048, 2048
          %706 = vsyncadd %s700, %s705
          %s707 = smul.addr %s48, 16
          %s708 = smul.addr %s707, 128
          %s709 = scalar_lea.hbm %s2, %s708
          %s710 = sshll.u32 %s703, 4
          %s711 = int_to_ptr.vmem [resolvable:$true] %s710
          %716 = dma.hbm_to_vmem [thread:$0]  %s709, 2048, %s711, %s700, 128, 128, 8
        $region92: #{tpu_custom_call.1} parent=79 // pred_fallthru
          _
        // Predicated region
        $region93: #{tpu_custom_call.1} parent=79 // pred_check
          %p717 = pneg %p155
        $region94: #{tpu_custom_call.1} parent=79 // pred_check_branch
          %719 = sbr.rel (%p717) target = $region96
        $region95: #{tpu_custom_call.1} parent=79 // pred_region
          %s720 = sand.u32 %s41, 1
          %s721 = scalar_lea.sflag [#allocation11], %s720
          %s722 = sand.u32 %s145, 1
          %s723 = smul.addr %s722, 32
          %s724 = scalar_lea.vmem [#allocation10], %s723
          %s725 = smul.u32 8, %s49
          %s727 = ssub.s32 512, 512
          %728 = vsyncadd %s721, %s727
          %s729 = smul.addr %s48, 16
          %s730 = sadd.s32 %s725, %s729
          %s731 = smul.addr %s730, 64
          %s732 = scalar_lea.hbm %s3, %s731
          %s733 = sshll.u32 %s724, 4
          %s734 = int_to_ptr.vmem [resolvable:$true] %s733
          %739 = dma.hbm_to_vmem [thread:$0]  %s732, 512, %s734, %s721, 64, 64, 4
        $region96: #{tpu_custom_call.1} parent=79 // pred_fallthru
          _
      $region80: #{tpu_custom_call.1} parent=5 // pred_fallthru
        _
      %p740 = scmp.le.s32.totalorder 1, %s41
      %p741 = scmp.lt.s32.totalorder %s41, 5
      %p742 = pnand %p740, %p741
      %p743 = pneg %p742
      // Predicated region
      $region97: #{tpu_custom_call.1} parent=5 // pred_check
        _
      $region98: #{tpu_custom_call.1} parent=5 // pred_check_branch
        %745 = sbr.rel (%p742) target = $region100
      $region99: #{tpu_custom_call.1} parent=5 // pred_region
        %s746 = ssub.s32 %s41, 1
        %s747 = sand.u32 %s68, 1
        %s748 = scalar_lea.sflag [#allocation5], %s747
        %s749 = sand.u32 %s68, 1
        %s750 = smul.addr %s749, 64
        %s751 = scalar_lea.vmem [#allocation4], %s750
        // Predicated region
        $region101: #{tpu_custom_call.1} parent=99 // pred_check
          %p752 = pneg %p81
        $region102: #{tpu_custom_call.1} parent=99 // pred_check_branch
          %754 = sbr.rel (%p752) target = $region104
        $region103: #{tpu_custom_call.1} parent=99 // pred_region
          %755 = dma.done %s748, 1024
        $region104: #{tpu_custom_call.1} parent=99 // pred_fallthru
          _
        %s756 = sand.u32 %s46, 1
        %s757 = scalar_lea.sflag [#allocation8], %s756
        %s758 = sand.u32 %s94, 1
        %s759 = smul.addr %s758, 128
        %s760 = scalar_lea.vmem [#allocation7], %s759
        // Predicated region
        $region105: #{tpu_custom_call.1} parent=99 // pred_check
          %p761 = pneg %p107
        $region106: #{tpu_custom_call.1} parent=99 // pred_check_branch
          %763 = sbr.rel (%p761) target = $region108
        $region107: #{tpu_custom_call.1} parent=99 // pred_region
          %764 = dma.done %s757, 2048
        $region108: #{tpu_custom_call.1} parent=99 // pred_fallthru
          _
        %s765 = sand.u32 %s46, 1
        %s766 = scalar_lea.sflag [#allocation8], %s765
        %s767 = sand.u32 %s120, 1
        %s768 = smul.addr %s767, 128
        %s769 = scalar_lea.vmem [#allocation9], %s768
        // Predicated region
        $region109: #{tpu_custom_call.1} parent=99 // pred_check
          %p770 = pneg %p133
        $region110: #{tpu_custom_call.1} parent=99 // pred_check_branch
          %772 = sbr.rel (%p770) target = $region112
        $region111: #{tpu_custom_call.1} parent=99 // pred_region
          %773 = dma.done %s766, 2048
        $region112: #{tpu_custom_call.1} parent=99 // pred_fallthru
          _
        %s774 = sand.u32 %s46, 1
        %s775 = scalar_lea.sflag [#allocation11], %s774
        %s776 = sand.u32 %s148, 1
        %s777 = smul.addr %s776, 32
        %s778 = scalar_lea.vmem [#allocation10], %s777
        // Predicated region
        $region113: #{tpu_custom_call.1} parent=99 // pred_check
          %p779 = pneg %p161
        $region114: #{tpu_custom_call.1} parent=99 // pred_check_branch
          %781 = sbr.rel (%p779) target = $region116
        $region115: #{tpu_custom_call.1} parent=99 // pred_region
          %782 = dma.done %s775, 512
        $region116: #{tpu_custom_call.1} parent=99 // pred_fallthru
          _
        // Predicated region
        $region117: #{tpu_custom_call.1} parent=99 // pred_check
          %p783 = pneg %p182
        $region118: #{tpu_custom_call.1} parent=99 // pred_check_branch
          %785 = sbr.rel (%p783) target = $region120
        $region119: #{tpu_custom_call.1} parent=99 // pred_region
          %786 = dma.done [#allocation11], 2048
        $region120: #{tpu_custom_call.1} parent=99 // pred_fallthru
          _
        // Predicated region
        $region121: #{tpu_custom_call.1} parent=99 // pred_check
          %p787 = pneg %p224
        $region122: #{tpu_custom_call.1} parent=99 // pred_check_branch
          %789 = sbr.rel (%p787) target = $region124
        $region123: #{tpu_custom_call.1} parent=99 // pred_region
          %790 = dma.done [#allocation14], 2048
        $region124: #{tpu_custom_call.1} parent=99 // pred_fallthru
          _
        // Predicated region
        $region125: #{tpu_custom_call.1} parent=99 // pred_check
          %p791 = pneg %p266
        $region126: #{tpu_custom_call.1} parent=99 // pred_check_branch
          %793 = sbr.rel (%p791) target = $region128
        $region127: #{tpu_custom_call.1} parent=99 // pred_region
          %794 = dma.done [#allocation14], 2048
        $region128: #{tpu_custom_call.1} parent=99 // pred_fallthru
          _
        // Predicated region
        $region129: #{tpu_custom_call.1} parent=99 // pred_check
          %p795 = pneg %p308
        $region130: #{tpu_custom_call.1} parent=99 // pred_check_branch
          %797 = sbr.rel (%p795) target = $region132
        $region131: #{tpu_custom_call.1} parent=99 // pred_region
          %798 = dma.done [#allocation17], 2048
        $region132: #{tpu_custom_call.1} parent=99 // pred_fallthru
          _
        // Predicated region
        $region133: #{tpu_custom_call.1} parent=99 // pred_check
          %p799 = pneg %p392
        $region134: #{tpu_custom_call.1} parent=99 // pred_check_branch
          %801 = sbr.rel (%p799) target = $region136
        $region135: #{tpu_custom_call.1} parent=99 // pred_region
          %802 = dma.done [#allocation17], 4096
        $region136: #{tpu_custom_call.1} parent=99 // pred_fallthru
          _
        // Predicated region
        $region137: #{tpu_custom_call.1} parent=99 // pred_check
          %p803 = pneg %p434
        $region138: #{tpu_custom_call.1} parent=99 // pred_check_branch
          %805 = sbr.rel (%p803) target = $region140
        $region139: #{tpu_custom_call.1} parent=99 // pred_region
          %806 = dma.done [#allocation20], 4096
        $region140: #{tpu_custom_call.1} parent=99 // pred_fallthru
          _
        %s807 = sand.u32 %s68, 1
        %s808 = scalar_lea.sflag [#allocation5], %s807
        %s809 = sand.u32 %s68, 1
        %s810 = smul.addr %s809, 64
        %s811 = scalar_lea.vmem [#allocation4], %s810
        %p812 = pneg %p81
        %p813 = pneg %p78
        %s814 = sand.u32 %s46, 1
        %s815 = scalar_lea.sflag [#allocation8], %s814
        %s816 = sand.u32 %s94, 1
        %s817 = smul.addr %s816, 128
        %s818 = scalar_lea.vmem [#allocation7], %s817
        %p819 = pneg %p107
        %p820 = pneg %p104
        %s821 = sand.u32 %s46, 1
        %s822 = scalar_lea.sflag [#allocation8], %s821
        %s823 = sand.u32 %s120, 1
        %s824 = smul.addr %s823, 128
        %s825 = scalar_lea.vmem [#allocation9], %s824
        %p826 = pneg %p133
        %p827 = pneg %p130
        %s828 = sand.u32 %s46, 1
        %s829 = scalar_lea.sflag [#allocation11], %s828
        %s830 = sand.u32 %s148, 1
        %s831 = smul.addr %s830, 32
        %s832 = scalar_lea.vmem [#allocation10], %s831
        %p833 = pneg %p161
        %p834 = pneg %p158
        %p835 = pneg %p182
        %p836 = pneg %p179
        %p837 = pneg %p203
        %p838 = pneg %p200
        %p839 = pneg %p224
        %p840 = pneg %p221
        %p841 = pneg %p245
        %p842 = pneg %p242
        %p843 = pneg %p266
        %p844 = pneg %p263
        %p845 = pneg %p287
        %p846 = pneg %p284
        %p847 = pneg %p308
        %p848 = pneg %p305
        %p849 = pneg %p329
        %p850 = pneg %p326
        %p851 = pneg %p350
        %p852 = pneg %p347
        %p853 = pneg %p371
        %p854 = pneg %p368
        %p855 = pneg %p392
        %p856 = pneg %p389
        %p857 = pneg %p413
        %p858 = pneg %p410
        %p859 = pneg %p434
        %p860 = pneg %p431
        %p861 = pneg %p455
        %p862 = pneg %p452
        %p863 = pneg %p476
        %p864 = pneg %p473
        %p865 = pneg %p497
        %p866 = pneg %p494
        %p867 = pneg %p525
        %p868 = pneg %p522
        %s869 = sand.u32 %s512, 1
        %s870 = scalar_lea.sflag [#allocation6], %s869
        %s871 = sand.u32 %s512, 1
        %s872 = smul.addr %s871, 64
        %s873 = scalar_lea.vmem [#allocation21], %s872
        %s874 = smul.u32 8, %s51
        %s875 = smul.u32 8, %s51
        %s876 = smul.u32 8, %s51
        %v877 = vld [vmem:[%s751] sm:$0xff]
        %v878 = vld [vmem:[%s751 + $0x8] sm:$0xff]
        %v879 = vld [vmem:[%s751 + $0x10] sm:$0xff]
        %v880 = vld [vmem:[%s751 + $0x18] sm:$0xff]
        %v881 = vld [vmem:[%s751 + $0x20] sm:$0xff]
        %v882 = vld [vmem:[%s751 + $0x28] sm:$0xff]
        %v883 = vld [vmem:[%s751 + $0x30] sm:$0xff]
        %v884 = vld [vmem:[%s751 + $0x38] sm:$0xff]
        %p885 = scmp.eq.s32.totalorder %s51, 0
        // Predicated region
        $region141: #{tpu_custom_call.1} parent=99 // pred_check
          %p886 = pneg %p885
        $region142: #{tpu_custom_call.1} parent=99 // pred_check_branch
          %888 = sbr.rel (%p886) target = $region144
        $region143: #{tpu_custom_call.1} parent=99 // pred_region
          %v889 = vld [vmem:[%s760] sm:$0xff]
          %v890 = vld [vmem:[%s760 + $0x8] sm:$0xff]
          %v891 = vld [vmem:[%s760 + $0x10] sm:$0xff]
          %v892 = vld [vmem:[%s760 + $0x18] sm:$0xff]
          %v893 = vld [vmem:[%s760 + $0x20] sm:$0xff]
          %v894 = vld [vmem:[%s760 + $0x28] sm:$0xff]
          %v895 = vld [vmem:[%s760 + $0x30] sm:$0xff]
          %v896 = vld [vmem:[%s760 + $0x38] sm:$0xff]
          %v897 = vld [vmem:[%s760 + $0x40] sm:$0xff]
          %v898 = vld [vmem:[%s760 + $0x48] sm:$0xff]
          %v899 = vld [vmem:[%s760 + $0x50] sm:$0xff]
          %v900 = vld [vmem:[%s760 + $0x58] sm:$0xff]
          %v901 = vld [vmem:[%s760 + $0x60] sm:$0xff]
          %v902 = vld [vmem:[%s760 + $0x68] sm:$0xff]
          %v903 = vld [vmem:[%s760 + $0x70] sm:$0xff]
          %v904 = vld [vmem:[%s760 + $0x78] sm:$0xff]
          %v905 = vld [vmem:[%s769] sm:$0xff]
          %v906 = vld [vmem:[%s769 + $0x8] sm:$0xff]
          %v907 = vld [vmem:[%s769 + $0x10] sm:$0xff]
          %v908 = vld [vmem:[%s769 + $0x18] sm:$0xff]
          %v909 = vld [vmem:[%s769 + $0x20] sm:$0xff]
          %v910 = vld [vmem:[%s769 + $0x28] sm:$0xff]
          %v911 = vld [vmem:[%s769 + $0x30] sm:$0xff]
          %v912 = vld [vmem:[%s769 + $0x38] sm:$0xff]
          %v913 = vld [vmem:[%s769 + $0x40] sm:$0xff]
          %v914 = vld [vmem:[%s769 + $0x48] sm:$0xff]
          %v915 = vld [vmem:[%s769 + $0x50] sm:$0xff]
          %v916 = vld [vmem:[%s769 + $0x58] sm:$0xff]
          %v917 = vld [vmem:[%s769 + $0x60] sm:$0xff]
          %v918 = vld [vmem:[%s769 + $0x68] sm:$0xff]
          %v919 = vld [vmem:[%s769 + $0x70] sm:$0xff]
          %v920 = vld [vmem:[%s769 + $0x78] sm:$0xff]
          %v921 = vld [vmem:[#allocation13] sm:$0xff]
          %v922 = vld [vmem:[#allocation13 + $0x8] sm:$0xff]
          %v923 = vld [vmem:[#allocation13 + $0x10] sm:$0xff]
          %v924 = vld [vmem:[#allocation13 + $0x18] sm:$0xff]
          %v925 = vld [vmem:[#allocation13 + $0x20] sm:$0xff]
          %v926 = vld [vmem:[#allocation13 + $0x28] sm:$0xff]
          %v927 = vld [vmem:[#allocation13 + $0x30] sm:$0xff]
          %v928 = vld [vmem:[#allocation13 + $0x38] sm:$0xff]
          %v929 = vld [vmem:[#allocation13 + $0x40] sm:$0xff]
          %v930 = vld [vmem:[#allocation13 + $0x48] sm:$0xff]
          %v931 = vld [vmem:[#allocation13 + $0x50] sm:$0xff]
          %v932 = vld [vmem:[#allocation13 + $0x58] sm:$0xff]
          %v933 = vld [vmem:[#allocation13 + $0x60] sm:$0xff]
          %v934 = vld [vmem:[#allocation13 + $0x68] sm:$0xff]
          %v935 = vld [vmem:[#allocation13 + $0x70] sm:$0xff]
          %v936 = vld [vmem:[#allocation13 + $0x78] sm:$0xff]
          %v937 = vld [vmem:[%s7] sm:$0x1]
          %v939 = vlaneseq
          %v940 = vshrl.u32 %v939, 7
          %v941 = vsub.s32 0, %v940
          %v942 = vrot.slane %v937, %v941
          %944 = vmatprep.subr.mxu0 0.0
          %945 = vmatpush1.msra.mxu0 %v936
          %946 = vmatprep.subr.mxu0 0.0
          %947 = vmatpush1.msra.mxu0 %v935
          %948 = vmatprep.subr.mxu0 0.0
          %949 = vmatpush1.msra.mxu0 %v934
          %950 = vmatprep.subr.mxu0 0.0
          %951 = vmatpush1.msra.mxu0 %v933
          %952 = vmatprep.subr.mxu0 0.0
          %953 = vmatpush1.msra.mxu0 %v932
          %954 = vmatprep.subr.mxu0 0.0
          %955 = vmatpush1.msra.mxu0 %v931
          %956 = vmatprep.subr.mxu0 0.0
          %957 = vmatpush1.msra.mxu0 %v930
          %958 = vmatprep.subr.mxu0 0.0
          %959 = vmatpush1.msra.mxu0 %v929
          %960 = vmatprep.subr.mxu0 0.0
          %961 = vmatpush1.msra.mxu0 %v928
          %962 = vmatprep.subr.mxu0 0.0
          %963 = vmatpush1.msra.mxu0 %v927
          %964 = vmatprep.subr.mxu0 0.0
          %965 = vmatpush1.msra.mxu0 %v926
          %966 = vmatprep.subr.mxu0 0.0
          %967 = vmatpush1.msra.mxu0 %v925
          %968 = vmatprep.subr.mxu0 0.0
          %969 = vmatpush1.msra.mxu0 %v924
          %970 = vmatprep.subr.mxu0 0.0
          %971 = vmatpush1.msra.mxu0 %v923
          %972 = vmatprep.subr.mxu0 0.0
          %973 = vmatpush1.msra.mxu0 %v922
          %974 = vmatprep.subr.mxu0 0.0
          %975 = vmatpush1.msra.mxu0 %v921
          %976 = vmatprep.subr.mxu0 0.0
          %977 = vmatpush2.msra.mxu0 0.0
          %978 = vmatprep.subr.mxu0 0.0
          %979 = vmatpush2.msra.mxu0 0.0
          %980 = vmatprep.subr.mxu0 0.0
          %981 = vmatpush2.msra.mxu0 0.0
          %982 = vmatprep.subr.mxu0 0.0
          %983 = vmatpush2.msra.mxu0 0.0
          %984 = vmatprep.subr.mxu0 0.0
          %985 = vmatpush2.msra.mxu0 0.0
          %986 = vmatprep.subr.mxu0 0.0
          %987 = vmatpush2.msra.mxu0 0.0
          %988 = vmatprep.subr.mxu0 0.0
          %989 = vmatpush2.msra.mxu0 0.0
          %990 = vmatprep.subr.mxu0 0.0
          %991 = vmatpush2.msra.mxu0 0.0
          %992 = vmatprep.subr.mxu0 0.0
          %993 = vmatpush2.msra.mxu0 0.0
          %994 = vmatprep.subr.mxu0 0.0
          %995 = vmatpush2.msra.mxu0 0.0
          %996 = vmatprep.subr.mxu0 0.0
          %997 = vmatpush2.msra.mxu0 0.0
          %998 = vmatprep.subr.mxu0 0.0
          %999 = vmatpush2.msra.mxu0 0.0
          %1000 = vmatprep.subr.mxu0 0.0
          %1001 = vmatpush2.msra.mxu0 0.0
          %1002 = vmatprep.subr.mxu0 0.0
          %1003 = vmatpush2.msra.mxu0 0.0
          %1004 = vmatprep.subr.mxu0 0.0
          %1005 = vmatpush2.msra.mxu0 0.0
          %1006 = vmatprep.subr.mxu0 0.0
          %1007 = vmatpush2.msra.mxu0 0.0
          %1008 = vmatprep.mubr.f32.mxu0 0.0
          %1009 = vmatmul.mubr.f32.gmra.mxu0 %v889
          %v1010 = vpop.f32.mrf.mxu0
          %v1011 = vadd.f32 %v942, %v1010
          %v1012 = vpop.f32.mrf.mxu0
          %1013 = vmatprep.mubr.f32.mxu0 0.0
          %1014 = vmatmul.mubr.f32.gmra.mxu0 %v890
          %v1015 = vpop.f32.mrf.mxu0
          %v1016 = vadd.f32 %v942, %v1015
          %v1017 = vpop.f32.mrf.mxu0
          %1018 = vmatprep.mubr.f32.mxu0 0.0
          %1019 = vmatmul.mubr.f32.gmra.mxu0 %v891
          %v1020 = vpop.f32.mrf.mxu0
          %v1021 = vadd.f32 %v942, %v1020
          %v1022 = vpop.f32.mrf.mxu0
          %1023 = vmatprep.mubr.f32.mxu0 0.0
          %1024 = vmatmul.mubr.f32.gmra.mxu0 %v892
          %v1025 = vpop.f32.mrf.mxu0
          %v1026 = vadd.f32 %v942, %v1025
          %v1027 = vpop.f32.mrf.mxu0
          %1028 = vmatprep.mubr.f32.mxu0 0.0
          %1029 = vmatmul.mubr.f32.gmra.mxu0 %v893
          %v1030 = vpop.f32.mrf.mxu0
          %v1031 = vadd.f32 %v942, %v1030
          %v1032 = vpop.f32.mrf.mxu0
          %1033 = vmatprep.mubr.f32.mxu0 0.0
          %1034 = vmatmul.mubr.f32.gmra.mxu0 %v894
          %v1035 = vpop.f32.mrf.mxu0
          %v1036 = vadd.f32 %v942, %v1035
          %v1037 = vpop.f32.mrf.mxu0
          %1038 = vmatprep.mubr.f32.mxu0 0.0
          %1039 = vmatmul.mubr.f32.gmra.mxu0 %v895
          %v1040 = vpop.f32.mrf.mxu0
          %v1041 = vadd.f32 %v942, %v1040
          %v1042 = vpop.f32.mrf.mxu0
          %1043 = vmatprep.mubr.f32.mxu0 0.0
          %1044 = vmatmul.mubr.f32.gmra.mxu0 %v896
          %v1045 = vpop.f32.mrf.mxu0
          %v1046 = vadd.f32 %v942, %v1045
          %v1047 = vpop.f32.mrf.mxu0
          %1048 = vmatprep.mubr.f32.mxu0 0.0
          %1049 = vmatmul.mubr.f32.gmra.mxu0 %v897
          %v1050 = vpop.f32.mrf.mxu0
          %v1051 = vadd.f32 %v942, %v1050
          %v1052 = vpop.f32.mrf.mxu0
          %1053 = vmatprep.mubr.f32.mxu0 0.0
          %1054 = vmatmul.mubr.f32.gmra.mxu0 %v898
          %v1055 = vpop.f32.mrf.mxu0
          %v1056 = vadd.f32 %v942, %v1055
          %v1057 = vpop.f32.mrf.mxu0
          %1058 = vmatprep.mubr.f32.mxu0 0.0
          %1059 = vmatmul.mubr.f32.gmra.mxu0 %v899
          %v1060 = vpop.f32.mrf.mxu0
          %v1061 = vadd.f32 %v942, %v1060
          %v1062 = vpop.f32.mrf.mxu0
          %1063 = vmatprep.mubr.f32.mxu0 0.0
          %1064 = vmatmul.mubr.f32.gmra.mxu0 %v900
          %v1065 = vpop.f32.mrf.mxu0
          %v1066 = vadd.f32 %v942, %v1065
          %v1067 = vpop.f32.mrf.mxu0
          %1068 = vmatprep.mubr.f32.mxu0 0.0
          %1069 = vmatmul.mubr.f32.gmra.mxu0 %v901
          %v1070 = vpop.f32.mrf.mxu0
          %v1071 = vadd.f32 %v942, %v1070
          %v1072 = vpop.f32.mrf.mxu0
          %1073 = vmatprep.mubr.f32.mxu0 0.0
          %1074 = vmatmul.mubr.f32.gmra.mxu0 %v902
          %v1075 = vpop.f32.mrf.mxu0
          %v1076 = vadd.f32 %v942, %v1075
          %v1077 = vpop.f32.mrf.mxu0
          %1078 = vmatprep.mubr.f32.mxu0 0.0
          %1079 = vmatmul.mubr.f32.gmra.mxu0 %v903
          %v1080 = vpop.f32.mrf.mxu0
          %v1081 = vadd.f32 %v942, %v1080
          %v1082 = vpop.f32.mrf.mxu0
          %1083 = vmatprep.mubr.f32.mxu0 0.0
          %1084 = vmatmul.mubr.f32.gmra.mxu0 %v904
          %v1085 = vpop.f32.mrf.mxu0
          %v1086 = vadd.f32 %v942, %v1085
          %v1087 = vpop.f32.mrf.mxu0
          %1088 = vdwg.mxu0
          %1089 = vst [vmem:[#allocation2] sm:$0xff] %v1011
          %1090 = vst [vmem:[#allocation2 + $0x8] sm:$0xff] %v1016
          %1091 = vst [vmem:[#allocation2 + $0x10] sm:$0xff] %v1021
          %1092 = vst [vmem:[#allocation2 + $0x18] sm:$0xff] %v1026
          %1093 = vst [vmem:[#allocation2 + $0x20] sm:$0xff] %v1031
          %1094 = vst [vmem:[#allocation2 + $0x28] sm:$0xff] %v1036
          %1095 = vst [vmem:[#allocation2 + $0x30] sm:$0xff] %v1041
          %1096 = vst [vmem:[#allocation2 + $0x38] sm:$0xff] %v1046
          %1097 = vst [vmem:[#allocation2 + $0x40] sm:$0xff] %v1051
          %1098 = vst [vmem:[#allocation2 + $0x48] sm:$0xff] %v1056
          %1099 = vst [vmem:[#allocation2 + $0x50] sm:$0xff] %v1061
          %1100 = vst [vmem:[#allocation2 + $0x58] sm:$0xff] %v1066
          %1101 = vst [vmem:[#allocation2 + $0x60] sm:$0xff] %v1071
          %1102 = vst [vmem:[#allocation2 + $0x68] sm:$0xff] %v1076
          %1103 = vst [vmem:[#allocation2 + $0x70] sm:$0xff] %v1081
          %1104 = vst [vmem:[#allocation2 + $0x78] sm:$0xff] %v1086
          %v1105 = vld [vmem:[#allocation15] sm:$0xff]
          %v1106 = vld [vmem:[#allocation15 + $0x8] sm:$0xff]
          %v1107 = vld [vmem:[#allocation15 + $0x10] sm:$0xff]
          %v1108 = vld [vmem:[#allocation15 + $0x18] sm:$0xff]
          %v1109 = vld [vmem:[#allocation15 + $0x20] sm:$0xff]
          %v1110 = vld [vmem:[#allocation15 + $0x28] sm:$0xff]
          %v1111 = vld [vmem:[#allocation15 + $0x30] sm:$0xff]
          %v1112 = vld [vmem:[#allocation15 + $0x38] sm:$0xff]
          %v1113 = vld [vmem:[#allocation15 + $0x40] sm:$0xff]
          %v1114 = vld [vmem:[#allocation15 + $0x48] sm:$0xff]
          %v1115 = vld [vmem:[#allocation15 + $0x50] sm:$0xff]
          %v1116 = vld [vmem:[#allocation15 + $0x58] sm:$0xff]
          %v1117 = vld [vmem:[#allocation15 + $0x60] sm:$0xff]
          %v1118 = vld [vmem:[#allocation15 + $0x68] sm:$0xff]
          %v1119 = vld [vmem:[#allocation15 + $0x70] sm:$0xff]
          %v1120 = vld [vmem:[#allocation15 + $0x78] sm:$0xff]
          %v1121 = vld [vmem:[%s9] sm:$0x1]
          %v1123 = vlaneseq
          %v1124 = vshrl.u32 %v1123, 7
          %v1125 = vsub.s32 0, %v1124
          %v1126 = vrot.slane %v1121, %v1125
          %1128 = vmatprep.subr.mxu0 0.0
          %1129 = vmatpush1.msra.mxu0 %v1120
          %1130 = vmatprep.subr.mxu0 0.0
          %1131 = vmatpush1.msra.mxu0 %v1119
          %1132 = vmatprep.subr.mxu0 0.0
          %1133 = vmatpush1.msra.mxu0 %v1118
          %1134 = vmatprep.subr.mxu0 0.0
          %1135 = vmatpush1.msra.mxu0 %v1117
          %1136 = vmatprep.subr.mxu0 0.0
          %1137 = vmatpush1.msra.mxu0 %v1116
          %1138 = vmatprep.subr.mxu0 0.0
          %1139 = vmatpush1.msra.mxu0 %v1115
          %1140 = vmatprep.subr.mxu0 0.0
          %1141 = vmatpush1.msra.mxu0 %v1114
          %1142 = vmatprep.subr.mxu0 0.0
          %1143 = vmatpush1.msra.mxu0 %v1113
          %1144 = vmatprep.subr.mxu0 0.0
          %1145 = vmatpush1.msra.mxu0 %v1112
          %1146 = vmatprep.subr.mxu0 0.0
          %1147 = vmatpush1.msra.mxu0 %v1111
          %1148 = vmatprep.subr.mxu0 0.0
          %1149 = vmatpush1.msra.mxu0 %v1110
          %1150 = vmatprep.subr.mxu0 0.0
          %1151 = vmatpush1.msra.mxu0 %v1109
          %1152 = vmatprep.subr.mxu0 0.0
          %1153 = vmatpush1.msra.mxu0 %v1108
          %1154 = vmatprep.subr.mxu0 0.0
          %1155 = vmatpush1.msra.mxu0 %v1107
          %1156 = vmatprep.subr.mxu0 0.0
          %1157 = vmatpush1.msra.mxu0 %v1106
          %1158 = vmatprep.subr.mxu0 0.0
          %1159 = vmatpush1.msra.mxu0 %v1105
          %1160 = vmatprep.subr.mxu0 0.0
          %1161 = vmatpush2.msra.mxu0 0.0
          %1162 = vmatprep.subr.mxu0 0.0
          %1163 = vmatpush2.msra.mxu0 0.0
          %1164 = vmatprep.subr.mxu0 0.0
          %1165 = vmatpush2.msra.mxu0 0.0
          %1166 = vmatprep.subr.mxu0 0.0
          %1167 = vmatpush2.msra.mxu0 0.0
          %1168 = vmatprep.subr.mxu0 0.0
          %1169 = vmatpush2.msra.mxu0 0.0
          %1170 = vmatprep.subr.mxu0 0.0
          %1171 = vmatpush2.msra.mxu0 0.0
          %1172 = vmatprep.subr.mxu0 0.0
          %1173 = vmatpush2.msra.mxu0 0.0
          %1174 = vmatprep.subr.mxu0 0.0
          %1175 = vmatpush2.msra.mxu0 0.0
          %1176 = vmatprep.subr.mxu0 0.0
          %1177 = vmatpush2.msra.mxu0 0.0
          %1178 = vmatprep.subr.mxu0 0.0
          %1179 = vmatpush2.msra.mxu0 0.0
          %1180 = vmatprep.subr.mxu0 0.0
          %1181 = vmatpush2.msra.mxu0 0.0
          %1182 = vmatprep.subr.mxu0 0.0
          %1183 = vmatpush2.msra.mxu0 0.0
          %1184 = vmatprep.subr.mxu0 0.0
          %1185 = vmatpush2.msra.mxu0 0.0
          %1186 = vmatprep.subr.mxu0 0.0
          %1187 = vmatpush2.msra.mxu0 0.0
          %1188 = vmatprep.subr.mxu0 0.0
          %1189 = vmatpush2.msra.mxu0 0.0
          %1190 = vmatprep.subr.mxu0 0.0
          %1191 = vmatpush2.msra.mxu0 0.0
          %1192 = vmatprep.mubr.f32.mxu0 0.0
          %1193 = vmatmul.mubr.f32.gmra.mxu0 %v905
          %v1194 = vpop.f32.mrf.mxu0
          %v1195 = vadd.f32 %v1126, %v1194
          %v1196 = vpop.f32.mrf.mxu0
          %1197 = vmatprep.mubr.f32.mxu0 0.0
          %1198 = vmatmul.mubr.f32.gmra.mxu0 %v906
          %v1199 = vpop.f32.mrf.mxu0
          %v1200 = vadd.f32 %v1126, %v1199
          %v1201 = vpop.f32.mrf.mxu0
          %1202 = vmatprep.mubr.f32.mxu0 0.0
          %1203 = vmatmul.mubr.f32.gmra.mxu0 %v907
          %v1204 = vpop.f32.mrf.mxu0
          %v1205 = vadd.f32 %v1126, %v1204
          %v1206 = vpop.f32.mrf.mxu0
          %1207 = vmatprep.mubr.f32.mxu0 0.0
          %1208 = vmatmul.mubr.f32.gmra.mxu0 %v908
          %v1209 = vpop.f32.mrf.mxu0
          %v1210 = vadd.f32 %v1126, %v1209
          %v1211 = vpop.f32.mrf.mxu0
          %1212 = vmatprep.mubr.f32.mxu0 0.0
          %1213 = vmatmul.mubr.f32.gmra.mxu0 %v909
          %v1214 = vpop.f32.mrf.mxu0
          %v1215 = vadd.f32 %v1126, %v1214
          %v1216 = vpop.f32.mrf.mxu0
          %1217 = vmatprep.mubr.f32.mxu0 0.0
          %1218 = vmatmul.mubr.f32.gmra.mxu0 %v910
          %v1219 = vpop.f32.mrf.mxu0
          %v1220 = vadd.f32 %v1126, %v1219
          %v1221 = vpop.f32.mrf.mxu0
          %1222 = vmatprep.mubr.f32.mxu0 0.0
          %1223 = vmatmul.mubr.f32.gmra.mxu0 %v911
          %v1224 = vpop.f32.mrf.mxu0
          %v1225 = vadd.f32 %v1126, %v1224
          %v1226 = vpop.f32.mrf.mxu0
          %1227 = vmatprep.mubr.f32.mxu0 0.0
          %1228 = vmatmul.mubr.f32.gmra.mxu0 %v912
          %v1229 = vpop.f32.mrf.mxu0
          %v1230 = vadd.f32 %v1126, %v1229
          %v1231 = vpop.f32.mrf.mxu0
          %1232 = vmatprep.mubr.f32.mxu0 0.0
          %1233 = vmatmul.mubr.f32.gmra.mxu0 %v913
          %v1234 = vpop.f32.mrf.mxu0
          %v1235 = vadd.f32 %v1126, %v1234
          %v1236 = vpop.f32.mrf.mxu0
          %1237 = vmatprep.mubr.f32.mxu0 0.0
          %1238 = vmatmul.mubr.f32.gmra.mxu0 %v914
          %v1239 = vpop.f32.mrf.mxu0
          %v1240 = vadd.f32 %v1126, %v1239
          %v1241 = vpop.f32.mrf.mxu0
          %1242 = vmatprep.mubr.f32.mxu0 0.0
          %1243 = vmatmul.mubr.f32.gmra.mxu0 %v915
          %v1244 = vpop.f32.mrf.mxu0
          %v1245 = vadd.f32 %v1126, %v1244
          %v1246 = vpop.f32.mrf.mxu0
          %1247 = vmatprep.mubr.f32.mxu0 0.0
          %1248 = vmatmul.mubr.f32.gmra.mxu0 %v916
          %v1249 = vpop.f32.mrf.mxu0
          %v1250 = vadd.f32 %v1126, %v1249
          %v1251 = vpop.f32.mrf.mxu0
          %1252 = vmatprep.mubr.f32.mxu0 0.0
          %1253 = vmatmul.mubr.f32.gmra.mxu0 %v917
          %v1254 = vpop.f32.mrf.mxu0
          %v1255 = vadd.f32 %v1126, %v1254
          %v1256 = vpop.f32.mrf.mxu0
          %1257 = vmatprep.mubr.f32.mxu0 0.0
          %1258 = vmatmul.mubr.f32.gmra.mxu0 %v918
          %v1259 = vpop.f32.mrf.mxu0
          %v1260 = vadd.f32 %v1126, %v1259
          %v1261 = vpop.f32.mrf.mxu0
          %1262 = vmatprep.mubr.f32.mxu0 0.0
          %1263 = vmatmul.mubr.f32.gmra.mxu0 %v919
          %v1264 = vpop.f32.mrf.mxu0
          %v1265 = vadd.f32 %v1126, %v1264
          %v1266 = vpop.f32.mrf.mxu0
          %1267 = vmatprep.mubr.f32.mxu0 0.0
          %1268 = vmatmul.mubr.f32.gmra.mxu0 %v920
          %v1269 = vpop.f32.mrf.mxu0
          %v1270 = vadd.f32 %v1126, %v1269
          %v1271 = vpop.f32.mrf.mxu0
          %1272 = vdwg.mxu0
          %1273 = vst [vmem:[#allocation3] sm:$0xff] %v1195
          %1274 = vst [vmem:[#allocation3 + $0x8] sm:$0xff] %v1200
          %1275 = vst [vmem:[#allocation3 + $0x10] sm:$0xff] %v1205
          %1276 = vst [vmem:[#allocation3 + $0x18] sm:$0xff] %v1210
          %1277 = vst [vmem:[#allocation3 + $0x20] sm:$0xff] %v1215
          %1278 = vst [vmem:[#allocation3 + $0x28] sm:$0xff] %v1220
          %1279 = vst [vmem:[#allocation3 + $0x30] sm:$0xff] %v1225
          %1280 = vst [vmem:[#allocation3 + $0x38] sm:$0xff] %v1230
          %1281 = vst [vmem:[#allocation3 + $0x40] sm:$0xff] %v1235
          %1282 = vst [vmem:[#allocation3 + $0x48] sm:$0xff] %v1240
          %1283 = vst [vmem:[#allocation3 + $0x50] sm:$0xff] %v1245
          %1284 = vst [vmem:[#allocation3 + $0x58] sm:$0xff] %v1250
          %1285 = vst [vmem:[#allocation3 + $0x60] sm:$0xff] %v1255
          %1286 = vst [vmem:[#allocation3 + $0x68] sm:$0xff] %v1260
          %1287 = vst [vmem:[#allocation3 + $0x70] sm:$0xff] %v1265
          %1288 = vst [vmem:[#allocation3 + $0x78] sm:$0xff] %v1270
        $region144: #{tpu_custom_call.1} parent=99 // pred_fallthru
          _
        %v1289 = vld [vmem:[#allocation12] sm:$0xff]
        %v1290 = vld [vmem:[#allocation12 + $0x8] sm:$0xff]
        %v1291 = vld [vmem:[#allocation12 + $0x10] sm:$0xff]
        %v1292 = vld [vmem:[#allocation12 + $0x18] sm:$0xff]
        %v1293 = vld [vmem:[#allocation12 + $0x20] sm:$0xff]
        %v1294 = vld [vmem:[#allocation12 + $0x28] sm:$0xff]
        %v1295 = vld [vmem:[#allocation12 + $0x30] sm:$0xff]
        %v1296 = vld [vmem:[#allocation12 + $0x38] sm:$0xff]
        %v1297 = vld [vmem:[#allocation12 + $0x40] sm:$0xff]
        %v1298 = vld [vmem:[#allocation12 + $0x48] sm:$0xff]
        %v1299 = vld [vmem:[#allocation12 + $0x50] sm:$0xff]
        %v1300 = vld [vmem:[#allocation12 + $0x58] sm:$0xff]
        %v1301 = vld [vmem:[#allocation12 + $0x60] sm:$0xff]
        %v1302 = vld [vmem:[#allocation12 + $0x68] sm:$0xff]
        %v1303 = vld [vmem:[#allocation12 + $0x70] sm:$0xff]
        %v1304 = vld [vmem:[#allocation12 + $0x78] sm:$0xff]
        %v1305 = vld [vmem:[%s5] sm:$0x1]
        %v1307 = vlaneseq
        %v1308 = vshrl.u32 %v1307, 7
        %v1309 = vsub.s32 0, %v1308
        %v1310 = vrot.slane %v1305, %v1309
        %1312 = vmatprep.subr.mxu0 0.0
        %1313 = vmatpush1.msra.mxu0 %v1304
        %1314 = vmatprep.subr.mxu0 0.0
        %1315 = vmatpush1.msra.mxu0 %v1303
        %1316 = vmatprep.subr.mxu0 0.0
        %1317 = vmatpush1.msra.mxu0 %v1302
        %1318 = vmatprep.subr.mxu0 0.0
        %1319 = vmatpush1.msra.mxu0 %v1301
        %1320 = vmatprep.subr.mxu0 0.0
        %1321 = vmatpush1.msra.mxu0 %v1300
        %1322 = vmatprep.subr.mxu0 0.0
        %1323 = vmatpush1.msra.mxu0 %v1299
        %1324 = vmatprep.subr.mxu0 0.0
        %1325 = vmatpush1.msra.mxu0 %v1298
        %1326 = vmatprep.subr.mxu0 0.0
        %1327 = vmatpush1.msra.mxu0 %v1297
        %1328 = vmatprep.subr.mxu0 0.0
        %1329 = vmatpush1.msra.mxu0 %v1296
        %1330 = vmatprep.subr.mxu0 0.0
        %1331 = vmatpush1.msra.mxu0 %v1295
        %1332 = vmatprep.subr.mxu0 0.0
        %1333 = vmatpush1.msra.mxu0 %v1294
        %1334 = vmatprep.subr.mxu0 0.0
        %1335 = vmatpush1.msra.mxu0 %v1293
        %1336 = vmatprep.subr.mxu0 0.0
        %1337 = vmatpush1.msra.mxu0 %v1292
        %1338 = vmatprep.subr.mxu0 0.0
        %1339 = vmatpush1.msra.mxu0 %v1291
        %1340 = vmatprep.subr.mxu0 0.0
        %1341 = vmatpush1.msra.mxu0 %v1290
        %1342 = vmatprep.subr.mxu0 0.0
        %1343 = vmatpush1.msra.mxu0 %v1289
        %1344 = vmatprep.subr.mxu0 0.0
        %1345 = vmatpush2.msra.mxu0 0.0
        %1346 = vmatprep.subr.mxu0 0.0
        %1347 = vmatpush2.msra.mxu0 0.0
        %1348 = vmatprep.subr.mxu0 0.0
        %1349 = vmatpush2.msra.mxu0 0.0
        %1350 = vmatprep.subr.mxu0 0.0
        %1351 = vmatpush2.msra.mxu0 0.0
        %1352 = vmatprep.subr.mxu0 0.0
        %1353 = vmatpush2.msra.mxu0 0.0
        %1354 = vmatprep.subr.mxu0 0.0
        %1355 = vmatpush2.msra.mxu0 0.0
        %1356 = vmatprep.subr.mxu0 0.0
        %1357 = vmatpush2.msra.mxu0 0.0
        %1358 = vmatprep.subr.mxu0 0.0
        %1359 = vmatpush2.msra.mxu0 0.0
        %1360 = vmatprep.subr.mxu0 0.0
        %1361 = vmatpush2.msra.mxu0 0.0
        %1362 = vmatprep.subr.mxu0 0.0
        %1363 = vmatpush2.msra.mxu0 0.0
        %1364 = vmatprep.subr.mxu0 0.0
        %1365 = vmatpush2.msra.mxu0 0.0
        %1366 = vmatprep.subr.mxu0 0.0
        %1367 = vmatpush2.msra.mxu0 0.0
        %1368 = vmatprep.subr.mxu0 0.0
        %1369 = vmatpush2.msra.mxu0 0.0
        %1370 = vmatprep.subr.mxu0 0.0
        %1371 = vmatpush2.msra.mxu0 0.0
        %1372 = vmatprep.subr.mxu0 0.0
        %1373 = vmatpush2.msra.mxu0 0.0
        %1374 = vmatprep.subr.mxu0 0.0
        %1375 = vmatpush2.msra.mxu0 0.0
        %1376 = vmatprep.mubr.f32.mxu0 0.0
        %1377 = vmatmul.mubr.f32.gmra.mxu0 %v877
        %v1378 = vpop.f32.mrf.mxu0
        %v1379 = vadd.f32 %v1310, %v1378
        %v1380 = vpop.f32.mrf.mxu0
        %1381 = vmatprep.mubr.f32.mxu0 0.0
        %1382 = vmatmul.mubr.f32.gmra.mxu0 %v878
        %v1383 = vpop.f32.mrf.mxu0
        %v1384 = vadd.f32 %v1310, %v1383
        %v1385 = vpop.f32.mrf.mxu0
        %1386 = vmatprep.mubr.f32.mxu0 0.0
        %1387 = vmatmul.mubr.f32.gmra.mxu0 %v879
        %v1388 = vpop.f32.mrf.mxu0
        %v1389 = vadd.f32 %v1310, %v1388
        %v1390 = vpop.f32.mrf.mxu0
        %1391 = vmatprep.mubr.f32.mxu0 0.0
        %1392 = vmatmul.mubr.f32.gmra.mxu0 %v880
        %v1393 = vpop.f32.mrf.mxu0
        %v1394 = vadd.f32 %v1310, %v1393
        %v1395 = vpop.f32.mrf.mxu0
        %1396 = vmatprep.mubr.f32.mxu0 0.0
        %1397 = vmatmul.mubr.f32.gmra.mxu0 %v881
        %v1398 = vpop.f32.mrf.mxu0
        %v1399 = vadd.f32 %v1310, %v1398
        %v1400 = vpop.f32.mrf.mxu0
        %1401 = vmatprep.mubr.f32.mxu0 0.0
        %1402 = vmatmul.mubr.f32.gmra.mxu0 %v882
        %v1403 = vpop.f32.mrf.mxu0
        %v1404 = vadd.f32 %v1310, %v1403
        %v1405 = vpop.f32.mrf.mxu0
        %1406 = vmatprep.mubr.f32.mxu0 0.0
        %1407 = vmatmul.mubr.f32.gmra.mxu0 %v883
        %v1408 = vpop.f32.mrf.mxu0
        %v1409 = vadd.f32 %v1310, %v1408
        %v1410 = vpop.f32.mrf.mxu0
        %1411 = vmatprep.mubr.f32.mxu0 0.0
        %1412 = vmatmul.mubr.f32.gmra.mxu0 %v884
        %v1413 = vpop.f32.mrf.mxu0
        %v1414 = vadd.f32 %v1310, %v1413
        %v1415 = vpop.f32.mrf.mxu0
        %1416 = vdwg.mxu0
        %v1417 = vld [vmem:[#allocation2] sm:$0xff]
        %v1418 = vld [vmem:[#allocation2 + $0x8] sm:$0xff]
        %v1419 = vld [vmem:[#allocation2 + $0x10] sm:$0xff]
        %v1420 = vld [vmem:[#allocation2 + $0x18] sm:$0xff]
        %v1421 = vld [vmem:[#allocation2 + $0x20] sm:$0xff]
        %v1422 = vld [vmem:[#allocation2 + $0x28] sm:$0xff]
        %v1423 = vld [vmem:[#allocation2 + $0x30] sm:$0xff]
        %v1424 = vld [vmem:[#allocation2 + $0x38] sm:$0xff]
        %v1425 = vld [vmem:[#allocation2 + $0x40] sm:$0xff]
        %v1426 = vld [vmem:[#allocation2 + $0x48] sm:$0xff]
        %v1427 = vld [vmem:[#allocation2 + $0x50] sm:$0xff]
        %v1428 = vld [vmem:[#allocation2 + $0x58] sm:$0xff]
        %v1429 = vld [vmem:[#allocation2 + $0x60] sm:$0xff]
        %v1430 = vld [vmem:[#allocation2 + $0x68] sm:$0xff]
        %v1431 = vld [vmem:[#allocation2 + $0x70] sm:$0xff]
        %v1432 = vld [vmem:[#allocation2 + $0x78] sm:$0xff]
        %v1433 = vld [vmem:[#allocation3] sm:$0xff]
        %v1434 = vld [vmem:[#allocation3 + $0x8] sm:$0xff]
        %v1435 = vld [vmem:[#allocation3 + $0x10] sm:$0xff]
        %v1436 = vld [vmem:[#allocation3 + $0x18] sm:$0xff]
        %v1437 = vld [vmem:[#allocation3 + $0x20] sm:$0xff]
        %v1438 = vld [vmem:[#allocation3 + $0x28] sm:$0xff]
        %v1439 = vld [vmem:[#allocation3 + $0x30] sm:$0xff]
        %v1440 = vld [vmem:[#allocation3 + $0x38] sm:$0xff]
        %v1441 = vld [vmem:[#allocation3 + $0x40] sm:$0xff]
        %v1442 = vld [vmem:[#allocation3 + $0x48] sm:$0xff]
        %v1443 = vld [vmem:[#allocation3 + $0x50] sm:$0xff]
        %v1444 = vld [vmem:[#allocation3 + $0x58] sm:$0xff]
        %v1445 = vld [vmem:[#allocation3 + $0x60] sm:$0xff]
        %v1446 = vld [vmem:[#allocation3 + $0x68] sm:$0xff]
        %v1447 = vld [vmem:[#allocation3 + $0x70] sm:$0xff]
        %v1448 = vld [vmem:[#allocation3 + $0x78] sm:$0xff]
        %v1449 = vld [vmem:[%s778] sm:$0xf]
        %v1450 = vld [vmem:[%s778 + $0x4] sm:$0xf]
        %v1451 = vld [vmem:[%s778 + $0x8] sm:$0xf]
        %v1452 = vld [vmem:[%s778 + $0xc] sm:$0xf]
        %v1453 = vld [vmem:[%s778 + $0x10] sm:$0xf]
        %v1454 = vld [vmem:[%s778 + $0x14] sm:$0xf]
        %v1455 = vld [vmem:[%s778 + $0x18] sm:$0xf]
        %v1456 = vld [vmem:[%s778 + $0x1c] sm:$0xf]
        %v1457 = vunpack.c.l.bf16 %v1449
        %v1458 = vunpack.c.l.bf16 %v1450
        %v1459 = vunpack.c.l.bf16 %v1451
        %v1460 = vunpack.c.l.bf16 %v1452
        %v1461 = vunpack.c.l.bf16 %v1453
        %v1462 = vunpack.c.l.bf16 %v1454
        %v1463 = vunpack.c.l.bf16 %v1455
        %v1464 = vunpack.c.l.bf16 %v1456
        %vm1465 = vcmask 261120
        %v1467 = vsel %vm1465, %v1379, 0
        %v1470 = vsel %vm1465, %v1384, 0
        %v1473 = vsel %vm1465, %v1389, 0
        %v1476 = vsel %vm1465, %v1394, 0
        %v1479 = vsel %vm1465, %v1399, 0
        %v1482 = vsel %vm1465, %v1404, 0
        %v1485 = vsel %vm1465, %v1409, 0
        %v1488 = vsel %vm1465, %v1414, 0
        %v1491 = vsel %vm1465, %v1417, 0
        %v1494 = vsel %vm1465, %v1418, 0
        %v1497 = vsel %vm1465, %v1419, 0
        %v1500 = vsel %vm1465, %v1420, 0
        %v1503 = vsel %vm1465, %v1421, 0
        %v1506 = vsel %vm1465, %v1422, 0
        %v1509 = vsel %vm1465, %v1423, 0
        %v1512 = vsel %vm1465, %v1424, 0
        %v1515 = vsel %vm1465, %v1425, 0
        %v1518 = vsel %vm1465, %v1426, 0
        %v1521 = vsel %vm1465, %v1427, 0
        %v1524 = vsel %vm1465, %v1428, 0
        %v1527 = vsel %vm1465, %v1429, 0
        %v1530 = vsel %vm1465, %v1430, 0
        %v1533 = vsel %vm1465, %v1431, 0
        %v1536 = vsel %vm1465, %v1432, 0
        %1538 = vmatprep.subr.mxu0 0.0
        %1539 = vmatpush1.xpose.msra.mxu0 %v1536
        %1540 = vmatprep.subr.mxu0 0.0
        %1541 = vmatpush1.xpose.msra.mxu0 %v1533
        %1542 = vmatprep.subr.mxu0 0.0
        %1543 = vmatpush1.xpose.msra.mxu0 %v1530
        %1544 = vmatprep.subr.mxu0 0.0
        %1545 = vmatpush1.xpose.msra.mxu0 %v1527
        %1546 = vmatprep.subr.mxu0 0.0
        %1547 = vmatpush1.xpose.msra.mxu0 %v1524
        %1548 = vmatprep.subr.mxu0 0.0
        %1549 = vmatpush1.xpose.msra.mxu0 %v1521
        %1550 = vmatprep.subr.mxu0 0.0
        %1551 = vmatpush1.xpose.msra.mxu0 %v1518
        %1552 = vmatprep.subr.mxu0 0.0
        %1553 = vmatpush1.xpose.msra.mxu0 %v1515
        %1554 = vmatprep.subr.mxu0 0.0
        %1555 = vmatpush1.xpose.msra.mxu0 %v1512
        %1556 = vmatprep.subr.mxu0 0.0
        %1557 = vmatpush1.xpose.msra.mxu0 %v1509
        %1558 = vmatprep.subr.mxu0 0.0
        %1559 = vmatpush1.xpose.msra.mxu0 %v1506
        %1560 = vmatprep.subr.mxu0 0.0
        %1561 = vmatpush1.xpose.msra.mxu0 %v1503
        %1562 = vmatprep.subr.mxu0 0.0
        %1563 = vmatpush1.xpose.msra.mxu0 %v1500
        %1564 = vmatprep.subr.mxu0 0.0
        %1565 = vmatpush1.xpose.msra.mxu0 %v1497
        %1566 = vmatprep.subr.mxu0 0.0
        %1567 = vmatpush1.xpose.msra.mxu0 %v1494
        %1568 = vmatprep.subr.mxu0 0.0
        %1569 = vmatpush1.xpose.msra.mxu0 %v1491
        %1570 = vmatprep.subr.mxu0 0.0
        %1571 = vmatpush2.xpose.msra.mxu0 0.0
        %1572 = vmatprep.subr.mxu0 0.0
        %1573 = vmatpush2.xpose.msra.mxu0 0.0
        %1574 = vmatprep.subr.mxu0 0.0
        %1575 = vmatpush2.xpose.msra.mxu0 0.0
        %1576 = vmatprep.subr.mxu0 0.0
        %1577 = vmatpush2.xpose.msra.mxu0 0.0
        %1578 = vmatprep.subr.mxu0 0.0
        %1579 = vmatpush2.xpose.msra.mxu0 0.0
        %1580 = vmatprep.subr.mxu0 0.0
        %1581 = vmatpush2.xpose.msra.mxu0 0.0
        %1582 = vmatprep.subr.mxu0 0.0
        %1583 = vmatpush2.xpose.msra.mxu0 0.0
        %1584 = vmatprep.subr.mxu0 0.0
        %1585 = vmatpush2.xpose.msra.mxu0 0.0
        %1586 = vmatprep.subr.mxu0 0.0
        %1587 = vmatpush2.xpose.msra.mxu0 0.0
        %1588 = vmatprep.subr.mxu0 0.0
        %1589 = vmatpush2.xpose.msra.mxu0 0.0
        %1590 = vmatprep.subr.mxu0 0.0
        %1591 = vmatpush2.xpose.msra.mxu0 0.0
        %1592 = vmatprep.subr.mxu0 0.0
        %1593 = vmatpush2.xpose.msra.mxu0 0.0
        %1594 = vmatprep.subr.mxu0 0.0
        %1595 = vmatpush2.xpose.msra.mxu0 0.0
        %1596 = vmatprep.subr.mxu0 0.0
        %1597 = vmatpush2.xpose.msra.mxu0 0.0
        %1598 = vmatprep.subr.mxu0 0.0
        %1599 = vmatpush2.xpose.msra.mxu0 0.0
        %1600 = vmatprep.subr.mxu0 0.0
        %1601 = vmatpush2.xpose.msra.mxu0 0.0
        %1602 = vmatprep.mubr.f32.mxu0 0.0
        %1603 = vmatmul.mubr.f32.gmra.mxu0 %v1467
        %v1604 = vpop.f32.mrf.mxu0
        %v1605 = vadd.f32 %v1457, %v1604
        %v1606 = vpop.f32.mrf.mxu0
        %1607 = vmatprep.mubr.f32.mxu0 0.0
        %1608 = vmatmul.mubr.f32.gmra.mxu0 %v1470
        %v1609 = vpop.f32.mrf.mxu0
        %v1610 = vadd.f32 %v1458, %v1609
        %v1611 = vpop.f32.mrf.mxu0
        %1612 = vmatprep.mubr.f32.mxu0 0.0
        %1613 = vmatmul.mubr.f32.gmra.mxu0 %v1473
        %v1614 = vpop.f32.mrf.mxu0
        %v1615 = vadd.f32 %v1459, %v1614
        %v1616 = vpop.f32.mrf.mxu0
        %1617 = vmatprep.mubr.f32.mxu0 0.0
        %1618 = vmatmul.mubr.f32.gmra.mxu0 %v1476
        %v1619 = vpop.f32.mrf.mxu0
        %v1620 = vadd.f32 %v1460, %v1619
        %v1621 = vpop.f32.mrf.mxu0
        %1622 = vmatprep.mubr.f32.mxu0 0.0
        %1623 = vmatmul.mubr.f32.gmra.mxu0 %v1479
        %v1624 = vpop.f32.mrf.mxu0
        %v1625 = vadd.f32 %v1461, %v1624
        %v1626 = vpop.f32.mrf.mxu0
        %1627 = vmatprep.mubr.f32.mxu0 0.0
        %1628 = vmatmul.mubr.f32.gmra.mxu0 %v1482
        %v1629 = vpop.f32.mrf.mxu0
        %v1630 = vadd.f32 %v1462, %v1629
        %v1631 = vpop.f32.mrf.mxu0
        %1632 = vmatprep.mubr.f32.mxu0 0.0
        %1633 = vmatmul.mubr.f32.gmra.mxu0 %v1485
        %v1634 = vpop.f32.mrf.mxu0
        %v1635 = vadd.f32 %v1463, %v1634
        %v1636 = vpop.f32.mrf.mxu0
        %1637 = vmatprep.mubr.f32.mxu0 0.0
        %1638 = vmatmul.mubr.f32.gmra.mxu0 %v1488
        %v1639 = vpop.f32.mrf.mxu0
        %v1640 = vadd.f32 %v1464, %v1639
        %v1641 = vpop.f32.mrf.mxu0
        %1642 = vdwg.mxu0
        %1643 = vmax.xlane.f32.xlu0 %v1605
        %v1644 = vpop.xlane.xlu0 %1643
        %1645 = vmax.xlane.f32.xlu0 %v1610
        %v1646 = vpop.xlane.xlu0 %1645
        %1647 = vmax.xlane.f32.xlu0 %v1615
        %v1648 = vpop.xlane.xlu0 %1647
        %1649 = vmax.xlane.f32.xlu0 %v1620
        %v1650 = vpop.xlane.xlu0 %1649
        %1651 = vmax.xlane.f32.xlu0 %v1625
        %v1652 = vpop.xlane.xlu0 %1651
        %1653 = vmax.xlane.f32.xlu0 %v1630
        %v1654 = vpop.xlane.xlu0 %1653
        %1655 = vmax.xlane.f32.xlu0 %v1635
        %v1656 = vpop.xlane.xlu0 %1655
        %1657 = vmax.xlane.f32.xlu0 %v1640
        %v1658 = vpop.xlane.xlu0 %1657
        %v1659 = vsub.f32 %v1605, %v1644
        %v1660 = vsub.f32 %v1610, %v1646
        %v1661 = vsub.f32 %v1615, %v1648
        %v1662 = vsub.f32 %v1620, %v1650
        %v1663 = vsub.f32 %v1625, %v1652
        %v1664 = vsub.f32 %v1630, %v1654
        %v1665 = vsub.f32 %v1635, %v1656
        %v1666 = vsub.f32 %v1640, %v1658
        %v1667 = vmul.f32 %v1659, 1.442695
        %v1668 = vpow.pop %v1667
        %v1669 = vmul.f32 %v1660, 1.442695
        %v1670 = vpow.pop %v1669
        %v1671 = vmul.f32 %v1661, 1.442695
        %v1672 = vpow.pop %v1671
        %v1673 = vmul.f32 %v1662, 1.442695
        %v1674 = vpow.pop %v1673
        %v1675 = vmul.f32 %v1663, 1.442695
        %v1676 = vpow.pop %v1675
        %v1677 = vmul.f32 %v1664, 1.442695
        %v1678 = vpow.pop %v1677
        %v1679 = vmul.f32 %v1665, 1.442695
        %v1680 = vpow.pop %v1679
        %v1681 = vmul.f32 %v1666, 1.442695
        %v1682 = vpow.pop %v1681
        %1683 = vadd.xlane.f32.xlu0 %v1668
        %v1684 = vpop.xlane.xlu0 %1683
        %1685 = vadd.xlane.f32.xlu0 %v1670
        %v1686 = vpop.xlane.xlu0 %1685
        %1687 = vadd.xlane.f32.xlu0 %v1672
        %v1688 = vpop.xlane.xlu0 %1687
        %1689 = vadd.xlane.f32.xlu0 %v1674
        %v1690 = vpop.xlane.xlu0 %1689
        %1691 = vadd.xlane.f32.xlu0 %v1676
        %v1692 = vpop.xlane.xlu0 %1691
        %1693 = vadd.xlane.f32.xlu0 %v1678
        %v1694 = vpop.xlane.xlu0 %1693
        %1695 = vadd.xlane.f32.xlu0 %v1680
        %v1696 = vpop.xlane.xlu0 %1695
        %1697 = vadd.xlane.f32.xlu0 %v1682
        %v1698 = vpop.xlane.xlu0 %1697
        %v1699 = vrcp.pop %v1684
        %v1700 = vrcp.pop %v1686
        %v1701 = vrcp.pop %v1688
        %v1702 = vrcp.pop %v1690
        %v1703 = vrcp.pop %v1692
        %v1704 = vrcp.pop %v1694
        %v1705 = vrcp.pop %v1696
        %v1706 = vrcp.pop %v1698
        %1707 = vmatprep.subr.mxu0 0.0
        %1708 = vmatpush1.msra.mxu0 %v1448
        %1709 = vmatprep.subr.mxu0 0.0
        %1710 = vmatpush1.msra.mxu0 %v1447
        %1711 = vmatprep.subr.mxu0 0.0
        %1712 = vmatpush1.msra.mxu0 %v1446
        %1713 = vmatprep.subr.mxu0 0.0
        %1714 = vmatpush1.msra.mxu0 %v1445
        %1715 = vmatprep.subr.mxu0 0.0
        %1716 = vmatpush1.msra.mxu0 %v1444
        %1717 = vmatprep.subr.mxu0 0.0
        %1718 = vmatpush1.msra.mxu0 %v1443
        %1719 = vmatprep.subr.mxu0 0.0
        %1720 = vmatpush1.msra.mxu0 %v1442
        %1721 = vmatprep.subr.mxu0 0.0
        %1722 = vmatpush1.msra.mxu0 %v1441
        %1723 = vmatprep.subr.mxu0 0.0
        %1724 = vmatpush1.msra.mxu0 %v1440
        %1725 = vmatprep.subr.mxu0 0.0
        %1726 = vmatpush1.msra.mxu0 %v1439
        %1727 = vmatprep.subr.mxu0 0.0
        %1728 = vmatpush1.msra.mxu0 %v1438
        %1729 = vmatprep.subr.mxu0 0.0
        %1730 = vmatpush1.msra.mxu0 %v1437
        %1731 = vmatprep.subr.mxu0 0.0
        %1732 = vmatpush1.msra.mxu0 %v1436
        %1733 = vmatprep.subr.mxu0 0.0
        %1734 = vmatpush1.msra.mxu0 %v1435
        %1735 = vmatprep.subr.mxu0 0.0
        %1736 = vmatpush1.msra.mxu0 %v1434
        %1737 = vmatprep.subr.mxu0 0.0
        %1738 = vmatpush1.msra.mxu0 %v1433
        %1739 = vmatprep.subr.mxu0 0.0
        %1740 = vmatpush2.msra.mxu0 0.0
        %1741 = vmatprep.subr.mxu0 0.0
        %1742 = vmatpush2.msra.mxu0 0.0
        %1743 = vmatprep.subr.mxu0 0.0
        %1744 = vmatpush2.msra.mxu0 0.0
        %1745 = vmatprep.subr.mxu0 0.0
        %1746 = vmatpush2.msra.mxu0 0.0
        %1747 = vmatprep.subr.mxu0 0.0
        %1748 = vmatpush2.msra.mxu0 0.0
        %1749 = vmatprep.subr.mxu0 0.0
        %1750 = vmatpush2.msra.mxu0 0.0
        %1751 = vmatprep.subr.mxu0 0.0
        %1752 = vmatpush2.msra.mxu0 0.0
        %1753 = vmatprep.subr.mxu0 0.0
        %1754 = vmatpush2.msra.mxu0 0.0
        %1755 = vmatprep.subr.mxu0 0.0
        %1756 = vmatpush2.msra.mxu0 0.0
        %1757 = vmatprep.subr.mxu0 0.0
        %1758 = vmatpush2.msra.mxu0 0.0
        %1759 = vmatprep.subr.mxu0 0.0
        %1760 = vmatpush2.msra.mxu0 0.0
        %1761 = vmatprep.subr.mxu0 0.0
        %1762 = vmatpush2.msra.mxu0 0.0
        %1763 = vmatprep.subr.mxu0 0.0
        %1764 = vmatpush2.msra.mxu0 0.0
        %1765 = vmatprep.subr.mxu0 0.0
        %1766 = vmatpush2.msra.mxu0 0.0
        %1767 = vmatprep.subr.mxu0 0.0
        %1768 = vmatpush2.msra.mxu0 0.0
        %1769 = vmatprep.subr.mxu0 0.0
        %1770 = vmatpush2.msra.mxu0 0.0
        %1771 = vmatprep.mubr.f32.mxu0 0.0
        %1772 = vmatmul.mubr.f32.gmra.mxu0 %v1668
        %v1773 = vpop.f32.mrf.mxu0
        %v1774 = vadd.f32 0.0, %v1773
        %v1775 = vpop.f32.mrf.mxu0
        %1776 = vmatprep.mubr.f32.mxu0 0.0
        %1777 = vmatmul.mubr.f32.gmra.mxu0 %v1670
        %v1778 = vpop.f32.mrf.mxu0
        %v1779 = vadd.f32 0.0, %v1778
        %v1780 = vpop.f32.mrf.mxu0
        %1781 = vmatprep.mubr.f32.mxu0 0.0
        %1782 = vmatmul.mubr.f32.gmra.mxu0 %v1672
        %v1783 = vpop.f32.mrf.mxu0
        %v1784 = vadd.f32 0.0, %v1783
        %v1785 = vpop.f32.mrf.mxu0
        %1786 = vmatprep.mubr.f32.mxu0 0.0
        %1787 = vmatmul.mubr.f32.gmra.mxu0 %v1674
        %v1788 = vpop.f32.mrf.mxu0
        %v1789 = vadd.f32 0.0, %v1788
        %v1790 = vpop.f32.mrf.mxu0
        %1791 = vmatprep.mubr.f32.mxu0 0.0
        %1792 = vmatmul.mubr.f32.gmra.mxu0 %v1676
        %v1793 = vpop.f32.mrf.mxu0
        %v1794 = vadd.f32 0.0, %v1793
        %v1795 = vpop.f32.mrf.mxu0
        %1796 = vmatprep.mubr.f32.mxu0 0.0
        %1797 = vmatmul.mubr.f32.gmra.mxu0 %v1678
        %v1798 = vpop.f32.mrf.mxu0
        %v1799 = vadd.f32 0.0, %v1798
        %v1800 = vpop.f32.mrf.mxu0
        %1801 = vmatprep.mubr.f32.mxu0 0.0
        %1802 = vmatmul.mubr.f32.gmra.mxu0 %v1680
        %v1803 = vpop.f32.mrf.mxu0
        %v1804 = vadd.f32 0.0, %v1803
        %v1805 = vpop.f32.mrf.mxu0
        %1806 = vmatprep.mubr.f32.mxu0 0.0
        %1807 = vmatmul.mubr.f32.gmra.mxu0 %v1682
        %v1808 = vpop.f32.mrf.mxu0
        %v1809 = vadd.f32 0.0, %v1808
        %v1810 = vpop.f32.mrf.mxu0
        %1811 = vdwg.mxu0
        %v1812 = vmul.f32 %v1774, %v1699
        %v1813 = vmul.f32 %v1779, %v1700
        %v1814 = vmul.f32 %v1784, %v1701
        %v1815 = vmul.f32 %v1789, %v1702
        %v1816 = vmul.f32 %v1794, %v1703
        %v1817 = vmul.f32 %v1799, %v1704
        %v1818 = vmul.f32 %v1804, %v1705
        %v1819 = vmul.f32 %v1809, %v1706
        %v1820 = vld [vmem:[#allocation16] sm:$0xff]
        %v1821 = vld [vmem:[#allocation16 + $0x8] sm:$0xff]
        %v1822 = vld [vmem:[#allocation16 + $0x10] sm:$0xff]
        %v1823 = vld [vmem:[#allocation16 + $0x18] sm:$0xff]
        %1824 = vrot.lane.b32.xlu0 %v1379, 96
        %v1825 = vpop.permute.xlu0 %1824
        %1826 = vrot.lane.b32.xlu0 %v1384, 96
        %v1827 = vpop.permute.xlu0 %1826
        %1828 = vrot.lane.b32.xlu0 %v1389, 96
        %v1829 = vpop.permute.xlu0 %1828
        %1830 = vrot.lane.b32.xlu0 %v1394, 96
        %v1831 = vpop.permute.xlu0 %1830
        %1832 = vrot.lane.b32.xlu0 %v1399, 96
        %v1833 = vpop.permute.xlu0 %1832
        %1834 = vrot.lane.b32.xlu0 %v1404, 96
        %v1835 = vpop.permute.xlu0 %1834
        %1836 = vrot.lane.b32.xlu0 %v1409, 96
        %v1837 = vpop.permute.xlu0 %1836
        %1838 = vrot.lane.b32.xlu0 %v1414, 96
        %v1839 = vpop.permute.xlu0 %1838
        %1840 = vrot.lane.b32.xlu0 %v1417, 96
        %v1841 = vpop.permute.xlu0 %1840
        %1842 = vrot.lane.b32.xlu0 %v1418, 96
        %v1843 = vpop.permute.xlu0 %1842
        %1844 = vrot.lane.b32.xlu0 %v1419, 96
        %v1845 = vpop.permute.xlu0 %1844
        %1846 = vrot.lane.b32.xlu0 %v1420, 96
        %v1847 = vpop.permute.xlu0 %1846
        %1848 = vrot.lane.b32.xlu0 %v1421, 96
        %v1849 = vpop.permute.xlu0 %1848
        %1850 = vrot.lane.b32.xlu0 %v1422, 96
        %v1851 = vpop.permute.xlu0 %1850
        %1852 = vrot.lane.b32.xlu0 %v1423, 96
        %v1853 = vpop.permute.xlu0 %1852
        %1854 = vrot.lane.b32.xlu0 %v1424, 96
        %v1855 = vpop.permute.xlu0 %1854
        %1856 = vrot.lane.b32.xlu0 %v1425, 96
        %v1857 = vpop.permute.xlu0 %1856
        %1858 = vrot.lane.b32.xlu0 %v1426, 96
        %v1859 = vpop.permute.xlu0 %1858
        %1860 = vrot.lane.b32.xlu0 %v1427, 96
        %v1861 = vpop.permute.xlu0 %1860
        %1862 = vrot.lane.b32.xlu0 %v1428, 96
        %v1863 = vpop.permute.xlu0 %1862
        %1864 = vrot.lane.b32.xlu0 %v1429, 96
        %v1865 = vpop.permute.xlu0 %1864
        %1866 = vrot.lane.b32.xlu0 %v1430, 96
        %v1867 = vpop.permute.xlu0 %1866
        %1868 = vrot.lane.b32.xlu0 %v1431, 96
        %v1869 = vpop.permute.xlu0 %1868
        %1870 = vrot.lane.b32.xlu0 %v1432, 96
        %v1871 = vpop.permute.xlu0 %1870
        %v1872 = vsel %vm1465, %v1825, 0
        %v1874 = vsel %vm1465, %v1827, 0
        %v1876 = vsel %vm1465, %v1829, 0
        %v1878 = vsel %vm1465, %v1831, 0
        %v1880 = vsel %vm1465, %v1833, 0
        %v1882 = vsel %vm1465, %v1835, 0
        %v1884 = vsel %vm1465, %v1837, 0
        %v1886 = vsel %vm1465, %v1839, 0
        %v1888 = vsel %vm1465, %v1841, 0
        %v1890 = vsel %vm1465, %v1843, 0
        %v1892 = vsel %vm1465, %v1845, 0
        %v1894 = vsel %vm1465, %v1847, 0
        %v1896 = vsel %vm1465, %v1849, 0
        %v1898 = vsel %vm1465, %v1851, 0
        %v1900 = vsel %vm1465, %v1853, 0
        %v1902 = vsel %vm1465, %v1855, 0
        %v1904 = vsel %vm1465, %v1857, 0
        %v1906 = vsel %vm1465, %v1859, 0
        %v1908 = vsel %vm1465, %v1861, 0
        %v1910 = vsel %vm1465, %v1863, 0
        %v1912 = vsel %vm1465, %v1865, 0
        %v1914 = vsel %vm1465, %v1867, 0
        %v1916 = vsel %vm1465, %v1869, 0
        %v1918 = vsel %vm1465, %v1871, 0
        %1920 = vmatprep.subr.mxu0 0.0
        %1921 = vmatpush1.xpose.msra.mxu0 %v1918
        %1922 = vmatprep.subr.mxu0 0.0
        %1923 = vmatpush1.xpose.msra.mxu0 %v1916
        %1924 = vmatprep.subr.mxu0 0.0
        %1925 = vmatpush1.xpose.msra.mxu0 %v1914
        %1926 = vmatprep.subr.mxu0 0.0
        %1927 = vmatpush1.xpose.msra.mxu0 %v1912
        %1928 = vmatprep.subr.mxu0 0.0
        %1929 = vmatpush1.xpose.msra.mxu0 %v1910
        %1930 = vmatprep.subr.mxu0 0.0
        %1931 = vmatpush1.xpose.msra.mxu0 %v1908
        %1932 = vmatprep.subr.mxu0 0.0
        %1933 = vmatpush1.xpose.msra.mxu0 %v1906
        %1934 = vmatprep.subr.mxu0 0.0
        %1935 = vmatpush1.xpose.msra.mxu0 %v1904
        %1936 = vmatprep.subr.mxu0 0.0
        %1937 = vmatpush1.xpose.msra.mxu0 %v1902
        %1938 = vmatprep.subr.mxu0 0.0
        %1939 = vmatpush1.xpose.msra.mxu0 %v1900
        %1940 = vmatprep.subr.mxu0 0.0
        %1941 = vmatpush1.xpose.msra.mxu0 %v1898
        %1942 = vmatprep.subr.mxu0 0.0
        %1943 = vmatpush1.xpose.msra.mxu0 %v1896
        %1944 = vmatprep.subr.mxu0 0.0
        %1945 = vmatpush1.xpose.msra.mxu0 %v1894
        %1946 = vmatprep.subr.mxu0 0.0
        %1947 = vmatpush1.xpose.msra.mxu0 %v1892
        %1948 = vmatprep.subr.mxu0 0.0
        %1949 = vmatpush1.xpose.msra.mxu0 %v1890
        %1950 = vmatprep.subr.mxu0 0.0
        %1951 = vmatpush1.xpose.msra.mxu0 %v1888
        %1952 = vmatprep.subr.mxu0 0.0
        %1953 = vmatpush2.xpose.msra.mxu0 0.0
        %1954 = vmatprep.subr.mxu0 0.0
        %1955 = vmatpush2.xpose.msra.mxu0 0.0
        %1956 = vmatprep.subr.mxu0 0.0
        %1957 = vmatpush2.xpose.msra.mxu0 0.0
        %1958 = vmatprep.subr.mxu0 0.0
        %1959 = vmatpush2.xpose.msra.mxu0 0.0
        %1960 = vmatprep.subr.mxu0 0.0
        %1961 = vmatpush2.xpose.msra.mxu0 0.0
        %1962 = vmatprep.subr.mxu0 0.0
        %1963 = vmatpush2.xpose.msra.mxu0 0.0
        %1964 = vmatprep.subr.mxu0 0.0
        %1965 = vmatpush2.xpose.msra.mxu0 0.0
        %1966 = vmatprep.subr.mxu0 0.0
        %1967 = vmatpush2.xpose.msra.mxu0 0.0
        %1968 = vmatprep.subr.mxu0 0.0
        %1969 = vmatpush2.xpose.msra.mxu0 0.0
        %1970 = vmatprep.subr.mxu0 0.0
        %1971 = vmatpush2.xpose.msra.mxu0 0.0
        %1972 = vmatprep.subr.mxu0 0.0
        %1973 = vmatpush2.xpose.msra.mxu0 0.0
        %1974 = vmatprep.subr.mxu0 0.0
        %1975 = vmatpush2.xpose.msra.mxu0 0.0
        %1976 = vmatprep.subr.mxu0 0.0
        %1977 = vmatpush2.xpose.msra.mxu0 0.0
        %1978 = vmatprep.subr.mxu0 0.0
        %1979 = vmatpush2.xpose.msra.mxu0 0.0
        %1980 = vmatprep.subr.mxu0 0.0
        %1981 = vmatpush2.xpose.msra.mxu0 0.0
        %1982 = vmatprep.subr.mxu0 0.0
        %1983 = vmatpush2.xpose.msra.mxu0 0.0
        %1984 = vmatprep.mubr.f32.mxu0 0.0
        %1985 = vmatmul.mubr.f32.gmra.mxu0 %v1872
        %v1986 = vpop.f32.mrf.mxu0
        %v1987 = vadd.f32 %v1457, %v1986
        %v1988 = vpop.f32.mrf.mxu0
        %1989 = vmatprep.mubr.f32.mxu0 0.0
        %1990 = vmatmul.mubr.f32.gmra.mxu0 %v1874
        %v1991 = vpop.f32.mrf.mxu0
        %v1992 = vadd.f32 %v1458, %v1991
        %v1993 = vpop.f32.mrf.mxu0
        %1994 = vmatprep.mubr.f32.mxu0 0.0
        %1995 = vmatmul.mubr.f32.gmra.mxu0 %v1876
        %v1996 = vpop.f32.mrf.mxu0
        %v1997 = vadd.f32 %v1459, %v1996
        %v1998 = vpop.f32.mrf.mxu0
        %1999 = vmatprep.mubr.f32.mxu0 0.0
        %2000 = vmatmul.mubr.f32.gmra.mxu0 %v1878
        %v2001 = vpop.f32.mrf.mxu0
        %v2002 = vadd.f32 %v1460, %v2001
        %v2003 = vpop.f32.mrf.mxu0
        %2004 = vmatprep.mubr.f32.mxu0 0.0
        %2005 = vmatmul.mubr.f32.gmra.mxu0 %v1880
        %v2006 = vpop.f32.mrf.mxu0
        %v2007 = vadd.f32 %v1461, %v2006
        %v2008 = vpop.f32.mrf.mxu0
        %2009 = vmatprep.mubr.f32.mxu0 0.0
        %2010 = vmatmul.mubr.f32.gmra.mxu0 %v1882
        %v2011 = vpop.f32.mrf.mxu0
        %v2012 = vadd.f32 %v1462, %v2011
        %v2013 = vpop.f32.mrf.mxu0
        %2014 = vmatprep.mubr.f32.mxu0 0.0
        %2015 = vmatmul.mubr.f32.gmra.mxu0 %v1884
        %v2016 = vpop.f32.mrf.mxu0
        %v2017 = vadd.f32 %v1463, %v2016
        %v2018 = vpop.f32.mrf.mxu0
        %2019 = vmatprep.mubr.f32.mxu0 0.0
        %2020 = vmatmul.mubr.f32.gmra.mxu0 %v1886
        %v2021 = vpop.f32.mrf.mxu0
        %v2022 = vadd.f32 %v1464, %v2021
        %v2023 = vpop.f32.mrf.mxu0
        %2024 = vdwg.mxu0
        %2025 = vmax.xlane.f32.xlu0 %v1987
        %v2026 = vpop.xlane.xlu0 %2025
        %2027 = vmax.xlane.f32.xlu0 %v1992
        %v2028 = vpop.xlane.xlu0 %2027
        %2029 = vmax.xlane.f32.xlu0 %v1997
        %v2030 = vpop.xlane.xlu0 %2029
        %2031 = vmax.xlane.f32.xlu0 %v2002
        %v2032 = vpop.xlane.xlu0 %2031
        %2033 = vmax.xlane.f32.xlu0 %v2007
        %v2034 = vpop.xlane.xlu0 %2033
        %2035 = vmax.xlane.f32.xlu0 %v2012
        %v2036 = vpop.xlane.xlu0 %2035
        %2037 = vmax.xlane.f32.xlu0 %v2017
        %v2038 = vpop.xlane.xlu0 %2037
        %2039 = vmax.xlane.f32.xlu0 %v2022
        %v2040 = vpop.xlane.xlu0 %2039
        %v2041 = vsub.f32 %v1987, %v2026
        %v2042 = vsub.f32 %v1992, %v2028
        %v2043 = vsub.f32 %v1997, %v2030
        %v2044 = vsub.f32 %v2002, %v2032
        %v2045 = vsub.f32 %v2007, %v2034
        %v2046 = vsub.f32 %v2012, %v2036
        %v2047 = vsub.f32 %v2017, %v2038
        %v2048 = vsub.f32 %v2022, %v2040
        %v2049 = vmul.f32 %v2041, 1.442695
        %v2050 = vpow.pop %v2049
        %v2051 = vmul.f32 %v2042, 1.442695
        %v2052 = vpow.pop %v2051
        %v2053 = vmul.f32 %v2043, 1.442695
        %v2054 = vpow.pop %v2053
        %v2055 = vmul.f32 %v2044, 1.442695
        %v2056 = vpow.pop %v2055
        %v2057 = vmul.f32 %v2045, 1.442695
        %v2058 = vpow.pop %v2057
        %v2059 = vmul.f32 %v2046, 1.442695
        %v2060 = vpow.pop %v2059
        %v2061 = vmul.f32 %v2047, 1.442695
        %v2062 = vpow.pop %v2061
        %v2063 = vmul.f32 %v2048, 1.442695
        %v2064 = vpow.pop %v2063
        %2065 = vadd.xlane.f32.xlu0 %v2050
        %v2066 = vpop.xlane.xlu0 %2065
        %2067 = vadd.xlane.f32.xlu0 %v2052
        %v2068 = vpop.xlane.xlu0 %2067
        %2069 = vadd.xlane.f32.xlu0 %v2054
        %v2070 = vpop.xlane.xlu0 %2069
        %2071 = vadd.xlane.f32.xlu0 %v2056
        %v2072 = vpop.xlane.xlu0 %2071
        %2073 = vadd.xlane.f32.xlu0 %v2058
        %v2074 = vpop.xlane.xlu0 %2073
        %2075 = vadd.xlane.f32.xlu0 %v2060
        %v2076 = vpop.xlane.xlu0 %2075
        %2077 = vadd.xlane.f32.xlu0 %v2062
        %v2078 = vpop.xlane.xlu0 %2077
        %2079 = vadd.xlane.f32.xlu0 %v2064
        %v2080 = vpop.xlane.xlu0 %2079
        %v2081 = vrcp.pop %v2066
        %v2082 = vrcp.pop %v2068
        %v2083 = vrcp.pop %v2070
        %v2084 = vrcp.pop %v2072
        %v2085 = vrcp.pop %v2074
        %v2086 = vrcp.pop %v2076
        %v2087 = vrcp.pop %v2078
        %v2088 = vrcp.pop %v2080
        %2105 = vrot.lane.b32.xlu0 %v1433, 96
        %v2106 = vpop.permute.xlu0 %2105
        %2107 = vrot.lane.b32.xlu0 %v1434, 96
        %v2108 = vpop.permute.xlu0 %2107
        %2109 = vrot.lane.b32.xlu0 %v1435, 96
        %v2110 = vpop.permute.xlu0 %2109
        %2111 = vrot.lane.b32.xlu0 %v1436, 96
        %v2112 = vpop.permute.xlu0 %2111
        %2113 = vrot.lane.b32.xlu0 %v1437, 96
        %v2114 = vpop.permute.xlu0 %2113
        %2115 = vrot.lane.b32.xlu0 %v1438, 96
        %v2116 = vpop.permute.xlu0 %2115
        %2117 = vrot.lane.b32.xlu0 %v1439, 96
        %v2118 = vpop.permute.xlu0 %2117
        %2119 = vrot.lane.b32.xlu0 %v1440, 96
        %v2120 = vpop.permute.xlu0 %2119
        %2121 = vrot.lane.b32.xlu0 %v1441, 96
        %v2122 = vpop.permute.xlu0 %2121
        %2123 = vrot.lane.b32.xlu0 %v1442, 96
        %v2124 = vpop.permute.xlu0 %2123
        %2125 = vrot.lane.b32.xlu0 %v1443, 96
        %v2126 = vpop.permute.xlu0 %2125
        %2127 = vrot.lane.b32.xlu0 %v1444, 96
        %v2128 = vpop.permute.xlu0 %2127
        %2129 = vrot.lane.b32.xlu0 %v1445, 96
        %v2130 = vpop.permute.xlu0 %2129
        %2131 = vrot.lane.b32.xlu0 %v1446, 96
        %v2132 = vpop.permute.xlu0 %2131
        %2133 = vrot.lane.b32.xlu0 %v1447, 96
        %v2134 = vpop.permute.xlu0 %2133
        %2135 = vrot.lane.b32.xlu0 %v1448, 96
        %v2136 = vpop.permute.xlu0 %2135
        %2153 = vmatprep.subr.mxu0 0.0
        %2154 = vmatpush1.msra.mxu0 %v2136
        %2155 = vmatprep.subr.mxu0 0.0
        %2156 = vmatpush1.msra.mxu0 %v2134
        %2157 = vmatprep.subr.mxu0 0.0
        %2158 = vmatpush1.msra.mxu0 %v2132
        %2159 = vmatprep.subr.mxu0 0.0
        %2160 = vmatpush1.msra.mxu0 %v2130
        %2161 = vmatprep.subr.mxu0 0.0
        %2162 = vmatpush1.msra.mxu0 %v2128
        %2163 = vmatprep.subr.mxu0 0.0
        %2164 = vmatpush1.msra.mxu0 %v2126
        %2165 = vmatprep.subr.mxu0 0.0
        %2166 = vmatpush1.msra.mxu0 %v2124
        %2167 = vmatprep.subr.mxu0 0.0
        %2168 = vmatpush1.msra.mxu0 %v2122
        %2169 = vmatprep.subr.mxu0 0.0
        %2170 = vmatpush1.msra.mxu0 %v2120
        %2171 = vmatprep.subr.mxu0 0.0
        %2172 = vmatpush1.msra.mxu0 %v2118
        %2173 = vmatprep.subr.mxu0 0.0
        %2174 = vmatpush1.msra.mxu0 %v2116
        %2175 = vmatprep.subr.mxu0 0.0
        %2176 = vmatpush1.msra.mxu0 %v2114
        %2177 = vmatprep.subr.mxu0 0.0
        %2178 = vmatpush1.msra.mxu0 %v2112
        %2179 = vmatprep.subr.mxu0 0.0
        %2180 = vmatpush1.msra.mxu0 %v2110
        %2181 = vmatprep.subr.mxu0 0.0
        %2182 = vmatpush1.msra.mxu0 %v2108
        %2183 = vmatprep.subr.mxu0 0.0
        %2184 = vmatpush1.msra.mxu0 %v2106
        %2185 = vmatprep.subr.mxu0 0.0
        %2186 = vmatpush2.msra.mxu0 0.0
        %2187 = vmatprep.subr.mxu0 0.0
        %2188 = vmatpush2.msra.mxu0 0.0
        %2189 = vmatprep.subr.mxu0 0.0
        %2190 = vmatpush2.msra.mxu0 0.0
        %2191 = vmatprep.subr.mxu0 0.0
        %2192 = vmatpush2.msra.mxu0 0.0
        %2193 = vmatprep.subr.mxu0 0.0
        %2194 = vmatpush2.msra.mxu0 0.0
        %2195 = vmatprep.subr.mxu0 0.0
        %2196 = vmatpush2.msra.mxu0 0.0
        %2197 = vmatprep.subr.mxu0 0.0
        %2198 = vmatpush2.msra.mxu0 0.0
        %2199 = vmatprep.subr.mxu0 0.0
        %2200 = vmatpush2.msra.mxu0 0.0
        %2201 = vmatprep.subr.mxu0 0.0
        %2202 = vmatpush2.msra.mxu0 0.0
        %2203 = vmatprep.subr.mxu0 0.0
        %2204 = vmatpush2.msra.mxu0 0.0
        %2205 = vmatprep.subr.mxu0 0.0
        %2206 = vmatpush2.msra.mxu0 0.0
        %2207 = vmatprep.subr.mxu0 0.0
        %2208 = vmatpush2.msra.mxu0 0.0
        %2209 = vmatprep.subr.mxu0 0.0
        %2210 = vmatpush2.msra.mxu0 0.0
        %2211 = vmatprep.subr.mxu0 0.0
        %2212 = vmatpush2.msra.mxu0 0.0
        %2213 = vmatprep.subr.mxu0 0.0
        %2214 = vmatpush2.msra.mxu0 0.0
        %2215 = vmatprep.subr.mxu0 0.0
        %2216 = vmatpush2.msra.mxu0 0.0
        %2217 = vmatprep.mubr.f32.mxu0 0.0
        %2218 = vmatmul.mubr.f32.gmra.mxu0 %v2050
        %v2219 = vpop.f32.mrf.mxu0
        %v2220 = vadd.f32 0.0, %v2219
        %v2221 = vpop.f32.mrf.mxu0
        %2222 = vmatprep.mubr.f32.mxu0 0.0
        %2223 = vmatmul.mubr.f32.gmra.mxu0 %v2052
        %v2224 = vpop.f32.mrf.mxu0
        %v2225 = vadd.f32 0.0, %v2224
        %v2226 = vpop.f32.mrf.mxu0
        %2227 = vmatprep.mubr.f32.mxu0 0.0
        %2228 = vmatmul.mubr.f32.gmra.mxu0 %v2054
        %v2229 = vpop.f32.mrf.mxu0
        %v2230 = vadd.f32 0.0, %v2229
        %v2231 = vpop.f32.mrf.mxu0
        %2232 = vmatprep.mubr.f32.mxu0 0.0
        %2233 = vmatmul.mubr.f32.gmra.mxu0 %v2056
        %v2234 = vpop.f32.mrf.mxu0
        %v2235 = vadd.f32 0.0, %v2234
        %v2236 = vpop.f32.mrf.mxu0
        %2237 = vmatprep.mubr.f32.mxu0 0.0
        %2238 = vmatmul.mubr.f32.gmra.mxu0 %v2058
        %v2239 = vpop.f32.mrf.mxu0
        %v2240 = vadd.f32 0.0, %v2239
        %v2241 = vpop.f32.mrf.mxu0
        %2242 = vmatprep.mubr.f32.mxu0 0.0
        %2243 = vmatmul.mubr.f32.gmra.mxu0 %v2060
        %v2244 = vpop.f32.mrf.mxu0
        %v2245 = vadd.f32 0.0, %v2244
        %v2246 = vpop.f32.mrf.mxu0
        %2247 = vmatprep.mubr.f32.mxu0 0.0
        %2248 = vmatmul.mubr.f32.gmra.mxu0 %v2062
        %v2249 = vpop.f32.mrf.mxu0
        %v2250 = vadd.f32 0.0, %v2249
        %v2251 = vpop.f32.mrf.mxu0
        %2252 = vmatprep.mubr.f32.mxu0 0.0
        %2253 = vmatmul.mubr.f32.gmra.mxu0 %v2064
        %v2254 = vpop.f32.mrf.mxu0
        %v2255 = vadd.f32 0.0, %v2254
        %v2256 = vpop.f32.mrf.mxu0
        %2257 = vdwg.mxu0
        %v2258 = vmul.f32 %v2220, %v2081
        %v2259 = vmul.f32 %v2225, %v2082
        %v2260 = vmul.f32 %v2230, %v2083
        %v2261 = vmul.f32 %v2235, %v2084
        %v2262 = vmul.f32 %v2240, %v2085
        %v2263 = vmul.f32 %v2245, %v2086
        %v2264 = vmul.f32 %v2250, %v2087
        %v2265 = vmul.f32 %v2255, %v2088
        %v2266 = vld [vmem:[#allocation16 + $0x20] sm:$0xff]
        %v2267 = vld [vmem:[#allocation16 + $0x28] sm:$0xff]
        %v2268 = vld [vmem:[#allocation16 + $0x30] sm:$0xff]
        %v2269 = vld [vmem:[#allocation16 + $0x38] sm:$0xff]
        %v2271 = vsel %vm1465, %v2258, 0
        %v2274 = vsel %vm1465, %v2259, 0
        %v2277 = vsel %vm1465, %v2260, 0
        %v2280 = vsel %vm1465, %v2261, 0
        %v2283 = vsel %vm1465, %v2262, 0
        %v2286 = vsel %vm1465, %v2263, 0
        %v2289 = vsel %vm1465, %v2264, 0
        %v2292 = vsel %vm1465, %v2265, 0
        %2294 = vmatprep.subr.mxu0 0.0
        %2295 = vmatpush1.msra.mxu0 0.0
        %2296 = vmatprep.subr.mxu0 0.0
        %2297 = vmatpush1.msra.mxu0 0.0
        %2298 = vmatprep.subr.mxu0 0.0
        %2299 = vmatpush1.msra.mxu0 0.0
        %2300 = vmatprep.subr.mxu0 0.0
        %2301 = vmatpush1.msra.mxu0 0.0
        %2302 = vmatprep.subr.mxu0 0.0
        %2303 = vmatpush1.msra.mxu0 0.0
        %2304 = vmatprep.subr.mxu0 0.0
        %2305 = vmatpush1.msra.mxu0 0.0
        %2306 = vmatprep.subr.mxu0 0.0
        %2307 = vmatpush1.msra.mxu0 0.0
        %2308 = vmatprep.subr.mxu0 0.0
        %2309 = vmatpush1.msra.mxu0 0.0
        %2310 = vmatprep.subr.mxu0 0.0
        %2311 = vmatpush1.msra.mxu0 0.0
        %2312 = vmatprep.subr.mxu0 0.0
        %2313 = vmatpush1.msra.mxu0 0.0
        %2314 = vmatprep.subr.mxu0 0.0
        %2315 = vmatpush1.msra.mxu0 0.0
        %2316 = vmatprep.subr.mxu0 0.0
        %2317 = vmatpush1.msra.mxu0 0.0
        %2318 = vmatprep.subr.mxu0 0.0
        %2319 = vmatpush1.msra.mxu0 %v2269
        %2320 = vmatprep.subr.mxu0 0.0
        %2321 = vmatpush1.msra.mxu0 %v2268
        %2322 = vmatprep.subr.mxu0 0.0
        %2323 = vmatpush1.msra.mxu0 %v2267
        %2324 = vmatprep.subr.mxu0 0.0
        %2325 = vmatpush1.msra.mxu0 %v2266
        %2326 = vmatprep.subr.mxu0 0.0
        %2327 = vmatpush2.msra.mxu0 0.0
        %2328 = vmatprep.subr.mxu0 0.0
        %2329 = vmatpush2.msra.mxu0 0.0
        %2330 = vmatprep.subr.mxu0 0.0
        %2331 = vmatpush2.msra.mxu0 0.0
        %2332 = vmatprep.subr.mxu0 0.0
        %2333 = vmatpush2.msra.mxu0 0.0
        %2334 = vmatprep.subr.mxu0 0.0
        %2335 = vmatpush2.msra.mxu0 0.0
        %2336 = vmatprep.subr.mxu0 0.0
        %2337 = vmatpush2.msra.mxu0 0.0
        %2338 = vmatprep.subr.mxu0 0.0
        %2339 = vmatpush2.msra.mxu0 0.0
        %2340 = vmatprep.subr.mxu0 0.0
        %2341 = vmatpush2.msra.mxu0 0.0
        %2342 = vmatprep.subr.mxu0 0.0
        %2343 = vmatpush2.msra.mxu0 0.0
        %2344 = vmatprep.subr.mxu0 0.0
        %2345 = vmatpush2.msra.mxu0 0.0
        %2346 = vmatprep.subr.mxu0 0.0
        %2347 = vmatpush2.msra.mxu0 0.0
        %2348 = vmatprep.subr.mxu0 0.0
        %2349 = vmatpush2.msra.mxu0 0.0
        %2350 = vmatprep.subr.mxu0 0.0
        %2351 = vmatpush2.msra.mxu0 0.0
        %2352 = vmatprep.subr.mxu0 0.0
        %2353 = vmatpush2.msra.mxu0 0.0
        %2354 = vmatprep.subr.mxu0 0.0
        %2355 = vmatpush2.msra.mxu0 0.0
        %2356 = vmatprep.subr.mxu0 0.0
        %2357 = vmatpush2.msra.mxu0 0.0
        %2358 = vmatprep.mubr.f32.mxu0 0.0
        %2359 = vmatmul.mubr.f32.gmra.mxu0 %v2271
        %v2360 = vpop.f32.mrf.mxu0
        %v2361 = vadd.f32 0.0, %v2360
        %v2362 = vpop.f32.mrf.mxu0
        %2363 = vmatprep.mubr.f32.mxu0 0.0
        %2364 = vmatmul.mubr.f32.gmra.mxu0 %v2274
        %v2365 = vpop.f32.mrf.mxu0
        %v2366 = vadd.f32 0.0, %v2365
        %v2367 = vpop.f32.mrf.mxu0
        %2368 = vmatprep.mubr.f32.mxu0 0.0
        %2369 = vmatmul.mubr.f32.gmra.mxu0 %v2277
        %v2370 = vpop.f32.mrf.mxu0
        %v2371 = vadd.f32 0.0, %v2370
        %v2372 = vpop.f32.mrf.mxu0
        %2373 = vmatprep.mubr.f32.mxu0 0.0
        %2374 = vmatmul.mubr.f32.gmra.mxu0 %v2280
        %v2375 = vpop.f32.mrf.mxu0
        %v2376 = vadd.f32 0.0, %v2375
        %v2377 = vpop.f32.mrf.mxu0
        %2378 = vmatprep.mubr.f32.mxu0 0.0
        %2379 = vmatmul.mubr.f32.gmra.mxu0 %v2283
        %v2380 = vpop.f32.mrf.mxu0
        %v2381 = vadd.f32 0.0, %v2380
        %v2382 = vpop.f32.mrf.mxu0
        %2383 = vmatprep.mubr.f32.mxu0 0.0
        %2384 = vmatmul.mubr.f32.gmra.mxu0 %v2286
        %v2385 = vpop.f32.mrf.mxu0
        %v2386 = vadd.f32 0.0, %v2385
        %v2387 = vpop.f32.mrf.mxu0
        %2388 = vmatprep.mubr.f32.mxu0 0.0
        %2389 = vmatmul.mubr.f32.gmra.mxu0 %v2289
        %v2390 = vpop.f32.mrf.mxu0
        %v2391 = vadd.f32 0.0, %v2390
        %v2392 = vpop.f32.mrf.mxu0
        %2393 = vmatprep.mubr.f32.mxu0 0.0
        %2394 = vmatmul.mubr.f32.gmra.mxu0 %v2292
        %v2395 = vpop.f32.mrf.mxu0
        %v2396 = vadd.f32 0.0, %v2395
        %v2397 = vpop.f32.mrf.mxu0
        %2398 = vdwg.mxu0
        %v2400 = vsel %vm1465, %v1812, 0
        %v2403 = vsel %vm1465, %v1813, 0
        %v2406 = vsel %vm1465, %v1814, 0
        %v2409 = vsel %vm1465, %v1815, 0
        %v2412 = vsel %vm1465, %v1816, 0
        %v2415 = vsel %vm1465, %v1817, 0
        %v2418 = vsel %vm1465, %v1818, 0
        %v2421 = vsel %vm1465, %v1819, 0
        %2423 = vmatprep.subr.mxu0 0.0
        %2424 = vmatpush1.msra.mxu0 0.0
        %2425 = vmatprep.subr.mxu0 0.0
        %2426 = vmatpush1.msra.mxu0 0.0
        %2427 = vmatprep.subr.mxu0 0.0
        %2428 = vmatpush1.msra.mxu0 0.0
        %2429 = vmatprep.subr.mxu0 0.0
        %2430 = vmatpush1.msra.mxu0 0.0
        %2431 = vmatprep.subr.mxu0 0.0
        %2432 = vmatpush1.msra.mxu0 0.0
        %2433 = vmatprep.subr.mxu0 0.0
        %2434 = vmatpush1.msra.mxu0 0.0
        %2435 = vmatprep.subr.mxu0 0.0
        %2436 = vmatpush1.msra.mxu0 0.0
        %2437 = vmatprep.subr.mxu0 0.0
        %2438 = vmatpush1.msra.mxu0 0.0
        %2439 = vmatprep.subr.mxu0 0.0
        %2440 = vmatpush1.msra.mxu0 0.0
        %2441 = vmatprep.subr.mxu0 0.0
        %2442 = vmatpush1.msra.mxu0 0.0
        %2443 = vmatprep.subr.mxu0 0.0
        %2444 = vmatpush1.msra.mxu0 0.0
        %2445 = vmatprep.subr.mxu0 0.0
        %2446 = vmatpush1.msra.mxu0 0.0
        %2447 = vmatprep.subr.mxu0 0.0
        %2448 = vmatpush1.msra.mxu0 %v1823
        %2449 = vmatprep.subr.mxu0 0.0
        %2450 = vmatpush1.msra.mxu0 %v1822
        %2451 = vmatprep.subr.mxu0 0.0
        %2452 = vmatpush1.msra.mxu0 %v1821
        %2453 = vmatprep.subr.mxu0 0.0
        %2454 = vmatpush1.msra.mxu0 %v1820
        %2455 = vmatprep.subr.mxu0 0.0
        %2456 = vmatpush2.msra.mxu0 0.0
        %2457 = vmatprep.subr.mxu0 0.0
        %2458 = vmatpush2.msra.mxu0 0.0
        %2459 = vmatprep.subr.mxu0 0.0
        %2460 = vmatpush2.msra.mxu0 0.0
        %2461 = vmatprep.subr.mxu0 0.0
        %2462 = vmatpush2.msra.mxu0 0.0
        %2463 = vmatprep.subr.mxu0 0.0
        %2464 = vmatpush2.msra.mxu0 0.0
        %2465 = vmatprep.subr.mxu0 0.0
        %2466 = vmatpush2.msra.mxu0 0.0
        %2467 = vmatprep.subr.mxu0 0.0
        %2468 = vmatpush2.msra.mxu0 0.0
        %2469 = vmatprep.subr.mxu0 0.0
        %2470 = vmatpush2.msra.mxu0 0.0
        %2471 = vmatprep.subr.mxu0 0.0
        %2472 = vmatpush2.msra.mxu0 0.0
        %2473 = vmatprep.subr.mxu0 0.0
        %2474 = vmatpush2.msra.mxu0 0.0
        %2475 = vmatprep.subr.mxu0 0.0
        %2476 = vmatpush2.msra.mxu0 0.0
        %2477 = vmatprep.subr.mxu0 0.0
        %2478 = vmatpush2.msra.mxu0 0.0
        %2479 = vmatprep.subr.mxu0 0.0
        %2480 = vmatpush2.msra.mxu0 0.0
        %2481 = vmatprep.subr.mxu0 0.0
        %2482 = vmatpush2.msra.mxu0 0.0
        %2483 = vmatprep.subr.mxu0 0.0
        %2484 = vmatpush2.msra.mxu0 0.0
        %2485 = vmatprep.subr.mxu0 0.0
        %2486 = vmatpush2.msra.mxu0 0.0
        %2487 = vmatprep.mubr.f32.mxu0 0.0
        %2488 = vmatmul.mubr.f32.gmra.mxu0 %v2400
        %v2489 = vpop.f32.mrf.mxu0
        %v2490 = vadd.f32 %v2361, %v2489
        %v2491 = vpop.f32.mrf.mxu0
        %2492 = vmatprep.mubr.f32.mxu0 0.0
        %2493 = vmatmul.mubr.f32.gmra.mxu0 %v2403
        %v2494 = vpop.f32.mrf.mxu0
        %v2495 = vadd.f32 %v2366, %v2494
        %v2496 = vpop.f32.mrf.mxu0
        %2497 = vmatprep.mubr.f32.mxu0 0.0
        %2498 = vmatmul.mubr.f32.gmra.mxu0 %v2406
        %v2499 = vpop.f32.mrf.mxu0
        %v2500 = vadd.f32 %v2371, %v2499
        %v2501 = vpop.f32.mrf.mxu0
        %2502 = vmatprep.mubr.f32.mxu0 0.0
        %2503 = vmatmul.mubr.f32.gmra.mxu0 %v2409
        %v2504 = vpop.f32.mrf.mxu0
        %v2505 = vadd.f32 %v2376, %v2504
        %v2506 = vpop.f32.mrf.mxu0
        %2507 = vmatprep.mubr.f32.mxu0 0.0
        %2508 = vmatmul.mubr.f32.gmra.mxu0 %v2412
        %v2509 = vpop.f32.mrf.mxu0
        %v2510 = vadd.f32 %v2381, %v2509
        %v2511 = vpop.f32.mrf.mxu0
        %2512 = vmatprep.mubr.f32.mxu0 0.0
        %2513 = vmatmul.mubr.f32.gmra.mxu0 %v2415
        %v2514 = vpop.f32.mrf.mxu0
        %v2515 = vadd.f32 %v2386, %v2514
        %v2516 = vpop.f32.mrf.mxu0
        %2517 = vmatprep.mubr.f32.mxu0 0.0
        %2518 = vmatmul.mubr.f32.gmra.mxu0 %v2418
        %v2519 = vpop.f32.mrf.mxu0
        %v2520 = vadd.f32 %v2391, %v2519
        %v2521 = vpop.f32.mrf.mxu0
        %2522 = vmatprep.mubr.f32.mxu0 0.0
        %2523 = vmatmul.mubr.f32.gmra.mxu0 %v2421
        %v2524 = vpop.f32.mrf.mxu0
        %v2525 = vadd.f32 %v2396, %v2524
        %v2526 = vpop.f32.mrf.mxu0
        %2527 = vdwg.mxu0
        %2528 = vrot.lane.b32.xlu0 %v1379, 64
        %v2529 = vpop.permute.xlu0 %2528
        %2530 = vrot.lane.b32.xlu0 %v1384, 64
        %v2531 = vpop.permute.xlu0 %2530
        %2532 = vrot.lane.b32.xlu0 %v1389, 64
        %v2533 = vpop.permute.xlu0 %2532
        %2534 = vrot.lane.b32.xlu0 %v1394, 64
        %v2535 = vpop.permute.xlu0 %2534
        %2536 = vrot.lane.b32.xlu0 %v1399, 64
        %v2537 = vpop.permute.xlu0 %2536
        %2538 = vrot.lane.b32.xlu0 %v1404, 64
        %v2539 = vpop.permute.xlu0 %2538
        %2540 = vrot.lane.b32.xlu0 %v1409, 64
        %v2541 = vpop.permute.xlu0 %2540
        %2542 = vrot.lane.b32.xlu0 %v1414, 64
        %v2543 = vpop.permute.xlu0 %2542
        %2544 = vrot.lane.b32.xlu0 %v1417, 64
        %v2545 = vpop.permute.xlu0 %2544
        %2546 = vrot.lane.b32.xlu0 %v1418, 64
        %v2547 = vpop.permute.xlu0 %2546
        %2548 = vrot.lane.b32.xlu0 %v1419, 64
        %v2549 = vpop.permute.xlu0 %2548
        %2550 = vrot.lane.b32.xlu0 %v1420, 64
        %v2551 = vpop.permute.xlu0 %2550
        %2552 = vrot.lane.b32.xlu0 %v1421, 64
        %v2553 = vpop.permute.xlu0 %2552
        %2554 = vrot.lane.b32.xlu0 %v1422, 64
        %v2555 = vpop.permute.xlu0 %2554
        %2556 = vrot.lane.b32.xlu0 %v1423, 64
        %v2557 = vpop.permute.xlu0 %2556
        %2558 = vrot.lane.b32.xlu0 %v1424, 64
        %v2559 = vpop.permute.xlu0 %2558
        %2560 = vrot.lane.b32.xlu0 %v1425, 64
        %v2561 = vpop.permute.xlu0 %2560
        %2562 = vrot.lane.b32.xlu0 %v1426, 64
        %v2563 = vpop.permute.xlu0 %2562
        %2564 = vrot.lane.b32.xlu0 %v1427, 64
        %v2565 = vpop.permute.xlu0 %2564
        %2566 = vrot.lane.b32.xlu0 %v1428, 64
        %v2567 = vpop.permute.xlu0 %2566
        %2568 = vrot.lane.b32.xlu0 %v1429, 64
        %v2569 = vpop.permute.xlu0 %2568
        %2570 = vrot.lane.b32.xlu0 %v1430, 64
        %v2571 = vpop.permute.xlu0 %2570
        %2572 = vrot.lane.b32.xlu0 %v1431, 64
        %v2573 = vpop.permute.xlu0 %2572
        %2574 = vrot.lane.b32.xlu0 %v1432, 64
        %v2575 = vpop.permute.xlu0 %2574
        %v2576 = vsel %vm1465, %v2529, 0
        %v2578 = vsel %vm1465, %v2531, 0
        %v2580 = vsel %vm1465, %v2533, 0
        %v2582 = vsel %vm1465, %v2535, 0
        %v2584 = vsel %vm1465, %v2537, 0
        %v2586 = vsel %vm1465, %v2539, 0
        %v2588 = vsel %vm1465, %v2541, 0
        %v2590 = vsel %vm1465, %v2543, 0
        %v2592 = vsel %vm1465, %v2545, 0
        %v2594 = vsel %vm1465, %v2547, 0
        %v2596 = vsel %vm1465, %v2549, 0
        %v2598 = vsel %vm1465, %v2551, 0
        %v2600 = vsel %vm1465, %v2553, 0
        %v2602 = vsel %vm1465, %v2555, 0
        %v2604 = vsel %vm1465, %v2557, 0
        %v2606 = vsel %vm1465, %v2559, 0
        %v2608 = vsel %vm1465, %v2561, 0
        %v2610 = vsel %vm1465, %v2563, 0
        %v2612 = vsel %vm1465, %v2565, 0
        %v2614 = vsel %vm1465, %v2567, 0
        %v2616 = vsel %vm1465, %v2569, 0
        %v2618 = vsel %vm1465, %v2571, 0
        %v2620 = vsel %vm1465, %v2573, 0
        %v2622 = vsel %vm1465, %v2575, 0
        %2624 = vmatprep.subr.mxu0 0.0
        %2625 = vmatpush1.xpose.msra.mxu0 %v2622
        %2626 = vmatprep.subr.mxu0 0.0
        %2627 = vmatpush1.xpose.msra.mxu0 %v2620
        %2628 = vmatprep.subr.mxu0 0.0
        %2629 = vmatpush1.xpose.msra.mxu0 %v2618
        %2630 = vmatprep.subr.mxu0 0.0
        %2631 = vmatpush1.xpose.msra.mxu0 %v2616
        %2632 = vmatprep.subr.mxu0 0.0
        %2633 = vmatpush1.xpose.msra.mxu0 %v2614
        %2634 = vmatprep.subr.mxu0 0.0
        %2635 = vmatpush1.xpose.msra.mxu0 %v2612
        %2636 = vmatprep.subr.mxu0 0.0
        %2637 = vmatpush1.xpose.msra.mxu0 %v2610
        %2638 = vmatprep.subr.mxu0 0.0
        %2639 = vmatpush1.xpose.msra.mxu0 %v2608
        %2640 = vmatprep.subr.mxu0 0.0
        %2641 = vmatpush1.xpose.msra.mxu0 %v2606
        %2642 = vmatprep.subr.mxu0 0.0
        %2643 = vmatpush1.xpose.msra.mxu0 %v2604
        %2644 = vmatprep.subr.mxu0 0.0
        %2645 = vmatpush1.xpose.msra.mxu0 %v2602
        %2646 = vmatprep.subr.mxu0 0.0
        %2647 = vmatpush1.xpose.msra.mxu0 %v2600
        %2648 = vmatprep.subr.mxu0 0.0
        %2649 = vmatpush1.xpose.msra.mxu0 %v2598
        %2650 = vmatprep.subr.mxu0 0.0
        %2651 = vmatpush1.xpose.msra.mxu0 %v2596
        %2652 = vmatprep.subr.mxu0 0.0
        %2653 = vmatpush1.xpose.msra.mxu0 %v2594
        %2654 = vmatprep.subr.mxu0 0.0
        %2655 = vmatpush1.xpose.msra.mxu0 %v2592
        %2656 = vmatprep.subr.mxu0 0.0
        %2657 = vmatpush2.xpose.msra.mxu0 0.0
        %2658 = vmatprep.subr.mxu0 0.0
        %2659 = vmatpush2.xpose.msra.mxu0 0.0
        %2660 = vmatprep.subr.mxu0 0.0
        %2661 = vmatpush2.xpose.msra.mxu0 0.0
        %2662 = vmatprep.subr.mxu0 0.0
        %2663 = vmatpush2.xpose.msra.mxu0 0.0
        %2664 = vmatprep.subr.mxu0 0.0
        %2665 = vmatpush2.xpose.msra.mxu0 0.0
        %2666 = vmatprep.subr.mxu0 0.0
        %2667 = vmatpush2.xpose.msra.mxu0 0.0
        %2668 = vmatprep.subr.mxu0 0.0
        %2669 = vmatpush2.xpose.msra.mxu0 0.0
        %2670 = vmatprep.subr.mxu0 0.0
        %2671 = vmatpush2.xpose.msra.mxu0 0.0
        %2672 = vmatprep.subr.mxu0 0.0
        %2673 = vmatpush2.xpose.msra.mxu0 0.0
        %2674 = vmatprep.subr.mxu0 0.0
        %2675 = vmatpush2.xpose.msra.mxu0 0.0
        %2676 = vmatprep.subr.mxu0 0.0
        %2677 = vmatpush2.xpose.msra.mxu0 0.0
        %2678 = vmatprep.subr.mxu0 0.0
        %2679 = vmatpush2.xpose.msra.mxu0 0.0
        %2680 = vmatprep.subr.mxu0 0.0
        %2681 = vmatpush2.xpose.msra.mxu0 0.0
        %2682 = vmatprep.subr.mxu0 0.0
        %2683 = vmatpush2.xpose.msra.mxu0 0.0
        %2684 = vmatprep.subr.mxu0 0.0
        %2685 = vmatpush2.xpose.msra.mxu0 0.0
        %2686 = vmatprep.subr.mxu0 0.0
        %2687 = vmatpush2.xpose.msra.mxu0 0.0
        %2688 = vmatprep.mubr.f32.mxu0 0.0
        %2689 = vmatmul.mubr.f32.gmra.mxu0 %v2576
        %v2690 = vpop.f32.mrf.mxu0
        %v2691 = vadd.f32 %v1457, %v2690
        %v2692 = vpop.f32.mrf.mxu0
        %2693 = vmatprep.mubr.f32.mxu0 0.0
        %2694 = vmatmul.mubr.f32.gmra.mxu0 %v2578
        %v2695 = vpop.f32.mrf.mxu0
        %v2696 = vadd.f32 %v1458, %v2695
        %v2697 = vpop.f32.mrf.mxu0
        %2698 = vmatprep.mubr.f32.mxu0 0.0
        %2699 = vmatmul.mubr.f32.gmra.mxu0 %v2580
        %v2700 = vpop.f32.mrf.mxu0
        %v2701 = vadd.f32 %v1459, %v2700
        %v2702 = vpop.f32.mrf.mxu0
        %2703 = vmatprep.mubr.f32.mxu0 0.0
        %2704 = vmatmul.mubr.f32.gmra.mxu0 %v2582
        %v2705 = vpop.f32.mrf.mxu0
        %v2706 = vadd.f32 %v1460, %v2705
        %v2707 = vpop.f32.mrf.mxu0
        %2708 = vmatprep.mubr.f32.mxu0 0.0
        %2709 = vmatmul.mubr.f32.gmra.mxu0 %v2584
        %v2710 = vpop.f32.mrf.mxu0
        %v2711 = vadd.f32 %v1461, %v2710
        %v2712 = vpop.f32.mrf.mxu0
        %2713 = vmatprep.mubr.f32.mxu0 0.0
        %2714 = vmatmul.mubr.f32.gmra.mxu0 %v2586
        %v2715 = vpop.f32.mrf.mxu0
        %v2716 = vadd.f32 %v1462, %v2715
        %v2717 = vpop.f32.mrf.mxu0
        %2718 = vmatprep.mubr.f32.mxu0 0.0
        %2719 = vmatmul.mubr.f32.gmra.mxu0 %v2588
        %v2720 = vpop.f32.mrf.mxu0
        %v2721 = vadd.f32 %v1463, %v2720
        %v2722 = vpop.f32.mrf.mxu0
        %2723 = vmatprep.mubr.f32.mxu0 0.0
        %2724 = vmatmul.mubr.f32.gmra.mxu0 %v2590
        %v2725 = vpop.f32.mrf.mxu0
        %v2726 = vadd.f32 %v1464, %v2725
        %v2727 = vpop.f32.mrf.mxu0
        %2728 = vdwg.mxu0
        %2729 = vmax.xlane.f32.xlu0 %v2691
        %v2730 = vpop.xlane.xlu0 %2729
        %2731 = vmax.xlane.f32.xlu0 %v2696
        %v2732 = vpop.xlane.xlu0 %2731
        %2733 = vmax.xlane.f32.xlu0 %v2701
        %v2734 = vpop.xlane.xlu0 %2733
        %2735 = vmax.xlane.f32.xlu0 %v2706
        %v2736 = vpop.xlane.xlu0 %2735
        %2737 = vmax.xlane.f32.xlu0 %v2711
        %v2738 = vpop.xlane.xlu0 %2737
        %2739 = vmax.xlane.f32.xlu0 %v2716
        %v2740 = vpop.xlane.xlu0 %2739
        %2741 = vmax.xlane.f32.xlu0 %v2721
        %v2742 = vpop.xlane.xlu0 %2741
        %2743 = vmax.xlane.f32.xlu0 %v2726
        %v2744 = vpop.xlane.xlu0 %2743
        %v2745 = vsub.f32 %v2691, %v2730
        %v2746 = vsub.f32 %v2696, %v2732
        %v2747 = vsub.f32 %v2701, %v2734
        %v2748 = vsub.f32 %v2706, %v2736
        %v2749 = vsub.f32 %v2711, %v2738
        %v2750 = vsub.f32 %v2716, %v2740
        %v2751 = vsub.f32 %v2721, %v2742
        %v2752 = vsub.f32 %v2726, %v2744
        %v2753 = vmul.f32 %v2745, 1.442695
        %v2754 = vpow.pop %v2753
        %v2755 = vmul.f32 %v2746, 1.442695
        %v2756 = vpow.pop %v2755
        %v2757 = vmul.f32 %v2747, 1.442695
        %v2758 = vpow.pop %v2757
        %v2759 = vmul.f32 %v2748, 1.442695
        %v2760 = vpow.pop %v2759
        %v2761 = vmul.f32 %v2749, 1.442695
        %v2762 = vpow.pop %v2761
        %v2763 = vmul.f32 %v2750, 1.442695
        %v2764 = vpow.pop %v2763
        %v2765 = vmul.f32 %v2751, 1.442695
        %v2766 = vpow.pop %v2765
        %v2767 = vmul.f32 %v2752, 1.442695
        %v2768 = vpow.pop %v2767
        %2769 = vadd.xlane.f32.xlu0 %v2754
        %v2770 = vpop.xlane.xlu0 %2769
        %2771 = vadd.xlane.f32.xlu0 %v2756
        %v2772 = vpop.xlane.xlu0 %2771
        %2773 = vadd.xlane.f32.xlu0 %v2758
        %v2774 = vpop.xlane.xlu0 %2773
        %2775 = vadd.xlane.f32.xlu0 %v2760
        %v2776 = vpop.xlane.xlu0 %2775
        %2777 = vadd.xlane.f32.xlu0 %v2762
        %v2778 = vpop.xlane.xlu0 %2777
        %2779 = vadd.xlane.f32.xlu0 %v2764
        %v2780 = vpop.xlane.xlu0 %2779
        %2781 = vadd.xlane.f32.xlu0 %v2766
        %v2782 = vpop.xlane.xlu0 %2781
        %2783 = vadd.xlane.f32.xlu0 %v2768
        %v2784 = vpop.xlane.xlu0 %2783
        %v2785 = vrcp.pop %v2770
        %v2786 = vrcp.pop %v2772
        %v2787 = vrcp.pop %v2774
        %v2788 = vrcp.pop %v2776
        %v2789 = vrcp.pop %v2778
        %v2790 = vrcp.pop %v2780
        %v2791 = vrcp.pop %v2782
        %v2792 = vrcp.pop %v2784
        %2793 = vrot.lane.b32.xlu0 %v1433, 64
        %v2794 = vpop.permute.xlu0 %2793
        %2795 = vrot.lane.b32.xlu0 %v1434, 64
        %v2796 = vpop.permute.xlu0 %2795
        %2797 = vrot.lane.b32.xlu0 %v1435, 64
        %v2798 = vpop.permute.xlu0 %2797
        %2799 = vrot.lane.b32.xlu0 %v1436, 64
        %v2800 = vpop.permute.xlu0 %2799
        %2801 = vrot.lane.b32.xlu0 %v1437, 64
        %v2802 = vpop.permute.xlu0 %2801
        %2803 = vrot.lane.b32.xlu0 %v1438, 64
        %v2804 = vpop.permute.xlu0 %2803
        %2805 = vrot.lane.b32.xlu0 %v1439, 64
        %v2806 = vpop.permute.xlu0 %2805
        %2807 = vrot.lane.b32.xlu0 %v1440, 64
        %v2808 = vpop.permute.xlu0 %2807
        %2809 = vrot.lane.b32.xlu0 %v1441, 64
        %v2810 = vpop.permute.xlu0 %2809
        %2811 = vrot.lane.b32.xlu0 %v1442, 64
        %v2812 = vpop.permute.xlu0 %2811
        %2813 = vrot.lane.b32.xlu0 %v1443, 64
        %v2814 = vpop.permute.xlu0 %2813
        %2815 = vrot.lane.b32.xlu0 %v1444, 64
        %v2816 = vpop.permute.xlu0 %2815
        %2817 = vrot.lane.b32.xlu0 %v1445, 64
        %v2818 = vpop.permute.xlu0 %2817
        %2819 = vrot.lane.b32.xlu0 %v1446, 64
        %v2820 = vpop.permute.xlu0 %2819
        %2821 = vrot.lane.b32.xlu0 %v1447, 64
        %v2822 = vpop.permute.xlu0 %2821
        %2823 = vrot.lane.b32.xlu0 %v1448, 64
        %v2824 = vpop.permute.xlu0 %2823
        %2841 = vmatprep.subr.mxu0 0.0
        %2842 = vmatpush1.msra.mxu0 %v2824
        %2843 = vmatprep.subr.mxu0 0.0
        %2844 = vmatpush1.msra.mxu0 %v2822
        %2845 = vmatprep.subr.mxu0 0.0
        %2846 = vmatpush1.msra.mxu0 %v2820
        %2847 = vmatprep.subr.mxu0 0.0
        %2848 = vmatpush1.msra.mxu0 %v2818
        %2849 = vmatprep.subr.mxu0 0.0
        %2850 = vmatpush1.msra.mxu0 %v2816
        %2851 = vmatprep.subr.mxu0 0.0
        %2852 = vmatpush1.msra.mxu0 %v2814
        %2853 = vmatprep.subr.mxu0 0.0
        %2854 = vmatpush1.msra.mxu0 %v2812
        %2855 = vmatprep.subr.mxu0 0.0
        %2856 = vmatpush1.msra.mxu0 %v2810
        %2857 = vmatprep.subr.mxu0 0.0
        %2858 = vmatpush1.msra.mxu0 %v2808
        %2859 = vmatprep.subr.mxu0 0.0
        %2860 = vmatpush1.msra.mxu0 %v2806
        %2861 = vmatprep.subr.mxu0 0.0
        %2862 = vmatpush1.msra.mxu0 %v2804
        %2863 = vmatprep.subr.mxu0 0.0
        %2864 = vmatpush1.msra.mxu0 %v2802
        %2865 = vmatprep.subr.mxu0 0.0
        %2866 = vmatpush1.msra.mxu0 %v2800
        %2867 = vmatprep.subr.mxu0 0.0
        %2868 = vmatpush1.msra.mxu0 %v2798
        %2869 = vmatprep.subr.mxu0 0.0
        %2870 = vmatpush1.msra.mxu0 %v2796
        %2871 = vmatprep.subr.mxu0 0.0
        %2872 = vmatpush1.msra.mxu0 %v2794
        %2873 = vmatprep.subr.mxu0 0.0
        %2874 = vmatpush2.msra.mxu0 0.0
        %2875 = vmatprep.subr.mxu0 0.0
        %2876 = vmatpush2.msra.mxu0 0.0
        %2877 = vmatprep.subr.mxu0 0.0
        %2878 = vmatpush2.msra.mxu0 0.0
        %2879 = vmatprep.subr.mxu0 0.0
        %2880 = vmatpush2.msra.mxu0 0.0
        %2881 = vmatprep.subr.mxu0 0.0
        %2882 = vmatpush2.msra.mxu0 0.0
        %2883 = vmatprep.subr.mxu0 0.0
        %2884 = vmatpush2.msra.mxu0 0.0
        %2885 = vmatprep.subr.mxu0 0.0
        %2886 = vmatpush2.msra.mxu0 0.0
        %2887 = vmatprep.subr.mxu0 0.0
        %2888 = vmatpush2.msra.mxu0 0.0
        %2889 = vmatprep.subr.mxu0 0.0
        %2890 = vmatpush2.msra.mxu0 0.0
        %2891 = vmatprep.subr.mxu0 0.0
        %2892 = vmatpush2.msra.mxu0 0.0
        %2893 = vmatprep.subr.mxu0 0.0
        %2894 = vmatpush2.msra.mxu0 0.0
        %2895 = vmatprep.subr.mxu0 0.0
        %2896 = vmatpush2.msra.mxu0 0.0
        %2897 = vmatprep.subr.mxu0 0.0
        %2898 = vmatpush2.msra.mxu0 0.0
        %2899 = vmatprep.subr.mxu0 0.0
        %2900 = vmatpush2.msra.mxu0 0.0
        %2901 = vmatprep.subr.mxu0 0.0
        %2902 = vmatpush2.msra.mxu0 0.0
        %2903 = vmatprep.subr.mxu0 0.0
        %2904 = vmatpush2.msra.mxu0 0.0
        %2905 = vmatprep.mubr.f32.mxu0 0.0
        %2906 = vmatmul.mubr.f32.gmra.mxu0 %v2754
        %v2907 = vpop.f32.mrf.mxu0
        %v2908 = vadd.f32 0.0, %v2907
        %v2909 = vpop.f32.mrf.mxu0
        %2910 = vmatprep.mubr.f32.mxu0 0.0
        %2911 = vmatmul.mubr.f32.gmra.mxu0 %v2756
        %v2912 = vpop.f32.mrf.mxu0
        %v2913 = vadd.f32 0.0, %v2912
        %v2914 = vpop.f32.mrf.mxu0
        %2915 = vmatprep.mubr.f32.mxu0 0.0
        %2916 = vmatmul.mubr.f32.gmra.mxu0 %v2758
        %v2917 = vpop.f32.mrf.mxu0
        %v2918 = vadd.f32 0.0, %v2917
        %v2919 = vpop.f32.mrf.mxu0
        %2920 = vmatprep.mubr.f32.mxu0 0.0
        %2921 = vmatmul.mubr.f32.gmra.mxu0 %v2760
        %v2922 = vpop.f32.mrf.mxu0
        %v2923 = vadd.f32 0.0, %v2922
        %v2924 = vpop.f32.mrf.mxu0
        %2925 = vmatprep.mubr.f32.mxu0 0.0
        %2926 = vmatmul.mubr.f32.gmra.mxu0 %v2762
        %v2927 = vpop.f32.mrf.mxu0
        %v2928 = vadd.f32 0.0, %v2927
        %v2929 = vpop.f32.mrf.mxu0
        %2930 = vmatprep.mubr.f32.mxu0 0.0
        %2931 = vmatmul.mubr.f32.gmra.mxu0 %v2764
        %v2932 = vpop.f32.mrf.mxu0
        %v2933 = vadd.f32 0.0, %v2932
        %v2934 = vpop.f32.mrf.mxu0
        %2935 = vmatprep.mubr.f32.mxu0 0.0
        %2936 = vmatmul.mubr.f32.gmra.mxu0 %v2766
        %v2937 = vpop.f32.mrf.mxu0
        %v2938 = vadd.f32 0.0, %v2937
        %v2939 = vpop.f32.mrf.mxu0
        %2940 = vmatprep.mubr.f32.mxu0 0.0
        %2941 = vmatmul.mubr.f32.gmra.mxu0 %v2768
        %v2942 = vpop.f32.mrf.mxu0
        %v2943 = vadd.f32 0.0, %v2942
        %v2944 = vpop.f32.mrf.mxu0
        %2945 = vdwg.mxu0
        %v2946 = vmul.f32 %v2908, %v2785
        %v2947 = vmul.f32 %v2913, %v2786
        %v2948 = vmul.f32 %v2918, %v2787
        %v2949 = vmul.f32 %v2923, %v2788
        %v2950 = vmul.f32 %v2928, %v2789
        %v2951 = vmul.f32 %v2933, %v2790
        %v2952 = vmul.f32 %v2938, %v2791
        %v2953 = vmul.f32 %v2943, %v2792
        %v2954 = vld [vmem:[#allocation16 + $0x40] sm:$0xff]
        %v2955 = vld [vmem:[#allocation16 + $0x48] sm:$0xff]
        %v2956 = vld [vmem:[#allocation16 + $0x50] sm:$0xff]
        %v2957 = vld [vmem:[#allocation16 + $0x58] sm:$0xff]
        %v2959 = vsel %vm1465, %v2946, 0
        %v2962 = vsel %vm1465, %v2947, 0
        %v2965 = vsel %vm1465, %v2948, 0
        %v2968 = vsel %vm1465, %v2949, 0
        %v2971 = vsel %vm1465, %v2950, 0
        %v2974 = vsel %vm1465, %v2951, 0
        %v2977 = vsel %vm1465, %v2952, 0
        %v2980 = vsel %vm1465, %v2953, 0
        %2982 = vmatprep.subr.mxu0 0.0
        %2983 = vmatpush1.msra.mxu0 0.0
        %2984 = vmatprep.subr.mxu0 0.0
        %2985 = vmatpush1.msra.mxu0 0.0
        %2986 = vmatprep.subr.mxu0 0.0
        %2987 = vmatpush1.msra.mxu0 0.0
        %2988 = vmatprep.subr.mxu0 0.0
        %2989 = vmatpush1.msra.mxu0 0.0
        %2990 = vmatprep.subr.mxu0 0.0
        %2991 = vmatpush1.msra.mxu0 0.0
        %2992 = vmatprep.subr.mxu0 0.0
        %2993 = vmatpush1.msra.mxu0 0.0
        %2994 = vmatprep.subr.mxu0 0.0
        %2995 = vmatpush1.msra.mxu0 0.0
        %2996 = vmatprep.subr.mxu0 0.0
        %2997 = vmatpush1.msra.mxu0 0.0
        %2998 = vmatprep.subr.mxu0 0.0
        %2999 = vmatpush1.msra.mxu0 0.0
        %3000 = vmatprep.subr.mxu0 0.0
        %3001 = vmatpush1.msra.mxu0 0.0
        %3002 = vmatprep.subr.mxu0 0.0
        %3003 = vmatpush1.msra.mxu0 0.0
        %3004 = vmatprep.subr.mxu0 0.0
        %3005 = vmatpush1.msra.mxu0 0.0
        %3006 = vmatprep.subr.mxu0 0.0
        %3007 = vmatpush1.msra.mxu0 %v2957
        %3008 = vmatprep.subr.mxu0 0.0
        %3009 = vmatpush1.msra.mxu0 %v2956
        %3010 = vmatprep.subr.mxu0 0.0
        %3011 = vmatpush1.msra.mxu0 %v2955
        %3012 = vmatprep.subr.mxu0 0.0
        %3013 = vmatpush1.msra.mxu0 %v2954
        %3014 = vmatprep.subr.mxu0 0.0
        %3015 = vmatpush2.msra.mxu0 0.0
        %3016 = vmatprep.subr.mxu0 0.0
        %3017 = vmatpush2.msra.mxu0 0.0
        %3018 = vmatprep.subr.mxu0 0.0
        %3019 = vmatpush2.msra.mxu0 0.0
        %3020 = vmatprep.subr.mxu0 0.0
        %3021 = vmatpush2.msra.mxu0 0.0
        %3022 = vmatprep.subr.mxu0 0.0
        %3023 = vmatpush2.msra.mxu0 0.0
        %3024 = vmatprep.subr.mxu0 0.0
        %3025 = vmatpush2.msra.mxu0 0.0
        %3026 = vmatprep.subr.mxu0 0.0
        %3027 = vmatpush2.msra.mxu0 0.0
        %3028 = vmatprep.subr.mxu0 0.0
        %3029 = vmatpush2.msra.mxu0 0.0
        %3030 = vmatprep.subr.mxu0 0.0
        %3031 = vmatpush2.msra.mxu0 0.0
        %3032 = vmatprep.subr.mxu0 0.0
        %3033 = vmatpush2.msra.mxu0 0.0
        %3034 = vmatprep.subr.mxu0 0.0
        %3035 = vmatpush2.msra.mxu0 0.0
        %3036 = vmatprep.subr.mxu0 0.0
        %3037 = vmatpush2.msra.mxu0 0.0
        %3038 = vmatprep.subr.mxu0 0.0
        %3039 = vmatpush2.msra.mxu0 0.0
        %3040 = vmatprep.subr.mxu0 0.0
        %3041 = vmatpush2.msra.mxu0 0.0
        %3042 = vmatprep.subr.mxu0 0.0
        %3043 = vmatpush2.msra.mxu0 0.0
        %3044 = vmatprep.subr.mxu0 0.0
        %3045 = vmatpush2.msra.mxu0 0.0
        %3046 = vmatprep.mubr.f32.mxu0 0.0
        %3047 = vmatmul.mubr.f32.gmra.mxu0 %v2959
        %v3048 = vpop.f32.mrf.mxu0
        %v3049 = vadd.f32 0.0, %v3048
        %v3050 = vpop.f32.mrf.mxu0
        %3051 = vmatprep.mubr.f32.mxu0 0.0
        %3052 = vmatmul.mubr.f32.gmra.mxu0 %v2962
        %v3053 = vpop.f32.mrf.mxu0
        %v3054 = vadd.f32 0.0, %v3053
        %v3055 = vpop.f32.mrf.mxu0
        %3056 = vmatprep.mubr.f32.mxu0 0.0
        %3057 = vmatmul.mubr.f32.gmra.mxu0 %v2965
        %v3058 = vpop.f32.mrf.mxu0
        %v3059 = vadd.f32 0.0, %v3058
        %v3060 = vpop.f32.mrf.mxu0
        %3061 = vmatprep.mubr.f32.mxu0 0.0
        %3062 = vmatmul.mubr.f32.gmra.mxu0 %v2968
        %v3063 = vpop.f32.mrf.mxu0
        %v3064 = vadd.f32 0.0, %v3063
        %v3065 = vpop.f32.mrf.mxu0
        %3066 = vmatprep.mubr.f32.mxu0 0.0
        %3067 = vmatmul.mubr.f32.gmra.mxu0 %v2971
        %v3068 = vpop.f32.mrf.mxu0
        %v3069 = vadd.f32 0.0, %v3068
        %v3070 = vpop.f32.mrf.mxu0
        %3071 = vmatprep.mubr.f32.mxu0 0.0
        %3072 = vmatmul.mubr.f32.gmra.mxu0 %v2974
        %v3073 = vpop.f32.mrf.mxu0
        %v3074 = vadd.f32 0.0, %v3073
        %v3075 = vpop.f32.mrf.mxu0
        %3076 = vmatprep.mubr.f32.mxu0 0.0
        %3077 = vmatmul.mubr.f32.gmra.mxu0 %v2977
        %v3078 = vpop.f32.mrf.mxu0
        %v3079 = vadd.f32 0.0, %v3078
        %v3080 = vpop.f32.mrf.mxu0
        %3081 = vmatprep.mubr.f32.mxu0 0.0
        %3082 = vmatmul.mubr.f32.gmra.mxu0 %v2980
        %v3083 = vpop.f32.mrf.mxu0
        %v3084 = vadd.f32 0.0, %v3083
        %v3085 = vpop.f32.mrf.mxu0
        %3086 = vdwg.mxu0
        %v3087 = vadd.f32 %v2490, %v3049
        %v3088 = vadd.f32 %v2495, %v3054
        %v3089 = vadd.f32 %v2500, %v3059
        %v3090 = vadd.f32 %v2505, %v3064
        %v3091 = vadd.f32 %v2510, %v3069
        %v3092 = vadd.f32 %v2515, %v3074
        %v3093 = vadd.f32 %v2520, %v3079
        %v3094 = vadd.f32 %v2525, %v3084
        %3095 = vrot.lane.b32.xlu0 %v1379, 32
        %v3096 = vpop.permute.xlu0 %3095
        %3097 = vrot.lane.b32.xlu0 %v1384, 32
        %v3098 = vpop.permute.xlu0 %3097
        %3099 = vrot.lane.b32.xlu0 %v1389, 32
        %v3100 = vpop.permute.xlu0 %3099
        %3101 = vrot.lane.b32.xlu0 %v1394, 32
        %v3102 = vpop.permute.xlu0 %3101
        %3103 = vrot.lane.b32.xlu0 %v1399, 32
        %v3104 = vpop.permute.xlu0 %3103
        %3105 = vrot.lane.b32.xlu0 %v1404, 32
        %v3106 = vpop.permute.xlu0 %3105
        %3107 = vrot.lane.b32.xlu0 %v1409, 32
        %v3108 = vpop.permute.xlu0 %3107
        %3109 = vrot.lane.b32.xlu0 %v1414, 32
        %v3110 = vpop.permute.xlu0 %3109
        %3111 = vrot.lane.b32.xlu0 %v1417, 32
        %v3112 = vpop.permute.xlu0 %3111
        %3113 = vrot.lane.b32.xlu0 %v1418, 32
        %v3114 = vpop.permute.xlu0 %3113
        %3115 = vrot.lane.b32.xlu0 %v1419, 32
        %v3116 = vpop.permute.xlu0 %3115
        %3117 = vrot.lane.b32.xlu0 %v1420, 32
        %v3118 = vpop.permute.xlu0 %3117
        %3119 = vrot.lane.b32.xlu0 %v1421, 32
        %v3120 = vpop.permute.xlu0 %3119
        %3121 = vrot.lane.b32.xlu0 %v1422, 32
        %v3122 = vpop.permute.xlu0 %3121
        %3123 = vrot.lane.b32.xlu0 %v1423, 32
        %v3124 = vpop.permute.xlu0 %3123
        %3125 = vrot.lane.b32.xlu0 %v1424, 32
        %v3126 = vpop.permute.xlu0 %3125
        %3127 = vrot.lane.b32.xlu0 %v1425, 32
        %v3128 = vpop.permute.xlu0 %3127
        %3129 = vrot.lane.b32.xlu0 %v1426, 32
        %v3130 = vpop.permute.xlu0 %3129
        %3131 = vrot.lane.b32.xlu0 %v1427, 32
        %v3132 = vpop.permute.xlu0 %3131
        %3133 = vrot.lane.b32.xlu0 %v1428, 32
        %v3134 = vpop.permute.xlu0 %3133
        %3135 = vrot.lane.b32.xlu0 %v1429, 32
        %v3136 = vpop.permute.xlu0 %3135
        %3137 = vrot.lane.b32.xlu0 %v1430, 32
        %v3138 = vpop.permute.xlu0 %3137
        %3139 = vrot.lane.b32.xlu0 %v1431, 32
        %v3140 = vpop.permute.xlu0 %3139
        %3141 = vrot.lane.b32.xlu0 %v1432, 32
        %v3142 = vpop.permute.xlu0 %3141
        %v3143 = vsel %vm1465, %v3096, 0
        %v3145 = vsel %vm1465, %v3098, 0
        %v3147 = vsel %vm1465, %v3100, 0
        %v3149 = vsel %vm1465, %v3102, 0
        %v3151 = vsel %vm1465, %v3104, 0
        %v3153 = vsel %vm1465, %v3106, 0
        %v3155 = vsel %vm1465, %v3108, 0
        %v3157 = vsel %vm1465, %v3110, 0
        %v3159 = vsel %vm1465, %v3112, 0
        %v3161 = vsel %vm1465, %v3114, 0
        %v3163 = vsel %vm1465, %v3116, 0
        %v3165 = vsel %vm1465, %v3118, 0
        %v3167 = vsel %vm1465, %v3120, 0
        %v3169 = vsel %vm1465, %v3122, 0
        %v3171 = vsel %vm1465, %v3124, 0
        %v3173 = vsel %vm1465, %v3126, 0
        %v3175 = vsel %vm1465, %v3128, 0
        %v3177 = vsel %vm1465, %v3130, 0
        %v3179 = vsel %vm1465, %v3132, 0
        %v3181 = vsel %vm1465, %v3134, 0
        %v3183 = vsel %vm1465, %v3136, 0
        %v3185 = vsel %vm1465, %v3138, 0
        %v3187 = vsel %vm1465, %v3140, 0
        %v3189 = vsel %vm1465, %v3142, 0
        %3191 = vmatprep.subr.mxu0 0.0
        %3192 = vmatpush1.xpose.msra.mxu0 %v3189
        %3193 = vmatprep.subr.mxu0 0.0
        %3194 = vmatpush1.xpose.msra.mxu0 %v3187
        %3195 = vmatprep.subr.mxu0 0.0
        %3196 = vmatpush1.xpose.msra.mxu0 %v3185
        %3197 = vmatprep.subr.mxu0 0.0
        %3198 = vmatpush1.xpose.msra.mxu0 %v3183
        %3199 = vmatprep.subr.mxu0 0.0
        %3200 = vmatpush1.xpose.msra.mxu0 %v3181
        %3201 = vmatprep.subr.mxu0 0.0
        %3202 = vmatpush1.xpose.msra.mxu0 %v3179
        %3203 = vmatprep.subr.mxu0 0.0
        %3204 = vmatpush1.xpose.msra.mxu0 %v3177
        %3205 = vmatprep.subr.mxu0 0.0
        %3206 = vmatpush1.xpose.msra.mxu0 %v3175
        %3207 = vmatprep.subr.mxu0 0.0
        %3208 = vmatpush1.xpose.msra.mxu0 %v3173
        %3209 = vmatprep.subr.mxu0 0.0
        %3210 = vmatpush1.xpose.msra.mxu0 %v3171
        %3211 = vmatprep.subr.mxu0 0.0
        %3212 = vmatpush1.xpose.msra.mxu0 %v3169
        %3213 = vmatprep.subr.mxu0 0.0
        %3214 = vmatpush1.xpose.msra.mxu0 %v3167
        %3215 = vmatprep.subr.mxu0 0.0
        %3216 = vmatpush1.xpose.msra.mxu0 %v3165
        %3217 = vmatprep.subr.mxu0 0.0
        %3218 = vmatpush1.xpose.msra.mxu0 %v3163
        %3219 = vmatprep.subr.mxu0 0.0
        %3220 = vmatpush1.xpose.msra.mxu0 %v3161
        %3221 = vmatprep.subr.mxu0 0.0
        %3222 = vmatpush1.xpose.msra.mxu0 %v3159
        %3223 = vmatprep.subr.mxu0 0.0
        %3224 = vmatpush2.xpose.msra.mxu0 0.0
        %3225 = vmatprep.subr.mxu0 0.0
        %3226 = vmatpush2.xpose.msra.mxu0 0.0
        %3227 = vmatprep.subr.mxu0 0.0
        %3228 = vmatpush2.xpose.msra.mxu0 0.0
        %3229 = vmatprep.subr.mxu0 0.0
        %3230 = vmatpush2.xpose.msra.mxu0 0.0
        %3231 = vmatprep.subr.mxu0 0.0
        %3232 = vmatpush2.xpose.msra.mxu0 0.0
        %3233 = vmatprep.subr.mxu0 0.0
        %3234 = vmatpush2.xpose.msra.mxu0 0.0
        %3235 = vmatprep.subr.mxu0 0.0
        %3236 = vmatpush2.xpose.msra.mxu0 0.0
        %3237 = vmatprep.subr.mxu0 0.0
        %3238 = vmatpush2.xpose.msra.mxu0 0.0
        %3239 = vmatprep.subr.mxu0 0.0
        %3240 = vmatpush2.xpose.msra.mxu0 0.0
        %3241 = vmatprep.subr.mxu0 0.0
        %3242 = vmatpush2.xpose.msra.mxu0 0.0
        %3243 = vmatprep.subr.mxu0 0.0
        %3244 = vmatpush2.xpose.msra.mxu0 0.0
        %3245 = vmatprep.subr.mxu0 0.0
        %3246 = vmatpush2.xpose.msra.mxu0 0.0
        %3247 = vmatprep.subr.mxu0 0.0
        %3248 = vmatpush2.xpose.msra.mxu0 0.0
        %3249 = vmatprep.subr.mxu0 0.0
        %3250 = vmatpush2.xpose.msra.mxu0 0.0
        %3251 = vmatprep.subr.mxu0 0.0
        %3252 = vmatpush2.xpose.msra.mxu0 0.0
        %3253 = vmatprep.subr.mxu0 0.0
        %3254 = vmatpush2.xpose.msra.mxu0 0.0
        %3255 = vmatprep.mubr.f32.mxu0 0.0
        %3256 = vmatmul.mubr.f32.gmra.mxu0 %v3143
        %v3257 = vpop.f32.mrf.mxu0
        %v3258 = vadd.f32 %v1457, %v3257
        %v3259 = vpop.f32.mrf.mxu0
        %3260 = vmatprep.mubr.f32.mxu0 0.0
        %3261 = vmatmul.mubr.f32.gmra.mxu0 %v3145
        %v3262 = vpop.f32.mrf.mxu0
        %v3263 = vadd.f32 %v1458, %v3262
        %v3264 = vpop.f32.mrf.mxu0
        %3265 = vmatprep.mubr.f32.mxu0 0.0
        %3266 = vmatmul.mubr.f32.gmra.mxu0 %v3147
        %v3267 = vpop.f32.mrf.mxu0
        %v3268 = vadd.f32 %v1459, %v3267
        %v3269 = vpop.f32.mrf.mxu0
        %3270 = vmatprep.mubr.f32.mxu0 0.0
        %3271 = vmatmul.mubr.f32.gmra.mxu0 %v3149
        %v3272 = vpop.f32.mrf.mxu0
        %v3273 = vadd.f32 %v1460, %v3272
        %v3274 = vpop.f32.mrf.mxu0
        %3275 = vmatprep.mubr.f32.mxu0 0.0
        %3276 = vmatmul.mubr.f32.gmra.mxu0 %v3151
        %v3277 = vpop.f32.mrf.mxu0
        %v3278 = vadd.f32 %v1461, %v3277
        %v3279 = vpop.f32.mrf.mxu0
        %3280 = vmatprep.mubr.f32.mxu0 0.0
        %3281 = vmatmul.mubr.f32.gmra.mxu0 %v3153
        %v3282 = vpop.f32.mrf.mxu0
        %v3283 = vadd.f32 %v1462, %v3282
        %v3284 = vpop.f32.mrf.mxu0
        %3285 = vmatprep.mubr.f32.mxu0 0.0
        %3286 = vmatmul.mubr.f32.gmra.mxu0 %v3155
        %v3287 = vpop.f32.mrf.mxu0
        %v3288 = vadd.f32 %v1463, %v3287
        %v3289 = vpop.f32.mrf.mxu0
        %3290 = vmatprep.mubr.f32.mxu0 0.0
        %3291 = vmatmul.mubr.f32.gmra.mxu0 %v3157
        %v3292 = vpop.f32.mrf.mxu0
        %v3293 = vadd.f32 %v1464, %v3292
        %v3294 = vpop.f32.mrf.mxu0
        %3295 = vdwg.mxu0
        %3296 = vmax.xlane.f32.xlu0 %v3258
        %v3297 = vpop.xlane.xlu0 %3296
        %3298 = vmax.xlane.f32.xlu0 %v3263
        %v3299 = vpop.xlane.xlu0 %3298
        %3300 = vmax.xlane.f32.xlu0 %v3268
        %v3301 = vpop.xlane.xlu0 %3300
        %3302 = vmax.xlane.f32.xlu0 %v3273
        %v3303 = vpop.xlane.xlu0 %3302
        %3304 = vmax.xlane.f32.xlu0 %v3278
        %v3305 = vpop.xlane.xlu0 %3304
        %3306 = vmax.xlane.f32.xlu0 %v3283
        %v3307 = vpop.xlane.xlu0 %3306
        %3308 = vmax.xlane.f32.xlu0 %v3288
        %v3309 = vpop.xlane.xlu0 %3308
        %3310 = vmax.xlane.f32.xlu0 %v3293
        %v3311 = vpop.xlane.xlu0 %3310
        %v3312 = vsub.f32 %v3258, %v3297
        %v3313 = vsub.f32 %v3263, %v3299
        %v3314 = vsub.f32 %v3268, %v3301
        %v3315 = vsub.f32 %v3273, %v3303
        %v3316 = vsub.f32 %v3278, %v3305
        %v3317 = vsub.f32 %v3283, %v3307
        %v3318 = vsub.f32 %v3288, %v3309
        %v3319 = vsub.f32 %v3293, %v3311
        %v3320 = vmul.f32 %v3312, 1.442695
        %v3321 = vpow.pop %v3320
        %v3322 = vmul.f32 %v3313, 1.442695
        %v3323 = vpow.pop %v3322
        %v3324 = vmul.f32 %v3314, 1.442695
        %v3325 = vpow.pop %v3324
        %v3326 = vmul.f32 %v3315, 1.442695
        %v3327 = vpow.pop %v3326
        %v3328 = vmul.f32 %v3316, 1.442695
        %v3329 = vpow.pop %v3328
        %v3330 = vmul.f32 %v3317, 1.442695
        %v3331 = vpow.pop %v3330
        %v3332 = vmul.f32 %v3318, 1.442695
        %v3333 = vpow.pop %v3332
        %v3334 = vmul.f32 %v3319, 1.442695
        %v3335 = vpow.pop %v3334
        %3336 = vadd.xlane.f32.xlu0 %v3321
        %v3337 = vpop.xlane.xlu0 %3336
        %3338 = vadd.xlane.f32.xlu0 %v3323
        %v3339 = vpop.xlane.xlu0 %3338
        %3340 = vadd.xlane.f32.xlu0 %v3325
        %v3341 = vpop.xlane.xlu0 %3340
        %3342 = vadd.xlane.f32.xlu0 %v3327
        %v3343 = vpop.xlane.xlu0 %3342
        %3344 = vadd.xlane.f32.xlu0 %v3329
        %v3345 = vpop.xlane.xlu0 %3344
        %3346 = vadd.xlane.f32.xlu0 %v3331
        %v3347 = vpop.xlane.xlu0 %3346
        %3348 = vadd.xlane.f32.xlu0 %v3333
        %v3349 = vpop.xlane.xlu0 %3348
        %3350 = vadd.xlane.f32.xlu0 %v3335
        %v3351 = vpop.xlane.xlu0 %3350
        %v3352 = vrcp.pop %v3337
        %v3353 = vrcp.pop %v3339
        %v3354 = vrcp.pop %v3341
        %v3355 = vrcp.pop %v3343
        %v3356 = vrcp.pop %v3345
        %v3357 = vrcp.pop %v3347
        %v3358 = vrcp.pop %v3349
        %v3359 = vrcp.pop %v3351
        %3360 = vrot.lane.b32.xlu0 %v1433, 32
        %v3361 = vpop.permute.xlu0 %3360
        %3362 = vrot.lane.b32.xlu0 %v1434, 32
        %v3363 = vpop.permute.xlu0 %3362
        %3364 = vrot.lane.b32.xlu0 %v1435, 32
        %v3365 = vpop.permute.xlu0 %3364
        %3366 = vrot.lane.b32.xlu0 %v1436, 32
        %v3367 = vpop.permute.xlu0 %3366
        %3368 = vrot.lane.b32.xlu0 %v1437, 32
        %v3369 = vpop.permute.xlu0 %3368
        %3370 = vrot.lane.b32.xlu0 %v1438, 32
        %v3371 = vpop.permute.xlu0 %3370
        %3372 = vrot.lane.b32.xlu0 %v1439, 32
        %v3373 = vpop.permute.xlu0 %3372
        %3374 = vrot.lane.b32.xlu0 %v1440, 32
        %v3375 = vpop.permute.xlu0 %3374
        %3376 = vrot.lane.b32.xlu0 %v1441, 32
        %v3377 = vpop.permute.xlu0 %3376
        %3378 = vrot.lane.b32.xlu0 %v1442, 32
        %v3379 = vpop.permute.xlu0 %3378
        %3380 = vrot.lane.b32.xlu0 %v1443, 32
        %v3381 = vpop.permute.xlu0 %3380
        %3382 = vrot.lane.b32.xlu0 %v1444, 32
        %v3383 = vpop.permute.xlu0 %3382
        %3384 = vrot.lane.b32.xlu0 %v1445, 32
        %v3385 = vpop.permute.xlu0 %3384
        %3386 = vrot.lane.b32.xlu0 %v1446, 32
        %v3387 = vpop.permute.xlu0 %3386
        %3388 = vrot.lane.b32.xlu0 %v1447, 32
        %v3389 = vpop.permute.xlu0 %3388
        %3390 = vrot.lane.b32.xlu0 %v1448, 32
        %v3391 = vpop.permute.xlu0 %3390
        %3408 = vmatprep.subr.mxu0 0.0
        %3409 = vmatpush1.msra.mxu0 %v3391
        %3410 = vmatprep.subr.mxu0 0.0
        %3411 = vmatpush1.msra.mxu0 %v3389
        %3412 = vmatprep.subr.mxu0 0.0
        %3413 = vmatpush1.msra.mxu0 %v3387
        %3414 = vmatprep.subr.mxu0 0.0
        %3415 = vmatpush1.msra.mxu0 %v3385
        %3416 = vmatprep.subr.mxu0 0.0
        %3417 = vmatpush1.msra.mxu0 %v3383
        %3418 = vmatprep.subr.mxu0 0.0
        %3419 = vmatpush1.msra.mxu0 %v3381
        %3420 = vmatprep.subr.mxu0 0.0
        %3421 = vmatpush1.msra.mxu0 %v3379
        %3422 = vmatprep.subr.mxu0 0.0
        %3423 = vmatpush1.msra.mxu0 %v3377
        %3424 = vmatprep.subr.mxu0 0.0
        %3425 = vmatpush1.msra.mxu0 %v3375
        %3426 = vmatprep.subr.mxu0 0.0
        %3427 = vmatpush1.msra.mxu0 %v3373
        %3428 = vmatprep.subr.mxu0 0.0
        %3429 = vmatpush1.msra.mxu0 %v3371
        %3430 = vmatprep.subr.mxu0 0.0
        %3431 = vmatpush1.msra.mxu0 %v3369
        %3432 = vmatprep.subr.mxu0 0.0
        %3433 = vmatpush1.msra.mxu0 %v3367
        %3434 = vmatprep.subr.mxu0 0.0
        %3435 = vmatpush1.msra.mxu0 %v3365
        %3436 = vmatprep.subr.mxu0 0.0
        %3437 = vmatpush1.msra.mxu0 %v3363
        %3438 = vmatprep.subr.mxu0 0.0
        %3439 = vmatpush1.msra.mxu0 %v3361
        %3440 = vmatprep.subr.mxu0 0.0
        %3441 = vmatpush2.msra.mxu0 0.0
        %3442 = vmatprep.subr.mxu0 0.0
        %3443 = vmatpush2.msra.mxu0 0.0
        %3444 = vmatprep.subr.mxu0 0.0
        %3445 = vmatpush2.msra.mxu0 0.0
        %3446 = vmatprep.subr.mxu0 0.0
        %3447 = vmatpush2.msra.mxu0 0.0
        %3448 = vmatprep.subr.mxu0 0.0
        %3449 = vmatpush2.msra.mxu0 0.0
        %3450 = vmatprep.subr.mxu0 0.0
        %3451 = vmatpush2.msra.mxu0 0.0
        %3452 = vmatprep.subr.mxu0 0.0
        %3453 = vmatpush2.msra.mxu0 0.0
        %3454 = vmatprep.subr.mxu0 0.0
        %3455 = vmatpush2.msra.mxu0 0.0
        %3456 = vmatprep.subr.mxu0 0.0
        %3457 = vmatpush2.msra.mxu0 0.0
        %3458 = vmatprep.subr.mxu0 0.0
        %3459 = vmatpush2.msra.mxu0 0.0
        %3460 = vmatprep.subr.mxu0 0.0
        %3461 = vmatpush2.msra.mxu0 0.0
        %3462 = vmatprep.subr.mxu0 0.0
        %3463 = vmatpush2.msra.mxu0 0.0
        %3464 = vmatprep.subr.mxu0 0.0
        %3465 = vmatpush2.msra.mxu0 0.0
        %3466 = vmatprep.subr.mxu0 0.0
        %3467 = vmatpush2.msra.mxu0 0.0
        %3468 = vmatprep.subr.mxu0 0.0
        %3469 = vmatpush2.msra.mxu0 0.0
        %3470 = vmatprep.subr.mxu0 0.0
        %3471 = vmatpush2.msra.mxu0 0.0
        %3472 = vmatprep.mubr.f32.mxu0 0.0
        %3473 = vmatmul.mubr.f32.gmra.mxu0 %v3321
        %v3474 = vpop.f32.mrf.mxu0
        %v3475 = vadd.f32 0.0, %v3474
        %v3476 = vpop.f32.mrf.mxu0
        %3477 = vmatprep.mubr.f32.mxu0 0.0
        %3478 = vmatmul.mubr.f32.gmra.mxu0 %v3323
        %v3479 = vpop.f32.mrf.mxu0
        %v3480 = vadd.f32 0.0, %v3479
        %v3481 = vpop.f32.mrf.mxu0
        %3482 = vmatprep.mubr.f32.mxu0 0.0
        %3483 = vmatmul.mubr.f32.gmra.mxu0 %v3325
        %v3484 = vpop.f32.mrf.mxu0
        %v3485 = vadd.f32 0.0, %v3484
        %v3486 = vpop.f32.mrf.mxu0
        %3487 = vmatprep.mubr.f32.mxu0 0.0
        %3488 = vmatmul.mubr.f32.gmra.mxu0 %v3327
        %v3489 = vpop.f32.mrf.mxu0
        %v3490 = vadd.f32 0.0, %v3489
        %v3491 = vpop.f32.mrf.mxu0
        %3492 = vmatprep.mubr.f32.mxu0 0.0
        %3493 = vmatmul.mubr.f32.gmra.mxu0 %v3329
        %v3494 = vpop.f32.mrf.mxu0
        %v3495 = vadd.f32 0.0, %v3494
        %v3496 = vpop.f32.mrf.mxu0
        %3497 = vmatprep.mubr.f32.mxu0 0.0
        %3498 = vmatmul.mubr.f32.gmra.mxu0 %v3331
        %v3499 = vpop.f32.mrf.mxu0
        %v3500 = vadd.f32 0.0, %v3499
        %v3501 = vpop.f32.mrf.mxu0
        %3502 = vmatprep.mubr.f32.mxu0 0.0
        %3503 = vmatmul.mubr.f32.gmra.mxu0 %v3333
        %v3504 = vpop.f32.mrf.mxu0
        %v3505 = vadd.f32 0.0, %v3504
        %v3506 = vpop.f32.mrf.mxu0
        %3507 = vmatprep.mubr.f32.mxu0 0.0
        %3508 = vmatmul.mubr.f32.gmra.mxu0 %v3335
        %v3509 = vpop.f32.mrf.mxu0
        %v3510 = vadd.f32 0.0, %v3509
        %v3511 = vpop.f32.mrf.mxu0
        %3512 = vdwg.mxu0
        %v3513 = vmul.f32 %v3475, %v3352
        %v3514 = vmul.f32 %v3480, %v3353
        %v3515 = vmul.f32 %v3485, %v3354
        %v3516 = vmul.f32 %v3490, %v3355
        %v3517 = vmul.f32 %v3495, %v3356
        %v3518 = vmul.f32 %v3500, %v3357
        %v3519 = vmul.f32 %v3505, %v3358
        %v3520 = vmul.f32 %v3510, %v3359
        %v3521 = vld [vmem:[#allocation16 + $0x60] sm:$0xff]
        %v3522 = vld [vmem:[#allocation16 + $0x68] sm:$0xff]
        %v3523 = vld [vmem:[#allocation16 + $0x70] sm:$0xff]
        %v3524 = vld [vmem:[#allocation16 + $0x78] sm:$0xff]
        %v3526 = vsel %vm1465, %v3513, 0
        %v3529 = vsel %vm1465, %v3514, 0
        %v3532 = vsel %vm1465, %v3515, 0
        %v3535 = vsel %vm1465, %v3516, 0
        %v3538 = vsel %vm1465, %v3517, 0
        %v3541 = vsel %vm1465, %v3518, 0
        %v3544 = vsel %vm1465, %v3519, 0
        %v3547 = vsel %vm1465, %v3520, 0
        %3549 = vmatprep.subr.mxu0 0.0
        %3550 = vmatpush1.msra.mxu0 0.0
        %3551 = vmatprep.subr.mxu0 0.0
        %3552 = vmatpush1.msra.mxu0 0.0
        %3553 = vmatprep.subr.mxu0 0.0
        %3554 = vmatpush1.msra.mxu0 0.0
        %3555 = vmatprep.subr.mxu0 0.0
        %3556 = vmatpush1.msra.mxu0 0.0
        %3557 = vmatprep.subr.mxu0 0.0
        %3558 = vmatpush1.msra.mxu0 0.0
        %3559 = vmatprep.subr.mxu0 0.0
        %3560 = vmatpush1.msra.mxu0 0.0
        %3561 = vmatprep.subr.mxu0 0.0
        %3562 = vmatpush1.msra.mxu0 0.0
        %3563 = vmatprep.subr.mxu0 0.0
        %3564 = vmatpush1.msra.mxu0 0.0
        %3565 = vmatprep.subr.mxu0 0.0
        %3566 = vmatpush1.msra.mxu0 0.0
        %3567 = vmatprep.subr.mxu0 0.0
        %3568 = vmatpush1.msra.mxu0 0.0
        %3569 = vmatprep.subr.mxu0 0.0
        %3570 = vmatpush1.msra.mxu0 0.0
        %3571 = vmatprep.subr.mxu0 0.0
        %3572 = vmatpush1.msra.mxu0 0.0
        %3573 = vmatprep.subr.mxu0 0.0
        %3574 = vmatpush1.msra.mxu0 %v3524
        %3575 = vmatprep.subr.mxu0 0.0
        %3576 = vmatpush1.msra.mxu0 %v3523
        %3577 = vmatprep.subr.mxu0 0.0
        %3578 = vmatpush1.msra.mxu0 %v3522
        %3579 = vmatprep.subr.mxu0 0.0
        %3580 = vmatpush1.msra.mxu0 %v3521
        %3581 = vmatprep.subr.mxu0 0.0
        %3582 = vmatpush2.msra.mxu0 0.0
        %3583 = vmatprep.subr.mxu0 0.0
        %3584 = vmatpush2.msra.mxu0 0.0
        %3585 = vmatprep.subr.mxu0 0.0
        %3586 = vmatpush2.msra.mxu0 0.0
        %3587 = vmatprep.subr.mxu0 0.0
        %3588 = vmatpush2.msra.mxu0 0.0
        %3589 = vmatprep.subr.mxu0 0.0
        %3590 = vmatpush2.msra.mxu0 0.0
        %3591 = vmatprep.subr.mxu0 0.0
        %3592 = vmatpush2.msra.mxu0 0.0
        %3593 = vmatprep.subr.mxu0 0.0
        %3594 = vmatpush2.msra.mxu0 0.0
        %3595 = vmatprep.subr.mxu0 0.0
        %3596 = vmatpush2.msra.mxu0 0.0
        %3597 = vmatprep.subr.mxu0 0.0
        %3598 = vmatpush2.msra.mxu0 0.0
        %3599 = vmatprep.subr.mxu0 0.0
        %3600 = vmatpush2.msra.mxu0 0.0
        %3601 = vmatprep.subr.mxu0 0.0
        %3602 = vmatpush2.msra.mxu0 0.0
        %3603 = vmatprep.subr.mxu0 0.0
        %3604 = vmatpush2.msra.mxu0 0.0
        %3605 = vmatprep.subr.mxu0 0.0
        %3606 = vmatpush2.msra.mxu0 0.0
        %3607 = vmatprep.subr.mxu0 0.0
        %3608 = vmatpush2.msra.mxu0 0.0
        %3609 = vmatprep.subr.mxu0 0.0
        %3610 = vmatpush2.msra.mxu0 0.0
        %3611 = vmatprep.subr.mxu0 0.0
        %3612 = vmatpush2.msra.mxu0 0.0
        %3613 = vmatprep.mubr.f32.mxu0 0.0
        %3614 = vmatmul.mubr.f32.gmra.mxu0 %v3526
        %v3615 = vpop.f32.mrf.mxu0
        %v3616 = vadd.f32 0.0, %v3615
        %v3617 = vpop.f32.mrf.mxu0
        %3618 = vmatprep.mubr.f32.mxu0 0.0
        %3619 = vmatmul.mubr.f32.gmra.mxu0 %v3529
        %v3620 = vpop.f32.mrf.mxu0
        %v3621 = vadd.f32 0.0, %v3620
        %v3622 = vpop.f32.mrf.mxu0
        %3623 = vmatprep.mubr.f32.mxu0 0.0
        %3624 = vmatmul.mubr.f32.gmra.mxu0 %v3532
        %v3625 = vpop.f32.mrf.mxu0
        %v3626 = vadd.f32 0.0, %v3625
        %v3627 = vpop.f32.mrf.mxu0
        %3628 = vmatprep.mubr.f32.mxu0 0.0
        %3629 = vmatmul.mubr.f32.gmra.mxu0 %v3535
        %v3630 = vpop.f32.mrf.mxu0
        %v3631 = vadd.f32 0.0, %v3630
        %v3632 = vpop.f32.mrf.mxu0
        %3633 = vmatprep.mubr.f32.mxu0 0.0
        %3634 = vmatmul.mubr.f32.gmra.mxu0 %v3538
        %v3635 = vpop.f32.mrf.mxu0
        %v3636 = vadd.f32 0.0, %v3635
        %v3637 = vpop.f32.mrf.mxu0
        %3638 = vmatprep.mubr.f32.mxu0 0.0
        %3639 = vmatmul.mubr.f32.gmra.mxu0 %v3541
        %v3640 = vpop.f32.mrf.mxu0
        %v3641 = vadd.f32 0.0, %v3640
        %v3642 = vpop.f32.mrf.mxu0
        %3643 = vmatprep.mubr.f32.mxu0 0.0
        %3644 = vmatmul.mubr.f32.gmra.mxu0 %v3544
        %v3645 = vpop.f32.mrf.mxu0
        %v3646 = vadd.f32 0.0, %v3645
        %v3647 = vpop.f32.mrf.mxu0
        %3648 = vmatprep.mubr.f32.mxu0 0.0
        %3649 = vmatmul.mubr.f32.gmra.mxu0 %v3547
        %v3650 = vpop.f32.mrf.mxu0
        %v3651 = vadd.f32 0.0, %v3650
        %v3652 = vpop.f32.mrf.mxu0
        %3653 = vdwg.mxu0
        %v3654 = vadd.f32 %v3087, %v3616
        %v3655 = vadd.f32 %v3088, %v3621
        %v3656 = vadd.f32 %v3089, %v3626
        %v3657 = vadd.f32 %v3090, %v3631
        %v3658 = vadd.f32 %v3091, %v3636
        %v3659 = vadd.f32 %v3092, %v3641
        %v3660 = vadd.f32 %v3093, %v3646
        %v3661 = vadd.f32 %v3094, %v3651
        %v3662 = vld [vmem:[%s11] sm:$0x1]
        %v3664 = vlaneseq
        %v3665 = vshrl.u32 %v3664, 7
        %v3666 = vsub.s32 0, %v3665
        %v3667 = vrot.slane %v3662, %v3666
        %v3669 = vadd.f32 %v3654, %v3667
        %v3670 = vadd.f32 %v3655, %v3667
        %v3671 = vadd.f32 %v3656, %v3667
        %v3672 = vadd.f32 %v3657, %v3667
        %v3673 = vadd.f32 %v3658, %v3667
        %v3674 = vadd.f32 %v3659, %v3667
        %v3675 = vadd.f32 %v3660, %v3667
        %v3676 = vadd.f32 %v3661, %v3667
        %v3677 = vadd.f32 %v877, %v3669
        %v3678 = vadd.f32 %v878, %v3670
        %v3679 = vadd.f32 %v879, %v3671
        %v3680 = vadd.f32 %v880, %v3672
        %v3681 = vadd.f32 %v881, %v3673
        %v3682 = vadd.f32 %v882, %v3674
        %v3683 = vadd.f32 %v883, %v3675
        %v3684 = vadd.f32 %v884, %v3676
        %3685 = vadd.xlane.f32.xlu0 %v3677
        %v3686 = vpop.xlane.xlu0 %3685
        %3687 = vadd.xlane.f32.xlu0 %v3678
        %v3688 = vpop.xlane.xlu0 %3687
        %3689 = vadd.xlane.f32.xlu0 %v3679
        %v3690 = vpop.xlane.xlu0 %3689
        %3691 = vadd.xlane.f32.xlu0 %v3680
        %v3692 = vpop.xlane.xlu0 %3691
        %3693 = vadd.xlane.f32.xlu0 %v3681
        %v3694 = vpop.xlane.xlu0 %3693
        %3695 = vadd.xlane.f32.xlu0 %v3682
        %v3696 = vpop.xlane.xlu0 %3695
        %3697 = vadd.xlane.f32.xlu0 %v3683
        %v3698 = vpop.xlane.xlu0 %3697
        %3699 = vadd.xlane.f32.xlu0 %v3684
        %v3700 = vpop.xlane.xlu0 %3699
        %v3701 = vrcp.pop 128.0
        %v3702 = vmul.f32 %v3686, %v3701
        %v3703 = vmul.f32 %v3688, %v3701
        %v3704 = vmul.f32 %v3690, %v3701
        %v3705 = vmul.f32 %v3692, %v3701
        %v3706 = vmul.f32 %v3694, %v3701
        %v3707 = vmul.f32 %v3696, %v3701
        %v3708 = vmul.f32 %v3698, %v3701
        %v3709 = vmul.f32 %v3700, %v3701
        %v3710 = vsub.f32 %v3677, %v3702
        %v3711 = vsub.f32 %v3678, %v3703
        %v3712 = vsub.f32 %v3679, %v3704
        %v3713 = vsub.f32 %v3680, %v3705
        %v3714 = vsub.f32 %v3681, %v3706
        %v3715 = vsub.f32 %v3682, %v3707
        %v3716 = vsub.f32 %v3683, %v3708
        %v3717 = vsub.f32 %v3684, %v3709
        %v3718 = vmul.f32 %v3710, %v3710
        %v3719 = vmul.f32 %v3711, %v3711
        %v3720 = vmul.f32 %v3712, %v3712
        %v3721 = vmul.f32 %v3713, %v3713
        %v3722 = vmul.f32 %v3714, %v3714
        %v3723 = vmul.f32 %v3715, %v3715
        %v3724 = vmul.f32 %v3716, %v3716
        %v3725 = vmul.f32 %v3717, %v3717
        %3726 = vadd.xlane.f32.xlu0 %v3718
        %v3727 = vpop.xlane.xlu0 %3726
        %3728 = vadd.xlane.f32.xlu0 %v3719
        %v3729 = vpop.xlane.xlu0 %3728
        %3730 = vadd.xlane.f32.xlu0 %v3720
        %v3731 = vpop.xlane.xlu0 %3730
        %3732 = vadd.xlane.f32.xlu0 %v3721
        %v3733 = vpop.xlane.xlu0 %3732
        %3734 = vadd.xlane.f32.xlu0 %v3722
        %v3735 = vpop.xlane.xlu0 %3734
        %3736 = vadd.xlane.f32.xlu0 %v3723
        %v3737 = vpop.xlane.xlu0 %3736
        %3738 = vadd.xlane.f32.xlu0 %v3724
        %v3739 = vpop.xlane.xlu0 %3738
        %3740 = vadd.xlane.f32.xlu0 %v3725
        %v3741 = vpop.xlane.xlu0 %3740
        %v3742 = vmul.f32 %v3727, %v3701
        %v3743 = vmul.f32 %v3729, %v3701
        %v3744 = vmul.f32 %v3731, %v3701
        %v3745 = vmul.f32 %v3733, %v3701
        %v3746 = vmul.f32 %v3735, %v3701
        %v3747 = vmul.f32 %v3737, %v3701
        %v3748 = vmul.f32 %v3739, %v3701
        %v3749 = vmul.f32 %v3741, %v3701
        %v3750 = vadd.f32 %v3742, 1e-05
        %v3751 = vadd.f32 %v3743, 1e-05
        %v3752 = vadd.f32 %v3744, 1e-05
        %v3753 = vadd.f32 %v3745, 1e-05
        %v3754 = vadd.f32 %v3746, 1e-05
        %v3755 = vadd.f32 %v3747, 1e-05
        %v3756 = vadd.f32 %v3748, 1e-05
        %v3757 = vadd.f32 %v3749, 1e-05
        %v3758 = vrsqrt.pop %v3750
        %v3759 = vrsqrt.pop %v3751
        %v3760 = vrsqrt.pop %v3752
        %v3761 = vrsqrt.pop %v3753
        %v3762 = vrsqrt.pop %v3754
        %v3763 = vrsqrt.pop %v3755
        %v3764 = vrsqrt.pop %v3756
        %v3765 = vrsqrt.pop %v3757
        %v3766 = vmul.f32 %v3710, %v3758
        %v3767 = vmul.f32 %v3711, %v3759
        %v3768 = vmul.f32 %v3712, %v3760
        %v3769 = vmul.f32 %v3713, %v3761
        %v3770 = vmul.f32 %v3714, %v3762
        %v3771 = vmul.f32 %v3715, %v3763
        %v3772 = vmul.f32 %v3716, %v3764
        %v3773 = vmul.f32 %v3717, %v3765
        %v3774 = vld [vmem:[%s12] sm:$0x1]
        %v3776 = vlaneseq
        %v3777 = vshrl.u32 %v3776, 7
        %v3778 = vsub.s32 0, %v3777
        %v3779 = vrot.slane %v3774, %v3778
        %v3781 = vmul.f32 %v3766, %v3779
        %v3782 = vmul.f32 %v3767, %v3779
        %v3783 = vmul.f32 %v3768, %v3779
        %v3784 = vmul.f32 %v3769, %v3779
        %v3785 = vmul.f32 %v3770, %v3779
        %v3786 = vmul.f32 %v3771, %v3779
        %v3787 = vmul.f32 %v3772, %v3779
        %v3788 = vmul.f32 %v3773, %v3779
        %v3789 = vld [vmem:[%s13] sm:$0x1]
        %v3791 = vlaneseq
        %v3792 = vshrl.u32 %v3791, 7
        %v3793 = vsub.s32 0, %v3792
        %v3794 = vrot.slane %v3789, %v3793
        %v3796 = vadd.f32 %v3781, %v3794
        %v3797 = vadd.f32 %v3782, %v3794
        %v3798 = vadd.f32 %v3783, %v3794
        %v3799 = vadd.f32 %v3784, %v3794
        %v3800 = vadd.f32 %v3785, %v3794
        %v3801 = vadd.f32 %v3786, %v3794
        %v3802 = vadd.f32 %v3787, %v3794
        %v3803 = vadd.f32 %v3788, %v3794
        %v3804 = vld [vmem:[#allocation18] sm:$0xff]
        %v3805 = vld [vmem:[#allocation18 + $0x8] sm:$0xff]
        %v3806 = vld [vmem:[#allocation18 + $0x10] sm:$0xff]
        %v3807 = vld [vmem:[#allocation18 + $0x18] sm:$0xff]
        %v3808 = vld [vmem:[#allocation18 + $0x20] sm:$0xff]
        %v3809 = vld [vmem:[#allocation18 + $0x28] sm:$0xff]
        %v3810 = vld [vmem:[#allocation18 + $0x30] sm:$0xff]
        %v3811 = vld [vmem:[#allocation18 + $0x38] sm:$0xff]
        %v3812 = vld [vmem:[#allocation18 + $0x40] sm:$0xff]
        %v3813 = vld [vmem:[#allocation18 + $0x48] sm:$0xff]
        %v3814 = vld [vmem:[#allocation18 + $0x50] sm:$0xff]
        %v3815 = vld [vmem:[#allocation18 + $0x58] sm:$0xff]
        %v3816 = vld [vmem:[#allocation18 + $0x60] sm:$0xff]
        %v3817 = vld [vmem:[#allocation18 + $0x68] sm:$0xff]
        %v3818 = vld [vmem:[#allocation18 + $0x70] sm:$0xff]
        %v3819 = vld [vmem:[#allocation18 + $0x78] sm:$0xff]
        %v3820 = vld [vmem:[#allocation18 + $0x80] sm:$0xff]
        %v3821 = vld [vmem:[#allocation18 + $0x88] sm:$0xff]
        %v3822 = vld [vmem:[#allocation18 + $0x90] sm:$0xff]
        %v3823 = vld [vmem:[#allocation18 + $0x98] sm:$0xff]
        %v3824 = vld [vmem:[#allocation18 + $0xa0] sm:$0xff]
        %v3825 = vld [vmem:[#allocation18 + $0xa8] sm:$0xff]
        %v3826 = vld [vmem:[#allocation18 + $0xb0] sm:$0xff]
        %v3827 = vld [vmem:[#allocation18 + $0xb8] sm:$0xff]
        %v3828 = vld [vmem:[#allocation18 + $0xc0] sm:$0xff]
        %v3829 = vld [vmem:[#allocation18 + $0xc8] sm:$0xff]
        %v3830 = vld [vmem:[#allocation18 + $0xd0] sm:$0xff]
        %v3831 = vld [vmem:[#allocation18 + $0xd8] sm:$0xff]
        %v3832 = vld [vmem:[#allocation18 + $0xe0] sm:$0xff]
        %v3833 = vld [vmem:[#allocation18 + $0xe8] sm:$0xff]
        %v3834 = vld [vmem:[#allocation18 + $0xf0] sm:$0xff]
        %v3835 = vld [vmem:[#allocation18 + $0xf8] sm:$0xff]
        %v3836 = vld [vmem:[%s15] sm:$0x3]
        %v3838 = vlaneseq
        %v3839 = vshrl.u32 %v3838, 7
        %v3840 = vsub.s32 0, %v3839
        %v3841 = vrot.slane %v3836, %v3840
        %v3842 = vlaneseq
        %v3843 = vshrl.u32 %v3842, 7
        %v3844 = vsub.s32 1, %v3843
        %v3845 = vrot.slane %v3836, %v3844
        %3848 = vmatprep.subr.mxu0 %v3835
        %3849 = vmatpush1.msra.mxu0 %v3834
        %3850 = vmatprep.subr.mxu0 %v3833
        %3851 = vmatpush1.msra.mxu0 %v3832
        %3852 = vmatprep.subr.mxu0 %v3831
        %3853 = vmatpush1.msra.mxu0 %v3830
        %3854 = vmatprep.subr.mxu0 %v3829
        %3855 = vmatpush1.msra.mxu0 %v3828
        %3856 = vmatprep.subr.mxu0 %v3827
        %3857 = vmatpush1.msra.mxu0 %v3826
        %3858 = vmatprep.subr.mxu0 %v3825
        %3859 = vmatpush1.msra.mxu0 %v3824
        %3860 = vmatprep.subr.mxu0 %v3823
        %3861 = vmatpush1.msra.mxu0 %v3822
        %3862 = vmatprep.subr.mxu0 %v3821
        %3863 = vmatpush1.msra.mxu0 %v3820
        %3864 = vmatprep.subr.mxu0 %v3819
        %3865 = vmatpush1.msra.mxu0 %v3818
        %3866 = vmatprep.subr.mxu0 %v3817
        %3867 = vmatpush1.msra.mxu0 %v3816
        %3868 = vmatprep.subr.mxu0 %v3815
        %3869 = vmatpush1.msra.mxu0 %v3814
        %3870 = vmatprep.subr.mxu0 %v3813
        %3871 = vmatpush1.msra.mxu0 %v3812
        %3872 = vmatprep.subr.mxu0 %v3811
        %3873 = vmatpush1.msra.mxu0 %v3810
        %3874 = vmatprep.subr.mxu0 %v3809
        %3875 = vmatpush1.msra.mxu0 %v3808
        %3876 = vmatprep.subr.mxu0 %v3807
        %3877 = vmatpush1.msra.mxu0 %v3806
        %3878 = vmatprep.subr.mxu0 %v3805
        %3879 = vmatpush1.msra.mxu0 %v3804
        %3880 = vmatprep.subr.mxu0 0.0
        %3881 = vmatpush2.msra.mxu0 0.0
        %3882 = vmatprep.subr.mxu0 0.0
        %3883 = vmatpush2.msra.mxu0 0.0
        %3884 = vmatprep.subr.mxu0 0.0
        %3885 = vmatpush2.msra.mxu0 0.0
        %3886 = vmatprep.subr.mxu0 0.0
        %3887 = vmatpush2.msra.mxu0 0.0
        %3888 = vmatprep.subr.mxu0 0.0
        %3889 = vmatpush2.msra.mxu0 0.0
        %3890 = vmatprep.subr.mxu0 0.0
        %3891 = vmatpush2.msra.mxu0 0.0
        %3892 = vmatprep.subr.mxu0 0.0
        %3893 = vmatpush2.msra.mxu0 0.0
        %3894 = vmatprep.subr.mxu0 0.0
        %3895 = vmatpush2.msra.mxu0 0.0
        %3896 = vmatprep.subr.mxu0 0.0
        %3897 = vmatpush2.msra.mxu0 0.0
        %3898 = vmatprep.subr.mxu0 0.0
        %3899 = vmatpush2.msra.mxu0 0.0
        %3900 = vmatprep.subr.mxu0 0.0
        %3901 = vmatpush2.msra.mxu0 0.0
        %3902 = vmatprep.subr.mxu0 0.0
        %3903 = vmatpush2.msra.mxu0 0.0
        %3904 = vmatprep.subr.mxu0 0.0
        %3905 = vmatpush2.msra.mxu0 0.0
        %3906 = vmatprep.subr.mxu0 0.0
        %3907 = vmatpush2.msra.mxu0 0.0
        %3908 = vmatprep.subr.mxu0 0.0
        %3909 = vmatpush2.msra.mxu0 0.0
        %3910 = vmatprep.subr.mxu0 0.0
        %3911 = vmatpush2.msra.mxu0 0.0
        %3912 = vmatprep.mubr.f32.mxu0 0.0
        %3913 = vmatmul.mubr.f32.gmra.mxu0 %v3796
        %v3914 = vpop.f32.mrf.mxu0
        %v3915 = vadd.f32 %v3841, %v3914
        %v3916 = vpop.f32.mrf.mxu0
        %v3917 = vadd.f32 %v3845, %v3916
        %3918 = vmatprep.mubr.f32.mxu0 0.0
        %3919 = vmatmul.mubr.f32.gmra.mxu0 %v3797
        %v3920 = vpop.f32.mrf.mxu0
        %v3921 = vadd.f32 %v3841, %v3920
        %v3922 = vpop.f32.mrf.mxu0
        %v3923 = vadd.f32 %v3845, %v3922
        %3924 = vmatprep.mubr.f32.mxu0 0.0
        %3925 = vmatmul.mubr.f32.gmra.mxu0 %v3798
        %v3926 = vpop.f32.mrf.mxu0
        %v3927 = vadd.f32 %v3841, %v3926
        %v3928 = vpop.f32.mrf.mxu0
        %v3929 = vadd.f32 %v3845, %v3928
        %3930 = vmatprep.mubr.f32.mxu0 0.0
        %3931 = vmatmul.mubr.f32.gmra.mxu0 %v3799
        %v3932 = vpop.f32.mrf.mxu0
        %v3933 = vadd.f32 %v3841, %v3932
        %v3934 = vpop.f32.mrf.mxu0
        %v3935 = vadd.f32 %v3845, %v3934
        %3936 = vmatprep.mubr.f32.mxu0 0.0
        %3937 = vmatmul.mubr.f32.gmra.mxu0 %v3800
        %v3938 = vpop.f32.mrf.mxu0
        %v3939 = vadd.f32 %v3841, %v3938
        %v3940 = vpop.f32.mrf.mxu0
        %v3941 = vadd.f32 %v3845, %v3940
        %3942 = vmatprep.mubr.f32.mxu0 0.0
        %3943 = vmatmul.mubr.f32.gmra.mxu0 %v3801
        %v3944 = vpop.f32.mrf.mxu0
        %v3945 = vadd.f32 %v3841, %v3944
        %v3946 = vpop.f32.mrf.mxu0
        %v3947 = vadd.f32 %v3845, %v3946
        %3948 = vmatprep.mubr.f32.mxu0 0.0
        %3949 = vmatmul.mubr.f32.gmra.mxu0 %v3802
        %v3950 = vpop.f32.mrf.mxu0
        %v3951 = vadd.f32 %v3841, %v3950
        %v3952 = vpop.f32.mrf.mxu0
        %v3953 = vadd.f32 %v3845, %v3952
        %3954 = vmatprep.mubr.f32.mxu0 0.0
        %3955 = vmatmul.mubr.f32.gmra.mxu0 %v3803
        %v3956 = vpop.f32.mrf.mxu0
        %v3957 = vadd.f32 %v3841, %v3956
        %v3958 = vpop.f32.mrf.mxu0
        %v3959 = vadd.f32 %v3845, %v3958
        %3960 = vdwg.mxu0
        %v3961 = vmax.f32 %v3915, 0.0
        %v3962 = vmax.f32 %v3917, 0.0
        %v3963 = vmax.f32 %v3921, 0.0
        %v3964 = vmax.f32 %v3923, 0.0
        %v3965 = vmax.f32 %v3927, 0.0
        %v3966 = vmax.f32 %v3929, 0.0
        %v3967 = vmax.f32 %v3933, 0.0
        %v3968 = vmax.f32 %v3935, 0.0
        %v3969 = vmax.f32 %v3939, 0.0
        %v3970 = vmax.f32 %v3941, 0.0
        %v3971 = vmax.f32 %v3945, 0.0
        %v3972 = vmax.f32 %v3947, 0.0
        %v3973 = vmax.f32 %v3951, 0.0
        %v3974 = vmax.f32 %v3953, 0.0
        %v3975 = vmax.f32 %v3957, 0.0
        %v3976 = vmax.f32 %v3959, 0.0
        %v3977 = vld [vmem:[#allocation19] sm:$0xff]
        %v3978 = vld [vmem:[#allocation19 + $0x8] sm:$0xff]
        %v3979 = vld [vmem:[#allocation19 + $0x10] sm:$0xff]
        %v3980 = vld [vmem:[#allocation19 + $0x18] sm:$0xff]
        %v3981 = vld [vmem:[#allocation19 + $0x20] sm:$0xff]
        %v3982 = vld [vmem:[#allocation19 + $0x28] sm:$0xff]
        %v3983 = vld [vmem:[#allocation19 + $0x30] sm:$0xff]
        %v3984 = vld [vmem:[#allocation19 + $0x38] sm:$0xff]
        %v3985 = vld [vmem:[#allocation19 + $0x40] sm:$0xff]
        %v3986 = vld [vmem:[#allocation19 + $0x48] sm:$0xff]
        %v3987 = vld [vmem:[#allocation19 + $0x50] sm:$0xff]
        %v3988 = vld [vmem:[#allocation19 + $0x58] sm:$0xff]
        %v3989 = vld [vmem:[#allocation19 + $0x60] sm:$0xff]
        %v3990 = vld [vmem:[#allocation19 + $0x68] sm:$0xff]
        %v3991 = vld [vmem:[#allocation19 + $0x70] sm:$0xff]
        %v3992 = vld [vmem:[#allocation19 + $0x78] sm:$0xff]
        %v3993 = vld [vmem:[#allocation19 + $0x80] sm:$0xff]
        %v3994 = vld [vmem:[#allocation19 + $0x88] sm:$0xff]
        %v3995 = vld [vmem:[#allocation19 + $0x90] sm:$0xff]
        %v3996 = vld [vmem:[#allocation19 + $0x98] sm:$0xff]
        %v3997 = vld [vmem:[#allocation19 + $0xa0] sm:$0xff]
        %v3998 = vld [vmem:[#allocation19 + $0xa8] sm:$0xff]
        %v3999 = vld [vmem:[#allocation19 + $0xb0] sm:$0xff]
        %v4000 = vld [vmem:[#allocation19 + $0xb8] sm:$0xff]
        %v4001 = vld [vmem:[#allocation19 + $0xc0] sm:$0xff]
        %v4002 = vld [vmem:[#allocation19 + $0xc8] sm:$0xff]
        %v4003 = vld [vmem:[#allocation19 + $0xd0] sm:$0xff]
        %v4004 = vld [vmem:[#allocation19 + $0xd8] sm:$0xff]
        %v4005 = vld [vmem:[#allocation19 + $0xe0] sm:$0xff]
        %v4006 = vld [vmem:[#allocation19 + $0xe8] sm:$0xff]
        %v4007 = vld [vmem:[#allocation19 + $0xf0] sm:$0xff]
        %v4008 = vld [vmem:[#allocation19 + $0xf8] sm:$0xff]
        %v4009 = vld [vmem:[%s17] sm:$0x1]
        %v4011 = vlaneseq
        %v4012 = vshrl.u32 %v4011, 7
        %v4013 = vsub.s32 0, %v4012
        %v4014 = vrot.slane %v4009, %v4013
        %4016 = vmatprep.subr.mxu0 0.0
        %4017 = vmatpush1.msra.mxu0 %v3992
        %4018 = vmatprep.subr.mxu0 0.0
        %4019 = vmatpush1.msra.mxu0 %v3991
        %4020 = vmatprep.subr.mxu0 0.0
        %4021 = vmatpush1.msra.mxu0 %v3990
        %4022 = vmatprep.subr.mxu0 0.0
        %4023 = vmatpush1.msra.mxu0 %v3989
        %4024 = vmatprep.subr.mxu0 0.0
        %4025 = vmatpush1.msra.mxu0 %v3988
        %4026 = vmatprep.subr.mxu0 0.0
        %4027 = vmatpush1.msra.mxu0 %v3987
        %4028 = vmatprep.subr.mxu0 0.0
        %4029 = vmatpush1.msra.mxu0 %v3986
        %4030 = vmatprep.subr.mxu0 0.0
        %4031 = vmatpush1.msra.mxu0 %v3985
        %4032 = vmatprep.subr.mxu0 0.0
        %4033 = vmatpush1.msra.mxu0 %v3984
        %4034 = vmatprep.subr.mxu0 0.0
        %4035 = vmatpush1.msra.mxu0 %v3983
        %4036 = vmatprep.subr.mxu0 0.0
        %4037 = vmatpush1.msra.mxu0 %v3982
        %4038 = vmatprep.subr.mxu0 0.0
        %4039 = vmatpush1.msra.mxu0 %v3981
        %4040 = vmatprep.subr.mxu0 0.0
        %4041 = vmatpush1.msra.mxu0 %v3980
        %4042 = vmatprep.subr.mxu0 0.0
        %4043 = vmatpush1.msra.mxu0 %v3979
        %4044 = vmatprep.subr.mxu0 0.0
        %4045 = vmatpush1.msra.mxu0 %v3978
        %4046 = vmatprep.subr.mxu0 0.0
        %4047 = vmatpush1.msra.mxu0 %v3977
        %4048 = vmatprep.subr.mxu0 0.0
        %4049 = vmatpush2.msra.mxu0 %v4008
        %4050 = vmatprep.subr.mxu0 0.0
        %4051 = vmatpush2.msra.mxu0 %v4007
        %4052 = vmatprep.subr.mxu0 0.0
        %4053 = vmatpush2.msra.mxu0 %v4006
        %4054 = vmatprep.subr.mxu0 0.0
        %4055 = vmatpush2.msra.mxu0 %v4005
        %4056 = vmatprep.subr.mxu0 0.0
        %4057 = vmatpush2.msra.mxu0 %v4004
        %4058 = vmatprep.subr.mxu0 0.0
        %4059 = vmatpush2.msra.mxu0 %v4003
        %4060 = vmatprep.subr.mxu0 0.0
        %4061 = vmatpush2.msra.mxu0 %v4002
        %4062 = vmatprep.subr.mxu0 0.0
        %4063 = vmatpush2.msra.mxu0 %v4001
        %4064 = vmatprep.subr.mxu0 0.0
        %4065 = vmatpush2.msra.mxu0 %v4000
        %4066 = vmatprep.subr.mxu0 0.0
        %4067 = vmatpush2.msra.mxu0 %v3999
        %4068 = vmatprep.subr.mxu0 0.0
        %4069 = vmatpush2.msra.mxu0 %v3998
        %4070 = vmatprep.subr.mxu0 0.0
        %4071 = vmatpush2.msra.mxu0 %v3997
        %4072 = vmatprep.subr.mxu0 0.0
        %4073 = vmatpush2.msra.mxu0 %v3996
        %4074 = vmatprep.subr.mxu0 0.0
        %4075 = vmatpush2.msra.mxu0 %v3995
        %4076 = vmatprep.subr.mxu0 0.0
        %4077 = vmatpush2.msra.mxu0 %v3994
        %4078 = vmatprep.subr.mxu0 0.0
        %4079 = vmatpush2.msra.mxu0 %v3993
        %4080 = vmatprep.mubr.f32.mxu0 %v3962
        %4081 = vmatmul.mubr.f32.gmra.mxu0 %v3961
        %v4082 = vpop.f32.mrf.mxu0
        %v4083 = vadd.f32 %v4014, %v4082
        %v4084 = vpop.f32.mrf.mxu0
        %4085 = vmatprep.mubr.f32.mxu0 %v3964
        %4086 = vmatmul.mubr.f32.gmra.mxu0 %v3963
        %v4087 = vpop.f32.mrf.mxu0
        %v4088 = vadd.f32 %v4014, %v4087
        %v4089 = vpop.f32.mrf.mxu0
        %4090 = vmatprep.mubr.f32.mxu0 %v3966
        %4091 = vmatmul.mubr.f32.gmra.mxu0 %v3965
        %v4092 = vpop.f32.mrf.mxu0
        %v4093 = vadd.f32 %v4014, %v4092
        %v4094 = vpop.f32.mrf.mxu0
        %4095 = vmatprep.mubr.f32.mxu0 %v3968
        %4096 = vmatmul.mubr.f32.gmra.mxu0 %v3967
        %v4097 = vpop.f32.mrf.mxu0
        %v4098 = vadd.f32 %v4014, %v4097
        %v4099 = vpop.f32.mrf.mxu0
        %4100 = vmatprep.mubr.f32.mxu0 %v3970
        %4101 = vmatmul.mubr.f32.gmra.mxu0 %v3969
        %v4102 = vpop.f32.mrf.mxu0
        %v4103 = vadd.f32 %v4014, %v4102
        %v4104 = vpop.f32.mrf.mxu0
        %4105 = vmatprep.mubr.f32.mxu0 %v3972
        %4106 = vmatmul.mubr.f32.gmra.mxu0 %v3971
        %v4107 = vpop.f32.mrf.mxu0
        %v4108 = vadd.f32 %v4014, %v4107
        %v4109 = vpop.f32.mrf.mxu0
        %4110 = vmatprep.mubr.f32.mxu0 %v3974
        %4111 = vmatmul.mubr.f32.gmra.mxu0 %v3973
        %v4112 = vpop.f32.mrf.mxu0
        %v4113 = vadd.f32 %v4014, %v4112
        %v4114 = vpop.f32.mrf.mxu0
        %4115 = vmatprep.mubr.f32.mxu0 %v3976
        %4116 = vmatmul.mubr.f32.gmra.mxu0 %v3975
        %v4117 = vpop.f32.mrf.mxu0
        %v4118 = vadd.f32 %v4014, %v4117
        %v4119 = vpop.f32.mrf.mxu0
        %4120 = vdwg.mxu0
        %v4121 = vadd.f32 %v3796, %v4083
        %v4122 = vadd.f32 %v3797, %v4088
        %v4123 = vadd.f32 %v3798, %v4093
        %v4124 = vadd.f32 %v3799, %v4098
        %v4125 = vadd.f32 %v3800, %v4103
        %v4126 = vadd.f32 %v3801, %v4108
        %v4127 = vadd.f32 %v3802, %v4113
        %v4128 = vadd.f32 %v3803, %v4118
        %4129 = vadd.xlane.f32.xlu0 %v4121
        %v4130 = vpop.xlane.xlu0 %4129
        %4131 = vadd.xlane.f32.xlu0 %v4122
        %v4132 = vpop.xlane.xlu0 %4131
        %4133 = vadd.xlane.f32.xlu0 %v4123
        %v4134 = vpop.xlane.xlu0 %4133
        %4135 = vadd.xlane.f32.xlu0 %v4124
        %v4136 = vpop.xlane.xlu0 %4135
        %4137 = vadd.xlane.f32.xlu0 %v4125
        %v4138 = vpop.xlane.xlu0 %4137
        %4139 = vadd.xlane.f32.xlu0 %v4126
        %v4140 = vpop.xlane.xlu0 %4139
        %4141 = vadd.xlane.f32.xlu0 %v4127
        %v4142 = vpop.xlane.xlu0 %4141
        %4143 = vadd.xlane.f32.xlu0 %v4128
        %v4144 = vpop.xlane.xlu0 %4143
        %v4145 = vmul.f32 %v4130, %v3701
        %v4146 = vmul.f32 %v4132, %v3701
        %v4147 = vmul.f32 %v4134, %v3701
        %v4148 = vmul.f32 %v4136, %v3701
        %v4149 = vmul.f32 %v4138, %v3701
        %v4150 = vmul.f32 %v4140, %v3701
        %v4151 = vmul.f32 %v4142, %v3701
        %v4152 = vmul.f32 %v4144, %v3701
        %v4153 = vsub.f32 %v4121, %v4145
        %v4154 = vsub.f32 %v4122, %v4146
        %v4155 = vsub.f32 %v4123, %v4147
        %v4156 = vsub.f32 %v4124, %v4148
        %v4157 = vsub.f32 %v4125, %v4149
        %v4158 = vsub.f32 %v4126, %v4150
        %v4159 = vsub.f32 %v4127, %v4151
        %v4160 = vsub.f32 %v4128, %v4152
        %v4161 = vmul.f32 %v4153, %v4153
        %v4162 = vmul.f32 %v4154, %v4154
        %v4163 = vmul.f32 %v4155, %v4155
        %v4164 = vmul.f32 %v4156, %v4156
        %v4165 = vmul.f32 %v4157, %v4157
        %v4166 = vmul.f32 %v4158, %v4158
        %v4167 = vmul.f32 %v4159, %v4159
        %v4168 = vmul.f32 %v4160, %v4160
        %4169 = vadd.xlane.f32.xlu0 %v4161
        %v4170 = vpop.xlane.xlu0 %4169
        %4171 = vadd.xlane.f32.xlu0 %v4162
        %v4172 = vpop.xlane.xlu0 %4171
        %4173 = vadd.xlane.f32.xlu0 %v4163
        %v4174 = vpop.xlane.xlu0 %4173
        %4175 = vadd.xlane.f32.xlu0 %v4164
        %v4176 = vpop.xlane.xlu0 %4175
        %4177 = vadd.xlane.f32.xlu0 %v4165
        %v4178 = vpop.xlane.xlu0 %4177
        %4179 = vadd.xlane.f32.xlu0 %v4166
        %v4180 = vpop.xlane.xlu0 %4179
        %4181 = vadd.xlane.f32.xlu0 %v4167
        %v4182 = vpop.xlane.xlu0 %4181
        %4183 = vadd.xlane.f32.xlu0 %v4168
        %v4184 = vpop.xlane.xlu0 %4183
        %v4185 = vmul.f32 %v4170, %v3701
        %v4186 = vmul.f32 %v4172, %v3701
        %v4187 = vmul.f32 %v4174, %v3701
        %v4188 = vmul.f32 %v4176, %v3701
        %v4189 = vmul.f32 %v4178, %v3701
        %v4190 = vmul.f32 %v4180, %v3701
        %v4191 = vmul.f32 %v4182, %v3701
        %v4192 = vmul.f32 %v4184, %v3701
        %v4193 = vadd.f32 %v4185, 1e-05
        %v4194 = vadd.f32 %v4186, 1e-05
        %v4195 = vadd.f32 %v4187, 1e-05
        %v4196 = vadd.f32 %v4188, 1e-05
        %v4197 = vadd.f32 %v4189, 1e-05
        %v4198 = vadd.f32 %v4190, 1e-05
        %v4199 = vadd.f32 %v4191, 1e-05
        %v4200 = vadd.f32 %v4192, 1e-05
        %v4201 = vrsqrt.pop %v4193
        %v4202 = vrsqrt.pop %v4194
        %v4203 = vrsqrt.pop %v4195
        %v4204 = vrsqrt.pop %v4196
        %v4205 = vrsqrt.pop %v4197
        %v4206 = vrsqrt.pop %v4198
        %v4207 = vrsqrt.pop %v4199
        %v4208 = vrsqrt.pop %v4200
        %v4209 = vmul.f32 %v4153, %v4201
        %v4210 = vmul.f32 %v4154, %v4202
        %v4211 = vmul.f32 %v4155, %v4203
        %v4212 = vmul.f32 %v4156, %v4204
        %v4213 = vmul.f32 %v4157, %v4205
        %v4214 = vmul.f32 %v4158, %v4206
        %v4215 = vmul.f32 %v4159, %v4207
        %v4216 = vmul.f32 %v4160, %v4208
        %v4217 = vld [vmem:[%s18] sm:$0x1]
        %v4219 = vlaneseq
        %v4220 = vshrl.u32 %v4219, 7
        %v4221 = vsub.s32 0, %v4220
        %v4222 = vrot.slane %v4217, %v4221
        %v4224 = vmul.f32 %v4209, %v4222
        %v4225 = vmul.f32 %v4210, %v4222
        %v4226 = vmul.f32 %v4211, %v4222
        %v4227 = vmul.f32 %v4212, %v4222
        %v4228 = vmul.f32 %v4213, %v4222
        %v4229 = vmul.f32 %v4214, %v4222
        %v4230 = vmul.f32 %v4215, %v4222
        %v4231 = vmul.f32 %v4216, %v4222
        %v4232 = vld [vmem:[%s19] sm:$0x1]
        %v4234 = vlaneseq
        %v4235 = vshrl.u32 %v4234, 7
        %v4236 = vsub.s32 0, %v4235
        %v4237 = vrot.slane %v4232, %v4236
        %v4239 = vadd.f32 %v4224, %v4237
        %v4240 = vadd.f32 %v4225, %v4237
        %v4241 = vadd.f32 %v4226, %v4237
        %v4242 = vadd.f32 %v4227, %v4237
        %v4243 = vadd.f32 %v4228, %v4237
        %v4244 = vadd.f32 %v4229, %v4237
        %v4245 = vadd.f32 %v4230, %v4237
        %v4246 = vadd.f32 %v4231, %v4237
        %4247 = vst [vmem:[%s873] sm:$0xff] %v4239
        %4248 = vst [vmem:[%s873 + $0x8] sm:$0xff] %v4240
        %4249 = vst [vmem:[%s873 + $0x10] sm:$0xff] %v4241
        %4250 = vst [vmem:[%s873 + $0x18] sm:$0xff] %v4242
        %4251 = vst [vmem:[%s873 + $0x20] sm:$0xff] %v4243
        %4252 = vst [vmem:[%s873 + $0x28] sm:$0xff] %v4244
        %4253 = vst [vmem:[%s873 + $0x30] sm:$0xff] %v4245
        %4254 = vst [vmem:[%s873 + $0x38] sm:$0xff] %v4246
        %s4255 = sand.u32 %s512, 1
        %s4256 = scalar_lea.sflag [#allocation6], %s4255
        %s4257 = sand.u32 %s512, 1
        %s4258 = smul.addr %s4257, 64
        %s4259 = scalar_lea.vmem [#allocation21], %s4258
        // Predicated region
        $region145: #{tpu_custom_call.1} parent=99 // pred_check
          %p4260 = pneg %p522
        $region146: #{tpu_custom_call.1} parent=99 // pred_check_branch
          %4262 = sbr.rel (%p4260) target = $region148
        $region147: #{tpu_custom_call.1} parent=99 // pred_region
          %s4263 = smul.u32 8, %s51
          %s4265 = ssub.s32 1024, 1024
          %4266 = vsyncadd %s4256, %s4265
          %s4267 = smul.addr %s50, 16
          %s4268 = sadd.s32 %s4263, %s4267
          %s4269 = smul.addr %s4268, 128
          %s4270 = scalar_lea.hbm %s20, %s4269
          %s4271 = sshll.u32 %s4259, 4
          %s4272 = int_to_ptr.vmem [resolvable:$true] %s4271
          %4277 = dma.vmem_to_hbm [thread:$0]  %s4272, 1024, %s4270, %s4256, 128, 128, 8
        $region148: #{tpu_custom_call.1} parent=99 // pred_fallthru
          _
      $region100: #{tpu_custom_call.1} parent=5 // pred_fallthru
        _
      %p4278 = scmp.le.s32.totalorder 2, %s41
      // Predicated region
      $region149: #{tpu_custom_call.1} parent=5 // pred_check
        %p4279 = pneg %p4278
      $region150: #{tpu_custom_call.1} parent=5 // pred_check_branch
        %4281 = sbr.rel (%p4279) target = $region152
      $region151: #{tpu_custom_call.1} parent=5 // pred_region
        %s4282 = ssub.s32 %s41, 2
        // Predicated region
        $region153: #{tpu_custom_call.1} parent=151 // pred_check
          %p4283 = pneg %p528
        $region154: #{tpu_custom_call.1} parent=151 // pred_check_branch
          %4285 = sbr.rel (%p4283) target = $region156
        $region155: #{tpu_custom_call.1} parent=151 // pred_region
          %s4286 = sand.u32 %s513, 1
          %s4287 = scalar_lea.sflag [#allocation6], %s4286
          %s4288 = sand.u32 %s513, 1
          %s4289 = smul.addr %s4288, 64
          %s4290 = scalar_lea.vmem [#allocation21], %s4289
          %4291 = dma.done %s4287, 1024
        $region156: #{tpu_custom_call.1} parent=151 // pred_fallthru
          _
      $region152: #{tpu_custom_call.1} parent=5 // pred_fallthru
        _
    $region6: #{tpu_custom_call.1} parent=1 // loop_footer
      %s45 = sadd.s32 1, %s41
    $region7: #{tpu_custom_call.1} parent=1 // loop_footer_branch
      %40 = sbr.rel target = $region3
    $region8: #{tpu_custom_call.1} parent=1 // loop_exit
      _
    %4292 = vsyncpa [#allocation5], 1
    %s4293 = scalar_lea.sflag [#allocation5], 1
    %4294 = vsyncpa %s4293, 1
    %4295 = vsyncpa [#allocation8], 1
    %s4296 = scalar_lea.sflag [#allocation8], 1
    %4297 = vsyncpa %s4296, 1
    %4298 = vsyncpa [#allocation11], 1
    %s4299 = scalar_lea.sflag [#allocation11], 1
    %4300 = vsyncpa %s4299, 1
    %4301 = vsyncpa [#allocation14], 1
    %4302 = vsyncpa [#allocation17], 1
    %4303 = vsyncpa [#allocation20], 1
    %4304 = vsyncpa [#allocation6], 1
    %s4305 = scalar_lea.sflag [#allocation6], 1
    %4306 = vsyncpa %s4305, 1

</llo_original>
